<compile_context>
chip_gen: v7x
topology: tpu7x:2x2x1
jax: 0.10.0
libtpu: 0.0.40
codegen_flags: <defaults>
</compile_context>

<pallas_src>
import math

import jax
import jax.numpy as jnp
from jax.experimental import pallas as pl
from jax.experimental.pallas import tpu as pltpu

# ---------------- model dims (small, synthetic) ----------------
B = 2          # batch (per stream)
T = 8          # sequence length
D = 32         # d_model
H = 4          # heads
DH = D // H    # dim per head
DFF = 64       # d_ff
HT = H * T     # heads folded into the key axis of the attention scores
EPS = 1e-6
NEG_INF = -1e18

# MXU operand dtype: set to jnp.bfloat16 on v6e/v7x (bf16-native MXU); default f32 keeps maximal
# numerical margin and is the right choice for v5e.  Accumulation is always f32.
MXU_DTYPE = jnp.float32


def _mxu(x):
    return x.astype(MXU_DTYPE)


# ---------------- in-kernel helpers (traced inline) ----------------
def _layer_norm(x, gamma, beta):
    mu = jnp.mean(x, axis=-1, keepdims=True)
    var = jnp.mean(jnp.square(x - mu), axis=-1, keepdims=True)
    return (x - mu) * jax.lax.rsqrt(var + EPS) * gamma + beta


def _mha(q, k, v, add_mask, gsum, wo, bo, nb):
    """Multi-headed attention, all H heads in one pass.

    q, k, v  : (nb*T, D) projected activations (rows = flattened (batch, time)).
    add_mask : (nb, 1, H*T) additive key mask, pre-tiled to the (h, k) lane layout.
    gsum     : (H*T, D) constant 0/1 head-group matrix; row h*T+k equals the head-h lane mask.
               Used (a) to build the head-blocked K/V stacks and (b) as `p @ gsum` to place each
               head's softmax denominator on that head's output lanes.
    Returns (nb*T, D) attention output (before residual).
    """
    scale = 1.0 / math.sqrt(DH)
    q3 = (q * scale).reshape(nb, T, D)
    k3 = k.reshape(nb, T, D)
    v3 = v.reshape(nb, T, D)

    gsum_e = gsum[None, :, :]                                      # (1, H*T, D)
    # Head-blocked stacks: stack[b, h*T+k, :] = {k,v}[b, k, :] * head_mask[h, :]
    kst = jnp.concatenate([k3] * H, axis=1) * gsum_e               # (nb, H*T, D)
    vst = jnp.concatenate([v3] * H, axis=1) * gsum_e               # (nb, H*T, D)

    # scores for ALL heads in one batched matmul; lane m = h*T + k holds head h / key k
    s = jnp.einsum('bqd,bmd->bqm', _mxu(q3), _mxu(kst),
                   preferred_element_type=jnp.float32)             # (nb, T, H*T)
    s = s + add_mask                                               # one mask add per call
    s = s - jnp.max(s, axis=-1, keepdims=True)                     # shared row shift (softmax is
    p = jnp.exp(s)                                                 #  invariant per head group)

    # unnormalized context + per-head denominators (one matmul each), then a single divide
    ctx = jnp.einsum('bqm,bmd->bqd', _mxu(p), _mxu(vst),
                     preferred_element_type=jnp.float32).reshape(nb * T, D)
    den = jnp.dot(_mxu(p.reshape(nb * T, HT)), _mxu(gsum),
                  preferred_element_type=jnp.float32)              # (nb*T, D), lane-aligned sums
    ctx = ctx * pl.reciprocal(den, approx=True)

    return jnp.dot(_mxu(ctx), _mxu(wo), preferred_element_type=jnp.float32) + bo


# ---------------- fused whole-layer kernel ----------------
def fused_layer_kernel(z_ref, am_ref, gsum_ref,
                       ga_ref, ba_ref,
                       wqkv_s_ref, bqkv_s_ref, wo_s_ref, bo_s_ref,
                       gc_ref, bc_ref,
                       wqkv_c_ref, bqkv_c_ref, wkv_c_ref, bkv_c_ref, wo_c_ref, bo_c_ref,
                       w1_ref, b1_ref, w2_ref, b2_ref,
                       o_ref):
    """Whole encoder layer. z = [inputs ; trans_inputs] as a flat (2B*T, D) row slab."""
    z = z_ref[...]                       # (2B*T, D)
    am = am_ref[...]                     # (2B, 1, H*T) additive key masks (pre-tiled)
    gsum = gsum_ref[...]                 # (H*T, D) head-group 0/1 matrix

    ga = ga_ref[...]; ba = ba_ref[...]
    gc = gc_ref[...]; bc = bc_ref[...]
    wqkv_s = wqkv_s_ref[...]; bqkv_s = bqkv_s_ref[...]
    wo_s = wo_s_ref[...]; bo_s = bo_s_ref[...]
    wqkv_c = wqkv_c_ref[...]; bqkv_c = bqkv_c_ref[...]
    wkv_c = wkv_c_ref[...]; bkv_c = bkv_c_ref[...]
    wo_c = wo_c_ref[...]; bo_c = bo_c_ref[...]
    w1 = w1_ref[...]; b1 = b1_ref[...]
    w2 = w2_ref[...]; b2 = b2_ref[...]

    R = z.shape[0]          # 2B*T rows
    Rh = R // 2             # rows per stream
    B2 = am.shape[0]        # 2B
    Bh = B2 // 2

    # ---- self-attention on both streams at once (shared att_LN + self_attn weights) ----
    zn = _layer_norm(z, ga, ba)
    proj = jnp.dot(_mxu(zn), _mxu(wqkv_s), preferred_element_type=jnp.float32) + bqkv_s  # (R, 3D)
    z = z + _mha(proj[:, :D], proj[:, D:2 * D], proj[:, 2 * D:],
                 am, gsum, wo_s, bo_s, nb=B2)

    # ---- shared cross-lingual attention ----
    # one cross-LN + one packed projection on the whole slab: q for BOTH streams plus k/v of the
    # `inputs` stream (k/v of the pre-update trans stream are produced but unused -> cheap filler).
    zc = _layer_norm(z, gc, bc)
    projc = jnp.dot(_mxu(zc), _mxu(wqkv_c), preferred_element_type=jnp.float32) + bqkv_c  # (R, 3D)
    k_x = projc[:Rh, D:2 * D]
    v_x = projc[:Rh, 2 * D:]
    am_x = am[:Bh]                                   # src key mask
    am_y = am[Bh:]                                   # trans key mask

    # trans = cross(kv=inputs, q=trans, mask=src_mask) + trans
    dy = _mha(projc[Rh:, :D], k_x, v_x, am_x, gsum, wo_c, bo_c, nb=Bh)
    y_new = z[Rh:] + dy

    # inputs = cross(kv=trans(updated), q=inputs, mask=trans_mask) + inputs
    y2n = _layer_norm(y_new, gc, bc)
    kv_y = jnp.dot(_mxu(y2n), _mxu(wkv_c), preferred_element_type=jnp.float32) + bkv_c   # (Rh, 2D)
    dx = _mha(projc[:Rh, :D], kv_y[:, :D], kv_y[:, D:], am_y, gsum, wo_c, bo_c, nb=Bh)
    x_new = z[:Rh] + dx

    # reassemble the slab through the output VMEM buffer (no value concatenate)
    o_ref[0:Rh, :] = x_new
    o_ref[Rh:R, :] = y_new
    z2 = o_ref[...]

    # ---- FFN on both streams at once (forward() reuses att_layer_norm here; reproduced) ----
    zn2 = _layer_norm(z2, ga, ba)
    hid = jnp.maximum(jnp.dot(_mxu(zn2), _mxu(w1), preferred_element_type=jnp.float32) + b1, 0.0)
    ff = jnp.dot(_mxu(hid), _mxu(w2), preferred_element_type=jnp.float32) + b2
    o_ref[...] = (z2 + ff).astype(o_ref.dtype)


# ---------------- wrapper ----------------
def transformer_encoder_layer(inputs, mask, trans_inputs, trans_mask, params):
    """Reproduces TransformerEncoderLayer.forward for the chosen model_opt config."""
    att_g, att_b = params["att_ln"]
    wqkv_s, bqkv_s, wo_s, bo_s = params["self_attn"]
    cross_g, cross_b = params["cross_ln"]
    wqkv_c, bqkv_c, wo_c, bo_c = params["cross_attn"]
    w1, b1, w2, b2 = params["ffn"]

    # trace-time (free) re-packing: split cross k/v weights, stack streams, pre-tile masks
    wkv_c = wqkv_c[:, D:]
    bkv_c = bqkv_c[:, D:]

    z = jnp.concatenate([inputs, trans_inputs], axis=0).reshape(2 * B * T, D)
    add_mask = jnp.concatenate([jnp.where(mask > 0.0, NEG_INF, 0.0),
                                jnp.where(trans_mask > 0.0, NEG_INF, 0.0)],
                               axis=0).astype(jnp.float32)               # (2B, 1, T)
    am = jnp.tile(add_mask, (1, 1, H))                                   # (2B, 1, H*T), m = h*T+k

    # head-group matrix: row h*T+k is the head-h lane mask over D
    hmask = (jnp.arange(D)[None, :] // DH ==
             jnp.arange(H)[:, None]).astype(jnp.float32)                 # (H, D)
    gsum = jnp.repeat(hmask, T, axis=0)                                  # (H*T, D)

    args = (z, am, gsum, att_g, att_b,
            wqkv_s, bqkv_s, wo_s, bo_s,
            cross_g, cross_b,
            wqkv_c, bqkv_c, wkv_c, bkv_c, wo_c, bo_c,
            w1, b1, w2, b2)

    # advisory cost estimate (helps XLA schedule around the custom call)
    rows, rh = 2 * B * T, B * T
    mm = lambda M, K, N: 2 * M * K * N
    flops = (mm(rows, D, 3 * D) + mm(rows, D, HT) + 2 * mm(rows, HT, D) + mm(rows, D, D)
             + mm(rows, D, 3 * D) + mm(rh, D, 2 * D)
             + 2 * (mm(rh, D, HT) + 2 * mm(rh, HT, D) + mm(rh, D, D))
             + mm(rows, D, DFF) + mm(rows, DFF, D))
    bytes_accessed = int(sum(int(a.size) * a.dtype.itemsize for a in args) + rows * D * 4)
    cost = pl.CostEstimate(flops=int(flops), transcendentals=int(2 * rows * HT + 8 * rows),
                           bytes_accessed=bytes_accessed)

    out = pl.pallas_call(
        fused_layer_kernel,
        out_shape=jax.ShapeDtypeStruct((2 * B * T, D), jnp.float32),
        in_specs=[pl.BlockSpec(memory_space=pltpu.MemorySpace.VMEM) for _ in args],
        out_specs=pl.BlockSpec(memory_space=pltpu.MemorySpace.VMEM),
        cost_estimate=cost,
    )(*args)
    return out[:B * T].reshape(B, T, D), out[B * T:].reshape(B, T, D)

# TODO(synk): do_ctx_attn (doc-level attention, use_ord_ctx path) is not exercised for the chosen
#             model_opt config; it is omitted rather than faked.


# ---------------- deterministic parameter init ----------------
def init_params(key):
    def lin(k, fan_in, fan_out):
        kw, kb = jax.random.split(k)
        w = 0.05 * jax.random.normal(kw, (fan_in, fan_out), jnp.float32)   # (in, out) layout
        b = 0.05 * jax.random.normal(kb, (1, fan_out), jnp.float32)
        return w, b

    keys = jax.random.split(key, 16)
    att_ln = (1.0 + 0.01 * jax.random.normal(keys[0], (1, D), jnp.float32),
              0.01 * jax.random.normal(keys[1], (1, D), jnp.float32))
    cross_ln = (1.0 + 0.01 * jax.random.normal(keys[2], (1, D), jnp.float32),
                0.01 * jax.random.normal(keys[3], (1, D), jnp.float32))

    def attn_params(kq, kk, kv_, ko):
        wq, bq = lin(kq, D, D)
        wk, bk = lin(kk, D, D)
        wv, bv = lin(kv_, D, D)
        wo, bo = lin(ko, D, D)
        wqkv = jnp.concatenate([wq, wk, wv], axis=1)    # packed (D, 3D) = [Wq | Wk | Wv]
        bqkv = jnp.concatenate([bq, bk, bv], axis=1)    # packed (1, 3D)
        return wqkv, bqkv, wo, bo

    self_attn = attn_params(keys[4], keys[5], keys[6], keys[7])
    cross_attn = attn_params(keys[8], keys[9], keys[10], keys[11])

    w1, b1 = lin(keys[12], D, DFF)
    w2, b2 = lin(keys[13], DFF, D)
    ffn = (w1, b1, w2, b2)

    return {"att_ln": att_ln, "self_attn": self_attn,
            "cross_ln": cross_ln, "cross_attn": cross_attn, "ffn": ffn}


# ---------------- pure-JAX reference (same semantics, exact arithmetic) ----------------
def reference_layer(inputs, mask, trans_inputs, trans_mask, params):
    att_g, att_b = params["att_ln"]
    wqkv_s, bqkv_s, wo_s, bo_s = params["self_attn"]
    cross_g, cross_b = params["cross_ln"]
    wqkv_c, bqkv_c, wo_c, bo_c = params["cross_attn"]
    w1, b1, w2, b2 = params["ffn"]

    def ln(x, g, b):
        mu = x.mean(-1, keepdims=True)
        var = ((x - mu) ** 2).mean(-1, keepdims=True)
        return (x - mu) / jnp.sqrt(var + EPS) * g + b

    def mha(q_x, kv_x, key_mask, g, b, wqkv, bqkv, wo, bo):
        qn = ln(q_x, g, b)
        kvn = ln(kv_x, g, b)
        q = qn @ wqkv[:, :D] + bqkv[:, :D]
        k = kvn @ wqkv[:, D:2 * D] + bqkv[:, D:2 * D]
        v = kvn @ wqkv[:, 2 * D:] + bqkv[:, 2 * D:]
        bn = q_x.shape[0]
        q = q.reshape(bn, T, H, DH).transpose(0, 2, 1, 3) / math.sqrt(DH)
        k = k.reshape(bn, T, H, DH).transpose(0, 2, 1, 3)
        v = v.reshape(bn, T, H, DH).transpose(0, 2, 1, 3)
        s = jnp.einsum('bhqd,bhkd->bhqk', q, k)
        s = jnp.where(key_mask[:, None, :, :] > 0.0, NEG_INF, s)
        p = jax.nn.softmax(s, axis=-1)
        ctx = jnp.einsum('bhqk,bhkd->bhqd', p, v).transpose(0, 2, 1, 3).reshape(bn, T, D)
        return ctx @ wo + bo + q_x

    def ffn_block(x):
        xn = ln(x, att_g, att_b)
        h = jnp.maximum(xn @ w1 + b1, 0.0)
        return h @ w2 + b2 + x

    x = mha(inputs, inputs, mask, att_g, att_b, wqkv_s, bqkv_s, wo_s, bo_s)
    y = mha(trans_inputs, trans_inputs, trans_mask, att_g, att_b, wqkv_s, bqkv_s, wo_s, bo_s)
    y = mha(y, x, mask, cross_g, cross_b, wqkv_c, bqkv_c, wo_c, bo_c)
    x = mha(x, y, trans_mask, cross_g, cross_b, wqkv_c, bqkv_c, wo_c, bo_c)
    x = ffn_block(x)
    y = ffn_block(y)
    return x, y


if __name__ == "__main__":
    key = jax.random.PRNGKey(0)
    k_in, k_tr, k_par = jax.random.split(key, 3)

    inputs = jax.random.normal(k_in, (B, T, D), jnp.float32)
    trans_inputs = jax.random.normal(k_tr, (B, T, D), jnp.float32)

    # padding masks (1.0 == masked), ONMT-style shape (B, 1, T)
    src_lens = jnp.array([T, 5])
    trg_lens = jnp.array([7, 6])
    pos = jnp.arange(T)[None, None, :]
    mask = (pos >= src_lens[:, None, None]).astype(jnp.float32)        # (B, 1, T)
    trans_mask = (pos >= trg_lens[:, None, None]).astype(jnp.float32)  # (B, 1, T)

    params = init_params(k_par)

    out_inputs, out_trans = transformer_encoder_layer(inputs, mask, trans_inputs, trans_mask, params)
    jax.block_until_ready(out_inputs)
    jax.block_until_ready(out_trans)

    ref_inputs, ref_trans = reference_layer(inputs, mask, trans_inputs, trans_mask, params)
    err = max(float(jnp.max(jnp.abs(out_inputs - ref_inputs))),
              float(jnp.max(jnp.abs(out_trans - ref_trans))))

    assert out_inputs.shape == (B, T, D) and out_trans.shape == (B, T, D)
    assert bool(jnp.all(jnp.isfinite(out_inputs))) and bool(jnp.all(jnp.isfinite(out_trans)))
    assert err < 5e-2, f"mismatch vs pure-JAX reference: {err}"
    print("KERNEL_OK")
</pallas_src>

<mosaic_0001>
module attributes {stable_mosaic.version = 11 : i64} {
  func.func @fused_layer_kernel(%arg0: memref<32x32xf32, #tpu.memory_space<vmem>>, %arg1: memref<4x1x32xf32, #tpu.memory_space<vmem>>, %arg2: memref<32x32xf32, #tpu.memory_space<vmem>>, %arg3: memref<1x32xf32, #tpu.memory_space<vmem>>, %arg4: memref<1x32xf32, #tpu.memory_space<vmem>>, %arg5: memref<32x96xf32, #tpu.memory_space<vmem>>, %arg6: memref<1x96xf32, #tpu.memory_space<vmem>>, %arg7: memref<32x32xf32, #tpu.memory_space<vmem>>, %arg8: memref<1x32xf32, #tpu.memory_space<vmem>>, %arg9: memref<1x32xf32, #tpu.memory_space<vmem>>, %arg10: memref<1x32xf32, #tpu.memory_space<vmem>>, %arg11: memref<32x96xf32, #tpu.memory_space<vmem>>, %arg12: memref<1x96xf32, #tpu.memory_space<vmem>>, %arg13: memref<32x64xf32, #tpu.memory_space<vmem>>, %arg14: memref<1x64xf32, #tpu.memory_space<vmem>>, %arg15: memref<32x32xf32, #tpu.memory_space<vmem>>, %arg16: memref<1x32xf32, #tpu.memory_space<vmem>>, %arg17: memref<32x64xf32, #tpu.memory_space<vmem>>, %arg18: memref<1x64xf32, #tpu.memory_space<vmem>>, %arg19: memref<64x32xf32, #tpu.memory_space<vmem>>, %arg20: memref<1x32xf32, #tpu.memory_space<vmem>>, %arg21: memref<32x32xf32, #tpu.memory_space<vmem>>) attributes {dimension_semantics = [], scalar_prefetch = 0 : i64, scratch_operands = 0 : i64, tpu.core_type = #tpu.core_type<tc>} {
    %c0 = arith.constant 0 : index
    %c0_0 = arith.constant 0 : index
    %0 = vector.load %arg0[%c0, %c0_0] : memref<32x32xf32, #tpu.memory_space<vmem>>, vector<32x32xf32>
    %c0_1 = arith.constant 0 : index
    %c0_2 = arith.constant 0 : index
    %c0_3 = arith.constant 0 : index
    %1 = vector.load %arg1[%c0_1, %c0_2, %c0_3] : memref<4x1x32xf32, #tpu.memory_space<vmem>>, vector<4x1x32xf32>
    %c0_4 = arith.constant 0 : index
    %c0_5 = arith.constant 0 : index
    %2 = vector.load %arg2[%c0_4, %c0_5] : memref<32x32xf32, #tpu.memory_space<vmem>>, vector<32x32xf32>
    %c0_6 = arith.constant 0 : index
    %c0_7 = arith.constant 0 : index
    %3 = vector.load %arg3[%c0_6, %c0_7] : memref<1x32xf32, #tpu.memory_space<vmem>>, vector<1x32xf32>
    %c0_8 = arith.constant 0 : index
    %c0_9 = arith.constant 0 : index
    %4 = vector.load %arg4[%c0_8, %c0_9] : memref<1x32xf32, #tpu.memory_space<vmem>>, vector<1x32xf32>
    %c0_10 = arith.constant 0 : index
    %c0_11 = arith.constant 0 : index
    %5 = vector.load %arg9[%c0_10, %c0_11] : memref<1x32xf32, #tpu.memory_space<vmem>>, vector<1x32xf32>
    %c0_12 = arith.constant 0 : index
    %c0_13 = arith.constant 0 : index
    %6 = vector.load %arg10[%c0_12, %c0_13] : memref<1x32xf32, #tpu.memory_space<vmem>>, vector<1x32xf32>
    %c0_14 = arith.constant 0 : index
    %c0_15 = arith.constant 0 : index
    %7 = vector.load %arg5[%c0_14, %c0_15] : memref<32x96xf32, #tpu.memory_space<vmem>>, vector<32x96xf32>
    %c0_16 = arith.constant 0 : index
    %c0_17 = arith.constant 0 : index
    %8 = vector.load %arg6[%c0_16, %c0_17] : memref<1x96xf32, #tpu.memory_space<vmem>>, vector<1x96xf32>
    %c0_18 = arith.constant 0 : index
    %c0_19 = arith.constant 0 : index
    %9 = vector.load %arg7[%c0_18, %c0_19] : memref<32x32xf32, #tpu.memory_space<vmem>>, vector<32x32xf32>
    %c0_20 = arith.constant 0 : index
    %c0_21 = arith.constant 0 : index
    %10 = vector.load %arg8[%c0_20, %c0_21] : memref<1x32xf32, #tpu.memory_space<vmem>>, vector<1x32xf32>
    %c0_22 = arith.constant 0 : index
    %c0_23 = arith.constant 0 : index
    %11 = vector.load %arg11[%c0_22, %c0_23] : memref<32x96xf32, #tpu.memory_space<vmem>>, vector<32x96xf32>
    %c0_24 = arith.constant 0 : index
    %c0_25 = arith.constant 0 : index
    %12 = vector.load %arg12[%c0_24, %c0_25] : memref<1x96xf32, #tpu.memory_space<vmem>>, vector<1x96xf32>
    %c0_26 = arith.constant 0 : index
    %c0_27 = arith.constant 0 : index
    %13 = vector.load %arg13[%c0_26, %c0_27] : memref<32x64xf32, #tpu.memory_space<vmem>>, vector<32x64xf32>
    %c0_28 = arith.constant 0 : index
    %c0_29 = arith.constant 0 : index
    %14 = vector.load %arg14[%c0_28, %c0_29] : memref<1x64xf32, #tpu.memory_space<vmem>>, vector<1x64xf32>
    %c0_30 = arith.constant 0 : index
    %c0_31 = arith.constant 0 : index
    %15 = vector.load %arg15[%c0_30, %c0_31] : memref<32x32xf32, #tpu.memory_space<vmem>>, vector<32x32xf32>
    %c0_32 = arith.constant 0 : index
    %c0_33 = arith.constant 0 : index
    %16 = vector.load %arg16[%c0_32, %c0_33] : memref<1x32xf32, #tpu.memory_space<vmem>>, vector<1x32xf32>
    %c0_34 = arith.constant 0 : index
    %c0_35 = arith.constant 0 : index
    %17 = vector.load %arg17[%c0_34, %c0_35] : memref<32x64xf32, #tpu.memory_space<vmem>>, vector<32x64xf32>
    %c0_36 = arith.constant 0 : index
    %c0_37 = arith.constant 0 : index
    %18 = vector.load %arg18[%c0_36, %c0_37] : memref<1x64xf32, #tpu.memory_space<vmem>>, vector<1x64xf32>
    %c0_38 = arith.constant 0 : index
    %c0_39 = arith.constant 0 : index
    %19 = vector.load %arg19[%c0_38, %c0_39] : memref<64x32xf32, #tpu.memory_space<vmem>>, vector<64x32xf32>
    %c0_40 = arith.constant 0 : index
    %c0_41 = arith.constant 0 : index
    %20 = vector.load %arg20[%c0_40, %c0_41] : memref<1x32xf32, #tpu.memory_space<vmem>>, vector<1x32xf32>
    %cst = arith.constant dense<0.000000e+00> : vector<32xf32>
    %21 = vector.multi_reduction <add>, %0, %cst [1] : vector<32x32xf32> to vector<32xf32>
    %22 = vector.shape_cast %21 : vector<32xf32> to vector<32x1xf32>
    %cst_42 = arith.constant 3.200000e+01 : f32
    %23 = vector.broadcast %cst_42 : f32 to vector<32x1xf32>
    %24 = arith.divf %22, %23 : vector<32x1xf32>
    %25 = vector.broadcast %24 : vector<32x1xf32> to vector<32x32xf32>
    %26 = arith.subf %0, %25 : vector<32x32xf32>
    %27 = arith.mulf %26, %26 : vector<32x32xf32>
    %cst_43 = arith.constant dense<0.000000e+00> : vector<32xf32>
    %28 = vector.multi_reduction <add>, %27, %cst_43 [1] : vector<32x32xf32> to vector<32xf32>
    %29 = vector.shape_cast %28 : vector<32xf32> to vector<32x1xf32>
    %cst_44 = arith.constant 3.200000e+01 : f32
    %30 = vector.broadcast %cst_44 : f32 to vector<32x1xf32>
    %31 = arith.divf %29, %30 : vector<32x1xf32>
    %32 = vector.broadcast %24 : vector<32x1xf32> to vector<32x32xf32>
    %33 = arith.subf %0, %32 : vector<32x32xf32>
    %cst_45 = arith.constant 9.99999997E-7 : f32
    %34 = vector.broadcast %cst_45 : f32 to vector<32x1xf32>
    %35 = arith.addf %31, %34 : vector<32x1xf32>
    %36 = math.rsqrt %35 : vector<32x1xf32>
    %37 = vector.broadcast %36 : vector<32x1xf32> to vector<32x32xf32>
    %38 = arith.mulf %33, %37 : vector<32x32xf32>
    %39 = vector.broadcast %3 : vector<1x32xf32> to vector<32x32xf32>
    %40 = arith.mulf %38, %39 : vector<32x32xf32>
    %41 = vector.broadcast %4 : vector<1x32xf32> to vector<32x32xf32>
    %42 = arith.addf %40, %41 : vector<32x32xf32>
    %cst_46 = arith.constant dense<0.000000e+00> : vector<32x96xf32>
    %43 = tpu.matmul %42, %7, %cst_46 {dimension_numbers = #tpu.dot_dimension_numbers<[1], [0], [0], [1], [0, 0, 1, 1], [], []>} : vector<32x32xf32>, vector<32x96xf32>, vector<32x96xf32> -> vector<32x96xf32>
    %44 = vector.broadcast %8 : vector<1x96xf32> to vector<32x96xf32>
    %45 = arith.addf %43, %44 : vector<32x96xf32>
    %46 = vector.extract_strided_slice %45 {offsets = [0, 0], sizes = [32, 32], strides = [1, 1]} : vector<32x96xf32> to vector<32x32xf32>
    %47 = vector.extract_strided_slice %45 {offsets = [0, 32], sizes = [32, 32], strides = [1, 1]} : vector<32x96xf32> to vector<32x32xf32>
    %48 = vector.extract_strided_slice %45 {offsets = [0, 64], sizes = [32, 32], strides = [1, 1]} : vector<32x96xf32> to vector<32x32xf32>
    %cst_47 = arith.constant 0.353553385 : f32
    %49 = vector.broadcast %cst_47 : f32 to vector<32x32xf32>
    %50 = arith.mulf %46, %49 : vector<32x32xf32>
    %51 = vector.shape_cast %50 : vector<32x32xf32> to vector<4x8x32xf32>
    %52 = vector.shape_cast %47 : vector<32x32xf32> to vector<4x8x32xf32>
    %53 = vector.shape_cast %48 : vector<32x32xf32> to vector<4x8x32xf32>
    %54 = vector.shape_cast %2 : vector<32x32xf32> to vector<1x32x32xf32>
    %55 = tpu.concatenate %52, %52, %52, %52 in 1 : vector<4x8x32xf32>, vector<4x8x32xf32>, vector<4x8x32xf32>, vector<4x8x32xf32> -> vector<4x32x32xf32>
    %56 = vector.broadcast %54 : vector<1x32x32xf32> to vector<4x32x32xf32>
    %57 = arith.mulf %55, %56 : vector<4x32x32xf32>
    %58 = tpu.concatenate %53, %53, %53, %53 in 1 : vector<4x8x32xf32>, vector<4x8x32xf32>, vector<4x8x32xf32>, vector<4x8x32xf32> -> vector<4x32x32xf32>
    %59 = vector.broadcast %54 : vector<1x32x32xf32> to vector<4x32x32xf32>
    %60 = arith.mulf %58, %59 : vector<4x32x32xf32>
    "tpu.trace_start"() <{level = 10 : i32, message = "bqd,bmd->bqm"}> : () -> ()
    %cst_48 = arith.constant dense<0.000000e+00> : vector<4x8x32xf32>
    %61 = tpu.matmul %51, %57, %cst_48 {dimension_numbers = #tpu.dot_dimension_numbers<[2], [2], [1], [1], [0, 0, 0, 1, 1, 1], [0], [0]>} : vector<4x8x32xf32>, vector<4x32x32xf32>, vector<4x8x32xf32> -> vector<4x8x32xf32>
    "tpu.trace_stop"() : () -> ()
    %62 = vector.broadcast %1 : vector<4x1x32xf32> to vector<4x8x32xf32>
    %63 = arith.addf %61, %62 : vector<4x8x32xf32>
    %cst_49 = arith.constant dense<0xFF800000> : vector<4x8xf32>
    %64 = vector.multi_reduction <maximumf>, %63, %cst_49 [2] : vector<4x8x32xf32> to vector<4x8xf32>
    %65 = vector.shape_cast %64 : vector<4x8xf32> to vector<4x8x1xf32>
    %66 = vector.broadcast %65 : vector<4x8x1xf32> to vector<4x8x32xf32>
    %67 = arith.subf %63, %66 : vector<4x8x32xf32>
    %68 = math.exp %67 : vector<4x8x32xf32>
    "tpu.trace_start"() <{level = 10 : i32, message = "bqm,bmd->bqd"}> : () -> ()
    %cst_50 = arith.constant dense<0.000000e+00> : vector<4x8x32xf32>
    %69 = tpu.matmul %68, %60, %cst_50 {dimension_numbers = #tpu.dot_dimension_numbers<[2], [1], [1], [2], [0, 0, 0, 1, 1, 2], [0], [0]>} : vector<4x8x32xf32>, vector<4x32x32xf32>, vector<4x8x32xf32> -> vector<4x8x32xf32>
    "tpu.trace_stop"() : () -> ()
    %70 = vector.shape_cast %69 : vector<4x8x32xf32> to vector<32x32xf32>
    %71 = vector.shape_cast %68 : vector<4x8x32xf32> to vector<32x32xf32>
    %cst_51 = arith.constant dense<0.000000e+00> : vector<32x32xf32>
    %72 = tpu.matmul %71, %2, %cst_51 {dimension_numbers = #tpu.dot_dimension_numbers<[1], [0], [0], [1], [0, 0, 1, 1], [], []>} : vector<32x32xf32>, vector<32x32xf32>, vector<32x32xf32> -> vector<32x32xf32>
    %73 = tpu.reciprocal %72 {approx = true} : vector<32x32xf32> -> vector<32x32xf32>
    %74 = arith.mulf %70, %73 : vector<32x32xf32>
    %cst_52 = arith.constant dense<0.000000e+00> : vector<32x32xf32>
    %75 = tpu.matmul %74, %9, %cst_52 {dimension_numbers = #tpu.dot_dimension_numbers<[1], [0], [0], [1], [0, 0, 1, 1], [], []>} : vector<32x32xf32>, vector<32x32xf32>, vector<32x32xf32> -> vector<32x32xf32>
    %76 = vector.broadcast %10 : vector<1x32xf32> to vector<32x32xf32>
    %77 = arith.addf %75, %76 : vector<32x32xf32>
    %78 = arith.addf %0, %77 : vector<32x32xf32>
    %cst_53 = arith.constant dense<0.000000e+00> : vector<32xf32>
    %79 = vector.multi_reduction <add>, %78, %cst_53 [1] : vector<32x32xf32> to vector<32xf32>
    %80 = vector.shape_cast %79 : vector<32xf32> to vector<32x1xf32>
    %cst_54 = arith.constant 3.200000e+01 : f32
    %81 = vector.broadcast %cst_54 : f32 to vector<32x1xf32>
    %82 = arith.divf %80, %81 : vector<32x1xf32>
    %83 = vector.broadcast %82 : vector<32x1xf32> to vector<32x32xf32>
    %84 = arith.subf %78, %83 : vector<32x32xf32>
    %85 = arith.mulf %84, %84 : vector<32x32xf32>
    %cst_55 = arith.constant dense<0.000000e+00> : vector<32xf32>
    %86 = vector.multi_reduction <add>, %85, %cst_55 [1] : vector<32x32xf32> to vector<32xf32>
    %87 = vector.shape_cast %86 : vector<32xf32> to vector<32x1xf32>
    %cst_56 = arith.constant 3.200000e+01 : f32
    %88 = vector.broadcast %cst_56 : f32 to vector<32x1xf32>
    %89 = arith.divf %87, %88 : vector<32x1xf32>
    %90 = vector.broadcast %82 : vector<32x1xf32> to vector<32x32xf32>
    %91 = arith.subf %78, %90 : vector<32x32xf32>
    %cst_57 = arith.constant 9.99999997E-7 : f32
    %92 = vector.broadcast %cst_57 : f32 to vector<32x1xf32>
    %93 = arith.addf %89, %92 : vector<32x1xf32>
    %94 = math.rsqrt %93 : vector<32x1xf32>
    %95 = vector.broadcast %94 : vector<32x1xf32> to vector<32x32xf32>
    %96 = arith.mulf %91, %95 : vector<32x32xf32>
    %97 = vector.broadcast %5 : vector<1x32xf32> to vector<32x32xf32>
    %98 = arith.mulf %96, %97 : vector<32x32xf32>
    %99 = vector.broadcast %6 : vector<1x32xf32> to vector<32x32xf32>
    %100 = arith.addf %98, %99 : vector<32x32xf32>
    %cst_58 = arith.constant dense<0.000000e+00> : vector<32x96xf32>
    %101 = tpu.matmul %100, %11, %cst_58 {dimension_numbers = #tpu.dot_dimension_numbers<[1], [0], [0], [1], [0, 0, 1, 1], [], []>} : vector<32x32xf32>, vector<32x96xf32>, vector<32x96xf32> -> vector<32x96xf32>
    %102 = vector.broadcast %12 : vector<1x96xf32> to vector<32x96xf32>
    %103 = arith.addf %101, %102 : vector<32x96xf32>
    %104 = vector.extract_strided_slice %103 {offsets = [0, 32], sizes = [16, 32], strides = [1, 1]} : vector<32x96xf32> to vector<16x32xf32>
    %105 = vector.extract_strided_slice %103 {offsets = [0, 64], sizes = [16, 32], strides = [1, 1]} : vector<32x96xf32> to vector<16x32xf32>
    %106 = vector.extract_strided_slice %1 {offsets = [0, 0, 0], sizes = [2, 1, 32], strides = [1, 1, 1]} : vector<4x1x32xf32> to vector<2x1x32xf32>
    %107 = vector.extract_strided_slice %1 {offsets = [2, 0, 0], sizes = [2, 1, 32], strides = [1, 1, 1]} : vector<4x1x32xf32> to vector<2x1x32xf32>
    %108 = vector.extract_strided_slice %103 {offsets = [16, 0], sizes = [16, 32], strides = [1, 1]} : vector<32x96xf32> to vector<16x32xf32>
    %cst_59 = arith.constant 0.353553385 : f32
    %109 = vector.broadcast %cst_59 : f32 to vector<16x32xf32>
    %110 = arith.mulf %108, %109 : vector<16x32xf32>
    %111 = vector.shape_cast %110 : vector<16x32xf32> to vector<2x8x32xf32>
    %112 = vector.shape_cast %104 : vector<16x32xf32> to vector<2x8x32xf32>
    %113 = vector.shape_cast %105 : vector<16x32xf32> to vector<2x8x32xf32>
    %114 = vector.shape_cast %2 : vector<32x32xf32> to vector<1x32x32xf32>
    %115 = tpu.concatenate %112, %112, %112, %112 in 1 : vector<2x8x32xf32>, vector<2x8x32xf32>, vector<2x8x32xf32>, vector<2x8x32xf32> -> vector<2x32x32xf32>
    %116 = vector.broadcast %114 : vector<1x32x32xf32> to vector<2x32x32xf32>
    %117 = arith.mulf %115, %116 : vector<2x32x32xf32>
    %118 = tpu.concatenate %113, %113, %113, %113 in 1 : vector<2x8x32xf32>, vector<2x8x32xf32>, vector<2x8x32xf32>, vector<2x8x32xf32> -> vector<2x32x32xf32>
    %119 = vector.broadcast %114 : vector<1x32x32xf32> to vector<2x32x32xf32>
    %120 = arith.mulf %118, %119 : vector<2x32x32xf32>
    "tpu.trace_start"() <{level = 10 : i32, message = "bqd,bmd->bqm"}> : () -> ()
    %cst_60 = arith.constant dense<0.000000e+00> : vector<2x8x32xf32>
    %121 = tpu.matmul %111, %117, %cst_60 {dimension_numbers = #tpu.dot_dimension_numbers<[2], [2], [1], [1], [0, 0, 0, 1, 1, 1], [0], [0]>} : vector<2x8x32xf32>, vector<2x32x32xf32>, vector<2x8x32xf32> -> vector<2x8x32xf32>
    "tpu.trace_stop"() : () -> ()
    %122 = vector.broadcast %106 : vector<2x1x32xf32> to vector<2x8x32xf32>
    %123 = arith.addf %121, %122 : vector<2x8x32xf32>
    %cst_61 = arith.constant dense<0xFF800000> : vector<2x8xf32>
    %124 = vector.multi_reduction <maximumf>, %123, %cst_61 [2] : vector<2x8x32xf32> to vector<2x8xf32>
    %125 = vector.shape_cast %124 : vector<2x8xf32> to vector<2x8x1xf32>
    %126 = vector.broadcast %125 : vector<2x8x1xf32> to vector<2x8x32xf32>
    %127 = arith.subf %123, %126 : vector<2x8x32xf32>
    %128 = math.exp %127 : vector<2x8x32xf32>
    "tpu.trace_start"() <{level = 10 : i32, message = "bqm,bmd->bqd"}> : () -> ()
    %cst_62 = arith.constant dense<0.000000e+00> : vector<2x8x32xf32>
    %129 = tpu.matmul %128, %120, %cst_62 {dimension_numbers = #tpu.dot_dimension_numbers<[2], [1], [1], [2], [0, 0, 0, 1, 1, 2], [0], [0]>} : vector<2x8x32xf32>, vector<2x32x32xf32>, vector<2x8x32xf32> -> vector<2x8x32xf32>
    "tpu.trace_stop"() : () -> ()
    %130 = vector.shape_cast %129 : vector<2x8x32xf32> to vector<16x32xf32>
    %131 = vector.shape_cast %128 : vector<2x8x32xf32> to vector<16x32xf32>
    %cst_63 = arith.constant dense<0.000000e+00> : vector<16x32xf32>
    %132 = tpu.matmul %131, %2, %cst_63 {dimension_numbers = #tpu.dot_dimension_numbers<[1], [0], [0], [1], [0, 0, 1, 1], [], []>} : vector<16x32xf32>, vector<32x32xf32>, vector<16x32xf32> -> vector<16x32xf32>
    %133 = tpu.reciprocal %132 {approx = true} : vector<16x32xf32> -> vector<16x32xf32>
    %134 = arith.mulf %130, %133 : vector<16x32xf32>
    %cst_64 = arith.constant dense<0.000000e+00> : vector<16x32xf32>
    %135 = tpu.matmul %134, %15, %cst_64 {dimension_numbers = #tpu.dot_dimension_numbers<[1], [0], [0], [1], [0, 0, 1, 1], [], []>} : vector<16x32xf32>, vector<32x32xf32>, vector<16x32xf32> -> vector<16x32xf32>
    %136 = vector.broadcast %16 : vector<1x32xf32> to vector<16x32xf32>
    %137 = arith.addf %135, %136 : vector<16x32xf32>
    %138 = vector.extract_strided_slice %78 {offsets = [16, 0], sizes = [16, 32], strides = [1, 1]} : vector<32x32xf32> to vector<16x32xf32>
    %139 = arith.addf %138, %137 : vector<16x32xf32>
    %cst_65 = arith.constant dense<0.000000e+00> : vector<16xf32>
    %140 = vector.multi_reduction <add>, %139, %cst_65 [1] : vector<16x32xf32> to vector<16xf32>
    %141 = vector.shape_cast %140 : vector<16xf32> to vector<16x1xf32>
    %cst_66 = arith.constant 3.200000e+01 : f32
    %142 = vector.broadcast %cst_66 : f32 to vector<16x1xf32>
    %143 = arith.divf %141, %142 : vector<16x1xf32>
    %144 = vector.broadcast %143 : vector<16x1xf32> to vector<16x32xf32>
    %145 = arith.subf %139, %144 : vector<16x32xf32>
    %146 = arith.mulf %145, %145 : vector<16x32xf32>
    %cst_67 = arith.constant dense<0.000000e+00> : vector<16xf32>
    %147 = vector.multi_reduction <add>, %146, %cst_67 [1] : vector<16x32xf32> to vector<16xf32>
    %148 = vector.shape_cast %147 : vector<16xf32> to vector<16x1xf32>
    %cst_68 = arith.constant 3.200000e+01 : f32
    %149 = vector.broadcast %cst_68 : f32 to vector<16x1xf32>
    %150 = arith.divf %148, %149 : vector<16x1xf32>
    %151 = vector.broadcast %143 : vector<16x1xf32> to vector<16x32xf32>
    %152 = arith.subf %139, %151 : vector<16x32xf32>
    %cst_69 = arith.constant 9.99999997E-7 : f32
    %153 = vector.broadcast %cst_69 : f32 to vector<16x1xf32>
    %154 = arith.addf %150, %153 : vector<16x1xf32>
    %155 = math.rsqrt %154 : vector<16x1xf32>
    %156 = vector.broadcast %155 : vector<16x1xf32> to vector<16x32xf32>
    %157 = arith.mulf %152, %156 : vector<16x32xf32>
    %158 = vector.broadcast %5 : vector<1x32xf32> to vector<16x32xf32>
    %159 = arith.mulf %157, %158 : vector<16x32xf32>
    %160 = vector.broadcast %6 : vector<1x32xf32> to vector<16x32xf32>
    %161 = arith.addf %159, %160 : vector<16x32xf32>
    %cst_70 = arith.constant dense<0.000000e+00> : vector<16x64xf32>
    %162 = tpu.matmul %161, %13, %cst_70 {dimension_numbers = #tpu.dot_dimension_numbers<[1], [0], [0], [1], [0, 0, 1, 1], [], []>} : vector<16x32xf32>, vector<32x64xf32>, vector<16x64xf32> -> vector<16x64xf32>
    %163 = vector.broadcast %14 : vector<1x64xf32> to vector<16x64xf32>
    %164 = arith.addf %162, %163 : vector<16x64xf32>
    %165 = vector.extract_strided_slice %103 {offsets = [0, 0], sizes = [16, 32], strides = [1, 1]} : vector<32x96xf32> to vector<16x32xf32>
    %166 = vector.extract_strided_slice %164 {offsets = [0, 0], sizes = [16, 32], strides = [1, 1]} : vector<16x64xf32> to vector<16x32xf32>
    %167 = vector.extract_strided_slice %164 {offsets = [0, 32], sizes = [16, 32], strides = [1, 1]} : vector<16x64xf32> to vector<16x32xf32>
    %cst_71 = arith.constant 0.353553385 : f32
    %168 = vector.broadcast %cst_71 : f32 to vector<16x32xf32>
    %169 = arith.mulf %165, %168 : vector<16x32xf32>
    %170 = vector.shape_cast %169 : vector<16x32xf32> to vector<2x8x32xf32>
    %171 = vector.shape_cast %166 : vector<16x32xf32> to vector<2x8x32xf32>
    %172 = vector.shape_cast %167 : vector<16x32xf32> to vector<2x8x32xf32>
    %173 = vector.shape_cast %2 : vector<32x32xf32> to vector<1x32x32xf32>
    %174 = tpu.concatenate %171, %171, %171, %171 in 1 : vector<2x8x32xf32>, vector<2x8x32xf32>, vector<2x8x32xf32>, vector<2x8x32xf32> -> vector<2x32x32xf32>
    %175 = vector.broadcast %173 : vector<1x32x32xf32> to vector<2x32x32xf32>
    %176 = arith.mulf %174, %175 : vector<2x32x32xf32>
    %177 = tpu.concatenate %172, %172, %172, %172 in 1 : vector<2x8x32xf32>, vector<2x8x32xf32>, vector<2x8x32xf32>, vector<2x8x32xf32> -> vector<2x32x32xf32>
    %178 = vector.broadcast %173 : vector<1x32x32xf32> to vector<2x32x32xf32>
    %179 = arith.mulf %177, %178 : vector<2x32x32xf32>
    "tpu.trace_start"() <{level = 10 : i32, message = "bqd,bmd->bqm"}> : () -> ()
    %cst_72 = arith.constant dense<0.000000e+00> : vector<2x8x32xf32>
    %180 = tpu.matmul %170, %176, %cst_72 {dimension_numbers = #tpu.dot_dimension_numbers<[2], [2], [1], [1], [0, 0, 0, 1, 1, 1], [0], [0]>} : vector<2x8x32xf32>, vector<2x32x32xf32>, vector<2x8x32xf32> -> vector<2x8x32xf32>
    "tpu.trace_stop"() : () -> ()
    %181 = vector.broadcast %107 : vector<2x1x32xf32> to vector<2x8x32xf32>
    %182 = arith.addf %180, %181 : vector<2x8x32xf32>
    %cst_73 = arith.constant dense<0xFF800000> : vector<2x8xf32>
    %183 = vector.multi_reduction <maximumf>, %182, %cst_73 [2] : vector<2x8x32xf32> to vector<2x8xf32>
    %184 = vector.shape_cast %183 : vector<2x8xf32> to vector<2x8x1xf32>
    %185 = vector.broadcast %184 : vector<2x8x1xf32> to vector<2x8x32xf32>
    %186 = arith.subf %182, %185 : vector<2x8x32xf32>
    %187 = math.exp %186 : vector<2x8x32xf32>
    "tpu.trace_start"() <{level = 10 : i32, message = "bqm,bmd->bqd"}> : () -> ()
    %cst_74 = arith.constant dense<0.000000e+00> : vector<2x8x32xf32>
    %188 = tpu.matmul %187, %179, %cst_74 {dimension_numbers = #tpu.dot_dimension_numbers<[2], [1], [1], [2], [0, 0, 0, 1, 1, 2], [0], [0]>} : vector<2x8x32xf32>, vector<2x32x32xf32>, vector<2x8x32xf32> -> vector<2x8x32xf32>
    "tpu.trace_stop"() : () -> ()
    %189 = vector.shape_cast %188 : vector<2x8x32xf32> to vector<16x32xf32>
    %190 = vector.shape_cast %187 : vector<2x8x32xf32> to vector<16x32xf32>
    %cst_75 = arith.constant dense<0.000000e+00> : vector<16x32xf32>
    %191 = tpu.matmul %190, %2, %cst_75 {dimension_numbers = #tpu.dot_dimension_numbers<[1], [0], [0], [1], [0, 0, 1, 1], [], []>} : vector<16x32xf32>, vector<32x32xf32>, vector<16x32xf32> -> vector<16x32xf32>
    %192 = tpu.reciprocal %191 {approx = true} : vector<16x32xf32> -> vector<16x32xf32>
    %193 = arith.mulf %189, %192 : vector<16x32xf32>
    %cst_76 = arith.constant dense<0.000000e+00> : vector<16x32xf32>
    %194 = tpu.matmul %193, %15, %cst_76 {dimension_numbers = #tpu.dot_dimension_numbers<[1], [0], [0], [1], [0, 0, 1, 1], [], []>} : vector<16x32xf32>, vector<32x32xf32>, vector<16x32xf32> -> vector<16x32xf32>
    %195 = vector.broadcast %16 : vector<1x32xf32> to vector<16x32xf32>
    %196 = arith.addf %194, %195 : vector<16x32xf32>
    %197 = vector.extract_strided_slice %78 {offsets = [0, 0], sizes = [16, 32], strides = [1, 1]} : vector<32x32xf32> to vector<16x32xf32>
    %198 = arith.addf %197, %196 : vector<16x32xf32>
    %c0_77 = arith.constant 0 : index
    %c0_78 = arith.constant 0 : index
    %199 = vector.load %arg21[%c0_77, %c0_78] : memref<32x32xf32, #tpu.memory_space<vmem>>, vector<16x32xf32>
    tpu.vector_store %arg21[%c0_77, %c0_78], %198 {strides = array<i32>} : memref<32x32xf32, #tpu.memory_space<vmem>>, vector<16x32xf32>,
    %c16 = arith.constant 16 : index
    %c0_79 = arith.constant 0 : index
    %200 = vector.load %arg21[%c16, %c0_79] : memref<32x32xf32, #tpu.memory_space<vmem>>, vector<16x32xf32>
    tpu.vector_store %arg21[%c16, %c0_79], %139 {strides = array<i32>} : memref<32x32xf32, #tpu.memory_space<vmem>>, vector<16x32xf32>,
    %c0_80 = arith.constant 0 : index
    %c0_81 = arith.constant 0 : index
    %201 = vector.load %arg21[%c0_80, %c0_81] : memref<32x32xf32, #tpu.memory_space<vmem>>, vector<32x32xf32>
    %cst_82 = arith.constant dense<0.000000e+00> : vector<32xf32>
    %202 = vector.multi_reduction <add>, %201, %cst_82 [1] : vector<32x32xf32> to vector<32xf32>
    %203 = vector.shape_cast %202 : vector<32xf32> to vector<32x1xf32>
    %cst_83 = arith.constant 3.200000e+01 : f32
    %204 = vector.broadcast %cst_83 : f32 to vector<32x1xf32>
    %205 = arith.divf %203, %204 : vector<32x1xf32>
    %206 = vector.broadcast %205 : vector<32x1xf32> to vector<32x32xf32>
    %207 = arith.subf %201, %206 : vector<32x32xf32>
    %208 = arith.mulf %207, %207 : vector<32x32xf32>
    %cst_84 = arith.constant dense<0.000000e+00> : vector<32xf32>
    %209 = vector.multi_reduction <add>, %208, %cst_84 [1] : vector<32x32xf32> to vector<32xf32>
    %210 = vector.shape_cast %209 : vector<32xf32> to vector<32x1xf32>
    %cst_85 = arith.constant 3.200000e+01 : f32
    %211 = vector.broadcast %cst_85 : f32 to vector<32x1xf32>
    %212 = arith.divf %210, %211 : vector<32x1xf32>
    %213 = vector.broadcast %205 : vector<32x1xf32> to vector<32x32xf32>
    %214 = arith.subf %201, %213 : vector<32x32xf32>
    %cst_86 = arith.constant 9.99999997E-7 : f32
    %215 = vector.broadcast %cst_86 : f32 to vector<32x1xf32>
    %216 = arith.addf %212, %215 : vector<32x1xf32>
    %217 = math.rsqrt %216 : vector<32x1xf32>
    %218 = vector.broadcast %217 : vector<32x1xf32> to vector<32x32xf32>
    %219 = arith.mulf %214, %218 : vector<32x32xf32>
    %220 = vector.broadcast %3 : vector<1x32xf32> to vector<32x32xf32>
    %221 = arith.mulf %219, %220 : vector<32x32xf32>
    %222 = vector.broadcast %4 : vector<1x32xf32> to vector<32x32xf32>
    %223 = arith.addf %221, %222 : vector<32x32xf32>
    %cst_87 = arith.constant dense<0.000000e+00> : vector<32x64xf32>
    %224 = tpu.matmul %223, %17, %cst_87 {dimension_numbers = #tpu.dot_dimension_numbers<[1], [0], [0], [1], [0, 0, 1, 1], [], []>} : vector<32x32xf32>, vector<32x64xf32>, vector<32x64xf32> -> vector<32x64xf32>
    %225 = vector.broadcast %18 : vector<1x64xf32> to vector<32x64xf32>
    %226 = arith.addf %224, %225 : vector<32x64xf32>
    %cst_88 = arith.constant 0.000000e+00 : f32
    %227 = vector.broadcast %cst_88 : f32 to vector<32x64xf32>
    %228 = arith.maximumf %226, %227 : vector<32x64xf32>
    %cst_89 = arith.constant dense<0.000000e+00> : vector<32x32xf32>
    %229 = tpu.matmul %228, %19, %cst_89 {dimension_numbers = #tpu.dot_dimension_numbers<[1], [0], [0], [1], [0, 0, 1, 1], [], []>} : vector<32x64xf32>, vector<64x32xf32>, vector<32x32xf32> -> vector<32x32xf32>
    %230 = vector.broadcast %20 : vector<1x32xf32> to vector<32x32xf32>
    %231 = arith.addf %229, %230 : vector<32x32xf32>
    %232 = arith.addf %201, %231 : vector<32x32xf32>
    %c0_90 = arith.constant 0 : index
    %c0_91 = arith.constant 0 : index
    %233 = vector.load %arg21[%c0_90, %c0_91] : memref<32x32xf32, #tpu.memory_space<vmem>>, vector<32x32xf32>
    tpu.vector_store %arg21[%c0_90, %c0_91], %232 {strides = array<i32>} : memref<32x32xf32, #tpu.memory_space<vmem>>, vector<32x32xf32>,
    return
  }
}

</mosaic_0001>

<llo_original>
// kernel: tpu_custom_call.1
$region0: #{tpu_custom_call.1}
  #allocation0 [shape = 'u32[]', space=smem, size = 0x4, offset = 0x4, fixed_abs, tag = 'smem constant byte address 0x4 - core index']
  #allocation1 [shape = 'u32[144,128]{1,0:T(1,128)}', space=vmem, size = 0x12000, scoped, tag = 'internal scratch']
  %s0 = inlined_call_operand.vmem [shape: f32[32,32], index: 0, kind: input, shape index: {}]
  %s1 = inlined_call_operand.hbm [shape: f32[4,1,32], index: 1, kind: input, shape index: {}]
  %s2 = inlined_call_operand.vmem [shape: f32[32,32], index: 2, kind: input, shape index: {}]
  %s3 = inlined_call_operand.hbm [shape: f32[1,32], index: 3, kind: input, shape index: {}]
  %s4 = inlined_call_operand.hbm [shape: f32[1,32], index: 4, kind: input, shape index: {}]
  %s5 = inlined_call_operand.vmem [shape: f32[32,96], index: 5, kind: input, shape index: {}]
  %s6 = inlined_call_operand.hbm [shape: f32[1,96], index: 6, kind: input, shape index: {}]
  %s7 = inlined_call_operand.hbm [shape: f32[32,32], index: 7, kind: input, shape index: {}]
  %s8 = inlined_call_operand.hbm [shape: f32[1,32], index: 8, kind: input, shape index: {}]
  %s9 = inlined_call_operand.hbm [shape: f32[1,32], index: 9, kind: input, shape index: {}]
  %s10 = inlined_call_operand.hbm [shape: f32[1,32], index: 10, kind: input, shape index: {}]
  %s11 = inlined_call_operand.vmem [shape: f32[32,96], index: 11, kind: input, shape index: {}]
  %s12 = inlined_call_operand.hbm [shape: f32[1,96], index: 12, kind: input, shape index: {}]
  %s13 = inlined_call_operand.hbm [shape: f32[32,64], index: 13, kind: input, shape index: {}]
  %s14 = inlined_call_operand.hbm [shape: f32[1,64], index: 14, kind: input, shape index: {}]
  %s15 = inlined_call_operand.hbm [shape: f32[32,32], index: 15, kind: input, shape index: {}]
  %s16 = inlined_call_operand.hbm [shape: f32[1,32], index: 16, kind: input, shape index: {}]
  %s17 = inlined_call_operand.hbm [shape: f32[32,64], index: 17, kind: input, shape index: {}]
  %s18 = inlined_call_operand.vmem [shape: f32[1,64], index: 18, kind: input, shape index: {}]
  %s19 = inlined_call_operand.vmem [shape: f32[64,32], index: 19, kind: input, shape index: {}]
  %s20 = inlined_call_operand.vmem [shape: f32[1,32], index: 20, kind: input, shape index: {}]
  %s21 = inlined_call_operand.hbm [shape: f32[32,32], index: 21, kind: output, shape index: {}]
  %s22 = sld [smem:[#allocation0]]
  $region150: #{tpu_custom_call.1} parent=0
    _
  %s24 = ssub.s32 1, %s22
  %s25 = scalar_select 0, %s24, %s22
  $region1: #{tpu_custom_call.1} parent=0
    #allocation2 [shape = 'u8[2048]{0}', space=vmem, size = 0x800, scoped, tag = 'input window, operand 1, single buffered']
    #allocation3 [shape = 's32[1]{0}', space=sflag, size = 0x4, scoped, tag = 'scoped memory for tpu_custom_call.1']
    #allocation4 [shape = 's32[1]{0}', space=sflag, size = 0x4, scoped, tag = 'scoped memory for tpu_custom_call.1']
    #allocation5 [shape = 'u8[512]{0}', space=vmem, size = 0x400, scoped, tag = 'input window, operand 3, single buffered']
    #allocation6 [shape = 's32[1]{0}', space=sflag, size = 0x4, scoped, tag = 'scoped memory for tpu_custom_call.1']
    #allocation7 [shape = 'u8[512]{0}', space=vmem, size = 0x400, scoped, tag = 'input window, operand 4, single buffered']
    #allocation8 [shape = 'u8[512]{0}', space=vmem, size = 0x400, scoped, tag = 'input window, operand 6, single buffered']
    #allocation9 [shape = 's32[1]{0}', space=sflag, size = 0x4, scoped, tag = 'scoped memory for tpu_custom_call.1']
    #allocation10 [shape = 'u8[16384]{0}', space=vmem, size = 0x4000, scoped, tag = 'input window, operand 7, single buffered']
    #allocation11 [shape = 'u8[512]{0}', space=vmem, size = 0x400, scoped, tag = 'input window, operand 8, single buffered']
    #allocation12 [shape = 's32[1]{0}', space=sflag, size = 0x4, scoped, tag = 'scoped memory for tpu_custom_call.1']
    #allocation13 [shape = 'u8[512]{0}', space=vmem, size = 0x400, scoped, tag = 'input window, operand 9, single buffered']
    #allocation14 [shape = 'u8[512]{0}', space=vmem, size = 0x400, scoped, tag = 'input window, operand 10, single buffered']
    #allocation15 [shape = 's32[1]{0}', space=sflag, size = 0x4, scoped, tag = 'scoped memory for tpu_custom_call.1']
    #allocation16 [shape = 'u8[512]{0}', space=vmem, size = 0x400, scoped, tag = 'input window, operand 12, single buffered']
    #allocation17 [shape = 'u8[16384]{0}', space=vmem, size = 0x4000, scoped, tag = 'input window, operand 13, single buffered']
    #allocation18 [shape = 's32[1]{0}', space=sflag, size = 0x4, scoped, tag = 'scoped memory for tpu_custom_call.1']
    #allocation19 [shape = 'u8[512]{0}', space=vmem, size = 0x400, scoped, tag = 'input window, operand 14, single buffered']
    #allocation20 [shape = 'u8[16384]{0}', space=vmem, size = 0x4000, scoped, tag = 'input window, operand 15, single buffered']
    #allocation21 [shape = 's32[1]{0}', space=sflag, size = 0x4, scoped, tag = 'scoped memory for tpu_custom_call.1']
    #allocation22 [shape = 'u8[512]{0}', space=vmem, size = 0x400, scoped, tag = 'input window, operand 16, single buffered']
    #allocation23 [shape = 'u8[16384]{0}', space=vmem, size = 0x4000, scoped, tag = 'input window, operand 17, single buffered']
    #allocation24 [shape = 's32[1]{0}', space=sflag, size = 0x4, scoped, tag = 'scoped memory for tpu_custom_call.1']
    #allocation25 [shape = 'u8[16384]{0}', space=vmem, size = 0x4000, scoped, tag = 'output window, operand 0, single buffered']
    %26 = vsyncpa [#allocation3], 0
    %27 = vsyncpa [#allocation6], 0
    %28 = vsyncpa [#allocation9], 0
    %29 = vsyncpa [#allocation12], 0
    %30 = vsyncpa [#allocation15], 0
    %31 = vsyncpa [#allocation18], 0
    %32 = vsyncpa [#allocation21], 0
    %33 = vsyncpa [#allocation24], 0
    %34 = vsyncpa [#allocation4], 0
    // Predicated region
    $region2: #{tpu_custom_call.1} parent=1 // pred_check
      _
    $region3: #{tpu_custom_call.1} parent=1 // pred_check_branch
      %36 = sbr.rel (0) target = $region5
    $region4: #{tpu_custom_call.1} parent=1 // pred_region
      _
    $region5: #{tpu_custom_call.1} parent=1 // pred_fallthru
      _
    // Predicated region
    $region6: #{tpu_custom_call.1} parent=1 // pred_check
      _
    $region7: #{tpu_custom_call.1} parent=1 // pred_check_branch
      %38 = sbr.rel (0) target = $region9
    $region8: #{tpu_custom_call.1} parent=1 // pred_region
      %s40 = ssub.s32 64, 64
      %41 = vsyncadd [#allocation3], %s40
      %s42 = sshll.u32 [#allocation2], 4
      %s43 = int_to_ptr.vmem [resolvable:$true] %s42
      %48 = dma.hbm_to_vmem [thread:$0]  %s1, 64, %s43, [#allocation3], 16, 16, 1
    $region9: #{tpu_custom_call.1} parent=1 // pred_fallthru
      _
    // Predicated region
    $region10: #{tpu_custom_call.1} parent=1 // pred_check
      _
    $region11: #{tpu_custom_call.1} parent=1 // pred_check_branch
      %50 = sbr.rel (0) target = $region13
    $region12: #{tpu_custom_call.1} parent=1 // pred_region
      _
    $region13: #{tpu_custom_call.1} parent=1 // pred_fallthru
      _
    // Predicated region
    $region14: #{tpu_custom_call.1} parent=1 // pred_check
      _
    $region15: #{tpu_custom_call.1} parent=1 // pred_check_branch
      %52 = sbr.rel (0) target = $region17
    $region16: #{tpu_custom_call.1} parent=1 // pred_region
      %s54 = ssub.s32 16, 16
      %55 = vsyncadd [#allocation6], %s54
      %s57 = sshll.u32 [#allocation5], 4
      %s58 = int_to_ptr.vmem [resolvable:$true] %s57
      %60 = dma.hbm_to_vmem [thread:$0]  %s3, 16, %s58, [#allocation6]
    $region17: #{tpu_custom_call.1} parent=1 // pred_fallthru
      _
    // Predicated region
    $region18: #{tpu_custom_call.1} parent=1 // pred_check
      _
    $region19: #{tpu_custom_call.1} parent=1 // pred_check_branch
      %62 = sbr.rel (0) target = $region21
    $region20: #{tpu_custom_call.1} parent=1 // pred_region
      %s64 = ssub.s32 16, 16
      %65 = vsyncadd [#allocation6], %s64
      %s67 = sshll.u32 [#allocation7], 4
      %s68 = int_to_ptr.vmem [resolvable:$true] %s67
      %70 = dma.hbm_to_vmem [thread:$0]  %s4, 16, %s68, [#allocation6]
    $region21: #{tpu_custom_call.1} parent=1 // pred_fallthru
      _
    // Predicated region
    $region22: #{tpu_custom_call.1} parent=1 // pred_check
      _
    $region23: #{tpu_custom_call.1} parent=1 // pred_check_branch
      %72 = sbr.rel (0) target = $region25
    $region24: #{tpu_custom_call.1} parent=1 // pred_region
      _
    $region25: #{tpu_custom_call.1} parent=1 // pred_fallthru
      _
    // Predicated region
    $region26: #{tpu_custom_call.1} parent=1 // pred_check
      _
    $region27: #{tpu_custom_call.1} parent=1 // pred_check_branch
      %74 = sbr.rel (0) target = $region29
    $region28: #{tpu_custom_call.1} parent=1 // pred_region
      %s76 = ssub.s32 16, 16
      %77 = vsyncadd [#allocation9], %s76
      %s79 = sshll.u32 [#allocation8], 4
      %s80 = int_to_ptr.vmem [resolvable:$true] %s79
      %82 = dma.hbm_to_vmem [thread:$0]  %s6, 16, %s80, [#allocation9]
    $region29: #{tpu_custom_call.1} parent=1 // pred_fallthru
      _
    // Predicated region
    $region30: #{tpu_custom_call.1} parent=1 // pred_check
      _
    $region31: #{tpu_custom_call.1} parent=1 // pred_check_branch
      %84 = sbr.rel (0) target = $region33
    $region32: #{tpu_custom_call.1} parent=1 // pred_region
      %s86 = ssub.s32 512, 512
      %87 = vsyncadd [#allocation9], %s86
      %s88 = sshll.u32 [#allocation10], 4
      %s89 = int_to_ptr.vmem [resolvable:$true] %s88
      %94 = dma.hbm_to_vmem [thread:$0]  %s7, 512, %s89, [#allocation9], 128, 128, 8
    $region33: #{tpu_custom_call.1} parent=1 // pred_fallthru
      _
    // Predicated region
    $region34: #{tpu_custom_call.1} parent=1 // pred_check
      _
    $region35: #{tpu_custom_call.1} parent=1 // pred_check_branch
      %96 = sbr.rel (0) target = $region37
    $region36: #{tpu_custom_call.1} parent=1 // pred_region
      %s98 = ssub.s32 16, 16
      %99 = vsyncadd [#allocation12], %s98
      %s101 = sshll.u32 [#allocation11], 4
      %s102 = int_to_ptr.vmem [resolvable:$true] %s101
      %104 = dma.hbm_to_vmem [thread:$0]  %s8, 16, %s102, [#allocation12]
    $region37: #{tpu_custom_call.1} parent=1 // pred_fallthru
      _
    // Predicated region
    $region38: #{tpu_custom_call.1} parent=1 // pred_check
      _
    $region39: #{tpu_custom_call.1} parent=1 // pred_check_branch
      %106 = sbr.rel (0) target = $region41
    $region40: #{tpu_custom_call.1} parent=1 // pred_region
      %s108 = ssub.s32 16, 16
      %109 = vsyncadd [#allocation12], %s108
      %s111 = sshll.u32 [#allocation13], 4
      %s112 = int_to_ptr.vmem [resolvable:$true] %s111
      %114 = dma.hbm_to_vmem [thread:$0]  %s9, 16, %s112, [#allocation12]
    $region41: #{tpu_custom_call.1} parent=1 // pred_fallthru
      _
    // Predicated region
    $region42: #{tpu_custom_call.1} parent=1 // pred_check
      _
    $region43: #{tpu_custom_call.1} parent=1 // pred_check_branch
      %116 = sbr.rel (0) target = $region45
    $region44: #{tpu_custom_call.1} parent=1 // pred_region
      %s118 = ssub.s32 16, 16
      %119 = vsyncadd [#allocation15], %s118
      %s121 = sshll.u32 [#allocation14], 4
      %s122 = int_to_ptr.vmem [resolvable:$true] %s121
      %124 = dma.hbm_to_vmem [thread:$0]  %s10, 16, %s122, [#allocation15]
    $region45: #{tpu_custom_call.1} parent=1 // pred_fallthru
      _
    // Predicated region
    $region46: #{tpu_custom_call.1} parent=1 // pred_check
      _
    $region47: #{tpu_custom_call.1} parent=1 // pred_check_branch
      %126 = sbr.rel (0) target = $region49
    $region48: #{tpu_custom_call.1} parent=1 // pred_region
      _
    $region49: #{tpu_custom_call.1} parent=1 // pred_fallthru
      _
    // Predicated region
    $region50: #{tpu_custom_call.1} parent=1 // pred_check
      _
    $region51: #{tpu_custom_call.1} parent=1 // pred_check_branch
      %128 = sbr.rel (0) target = $region53
    $region52: #{tpu_custom_call.1} parent=1 // pred_region
      %s130 = ssub.s32 16, 16
      %131 = vsyncadd [#allocation15], %s130
      %s133 = sshll.u32 [#allocation16], 4
      %s134 = int_to_ptr.vmem [resolvable:$true] %s133
      %136 = dma.hbm_to_vmem [thread:$0]  %s12, 16, %s134, [#allocation15]
    $region53: #{tpu_custom_call.1} parent=1 // pred_fallthru
      _
    // Predicated region
    $region54: #{tpu_custom_call.1} parent=1 // pred_check
      _
    $region55: #{tpu_custom_call.1} parent=1 // pred_check_branch
      %138 = sbr.rel (0) target = $region57
    $region56: #{tpu_custom_call.1} parent=1 // pred_region
      %s140 = ssub.s32 512, 512
      %141 = vsyncadd [#allocation18], %s140
      %s142 = sshll.u32 [#allocation17], 4
      %s143 = int_to_ptr.vmem [resolvable:$true] %s142
      %148 = dma.hbm_to_vmem [thread:$0]  %s13, 512, %s143, [#allocation18], 128, 128, 8
    $region57: #{tpu_custom_call.1} parent=1 // pred_fallthru
      _
    // Predicated region
    $region58: #{tpu_custom_call.1} parent=1 // pred_check
      _
    $region59: #{tpu_custom_call.1} parent=1 // pred_check_branch
      %150 = sbr.rel (0) target = $region61
    $region60: #{tpu_custom_call.1} parent=1 // pred_region
      %s152 = ssub.s32 16, 16
      %153 = vsyncadd [#allocation18], %s152
      %s155 = sshll.u32 [#allocation19], 4
      %s156 = int_to_ptr.vmem [resolvable:$true] %s155
      %158 = dma.hbm_to_vmem [thread:$0]  %s14, 16, %s156, [#allocation18]
    $region61: #{tpu_custom_call.1} parent=1 // pred_fallthru
      _
    // Predicated region
    $region62: #{tpu_custom_call.1} parent=1 // pred_check
      _
    $region63: #{tpu_custom_call.1} parent=1 // pred_check_branch
      %160 = sbr.rel (0) target = $region65
    $region64: #{tpu_custom_call.1} parent=1 // pred_region
      %s162 = ssub.s32 512, 512
      %163 = vsyncadd [#allocation21], %s162
      %s164 = sshll.u32 [#allocation20], 4
      %s165 = int_to_ptr.vmem [resolvable:$true] %s164
      %170 = dma.hbm_to_vmem [thread:$0]  %s15, 512, %s165, [#allocation21], 128, 128, 8
    $region65: #{tpu_custom_call.1} parent=1 // pred_fallthru
      _
    // Predicated region
    $region66: #{tpu_custom_call.1} parent=1 // pred_check
      _
    $region67: #{tpu_custom_call.1} parent=1 // pred_check_branch
      %172 = sbr.rel (0) target = $region69
    $region68: #{tpu_custom_call.1} parent=1 // pred_region
      %s174 = ssub.s32 16, 16
      %175 = vsyncadd [#allocation21], %s174
      %s177 = sshll.u32 [#allocation22], 4
      %s178 = int_to_ptr.vmem [resolvable:$true] %s177
      %180 = dma.hbm_to_vmem [thread:$0]  %s16, 16, %s178, [#allocation21]
    $region69: #{tpu_custom_call.1} parent=1 // pred_fallthru
      _
    // Predicated region
    $region70: #{tpu_custom_call.1} parent=1 // pred_check
      _
    $region71: #{tpu_custom_call.1} parent=1 // pred_check_branch
      %182 = sbr.rel (0) target = $region73
    $region72: #{tpu_custom_call.1} parent=1 // pred_region
      %s184 = ssub.s32 512, 512
      %185 = vsyncadd [#allocation24], %s184
      %s186 = sshll.u32 [#allocation23], 4
      %s187 = int_to_ptr.vmem [resolvable:$true] %s186
      %192 = dma.hbm_to_vmem [thread:$0]  %s17, 512, %s187, [#allocation24], 128, 128, 8
    $region73: #{tpu_custom_call.1} parent=1 // pred_fallthru
      _
    // Predicated region
    $region74: #{tpu_custom_call.1} parent=1 // pred_check
      _
    $region75: #{tpu_custom_call.1} parent=1 // pred_check_branch
      %194 = sbr.rel (0) target = $region77
    $region76: #{tpu_custom_call.1} parent=1 // pred_region
      _
    $region77: #{tpu_custom_call.1} parent=1 // pred_fallthru
      _
    // Predicated region
    $region78: #{tpu_custom_call.1} parent=1 // pred_check
      _
    $region79: #{tpu_custom_call.1} parent=1 // pred_check_branch
      %196 = sbr.rel (0) target = $region81
    $region80: #{tpu_custom_call.1} parent=1 // pred_region
      _
    $region81: #{tpu_custom_call.1} parent=1 // pred_fallthru
      _
    // Predicated region
    $region82: #{tpu_custom_call.1} parent=1 // pred_check
      _
    $region83: #{tpu_custom_call.1} parent=1 // pred_check_branch
      %198 = sbr.rel (0) target = $region85
    $region84: #{tpu_custom_call.1} parent=1 // pred_region
      _
    $region85: #{tpu_custom_call.1} parent=1 // pred_fallthru
      _
    // Predicated region
    $region86: #{tpu_custom_call.1} parent=1 // pred_check
      _
    $region87: #{tpu_custom_call.1} parent=1 // pred_check_branch
      %200 = sbr.rel (0) target = $region89
    $region88: #{tpu_custom_call.1} parent=1 // pred_region
      %201 = dma.done [#allocation3], 64
    $region89: #{tpu_custom_call.1} parent=1 // pred_fallthru
      _
    // Predicated region
    $region90: #{tpu_custom_call.1} parent=1 // pred_check
      _
    $region91: #{tpu_custom_call.1} parent=1 // pred_check_branch
      %203 = sbr.rel (0) target = $region93
    $region92: #{tpu_custom_call.1} parent=1 // pred_region
      %204 = dma.done [#allocation6], 16
    $region93: #{tpu_custom_call.1} parent=1 // pred_fallthru
      _
    // Predicated region
    $region94: #{tpu_custom_call.1} parent=1 // pred_check
      _
    $region95: #{tpu_custom_call.1} parent=1 // pred_check_branch
      %206 = sbr.rel (0) target = $region97
    $region96: #{tpu_custom_call.1} parent=1 // pred_region
      %207 = dma.done [#allocation6], 16
    $region97: #{tpu_custom_call.1} parent=1 // pred_fallthru
      _
    // Predicated region
    $region98: #{tpu_custom_call.1} parent=1 // pred_check
      _
    $region99: #{tpu_custom_call.1} parent=1 // pred_check_branch
      %209 = sbr.rel (0) target = $region101
    $region100: #{tpu_custom_call.1} parent=1 // pred_region
      %210 = dma.done [#allocation9], 16
    $region101: #{tpu_custom_call.1} parent=1 // pred_fallthru
      _
    // Predicated region
    $region102: #{tpu_custom_call.1} parent=1 // pred_check
      _
    $region103: #{tpu_custom_call.1} parent=1 // pred_check_branch
      %212 = sbr.rel (0) target = $region105
    $region104: #{tpu_custom_call.1} parent=1 // pred_region
      %213 = dma.done [#allocation9], 512
    $region105: #{tpu_custom_call.1} parent=1 // pred_fallthru
      _
    // Predicated region
    $region106: #{tpu_custom_call.1} parent=1 // pred_check
      _
    $region107: #{tpu_custom_call.1} parent=1 // pred_check_branch
      %215 = sbr.rel (0) target = $region109
    $region108: #{tpu_custom_call.1} parent=1 // pred_region
      %216 = dma.done [#allocation12], 16
    $region109: #{tpu_custom_call.1} parent=1 // pred_fallthru
      _
    // Predicated region
    $region110: #{tpu_custom_call.1} parent=1 // pred_check
      _
    $region111: #{tpu_custom_call.1} parent=1 // pred_check_branch
      %218 = sbr.rel (0) target = $region113
    $region112: #{tpu_custom_call.1} parent=1 // pred_region
      %219 = dma.done [#allocation12], 16
    $region113: #{tpu_custom_call.1} parent=1 // pred_fallthru
      _
    // Predicated region
    $region114: #{tpu_custom_call.1} parent=1 // pred_check
      _
    $region115: #{tpu_custom_call.1} parent=1 // pred_check_branch
      %221 = sbr.rel (0) target = $region117
    $region116: #{tpu_custom_call.1} parent=1 // pred_region
      %222 = dma.done [#allocation15], 16
    $region117: #{tpu_custom_call.1} parent=1 // pred_fallthru
      _
    // Predicated region
    $region118: #{tpu_custom_call.1} parent=1 // pred_check
      _
    $region119: #{tpu_custom_call.1} parent=1 // pred_check_branch
      %224 = sbr.rel (0) target = $region121
    $region120: #{tpu_custom_call.1} parent=1 // pred_region
      %225 = dma.done [#allocation15], 16
    $region121: #{tpu_custom_call.1} parent=1 // pred_fallthru
      _
    // Predicated region
    $region122: #{tpu_custom_call.1} parent=1 // pred_check
      _
    $region123: #{tpu_custom_call.1} parent=1 // pred_check_branch
      %227 = sbr.rel (0) target = $region125
    $region124: #{tpu_custom_call.1} parent=1 // pred_region
      %228 = dma.done [#allocation18], 512
    $region125: #{tpu_custom_call.1} parent=1 // pred_fallthru
      _
    // Predicated region
    $region126: #{tpu_custom_call.1} parent=1 // pred_check
      _
    $region127: #{tpu_custom_call.1} parent=1 // pred_check_branch
      %230 = sbr.rel (0) target = $region129
    $region128: #{tpu_custom_call.1} parent=1 // pred_region
      %231 = dma.done [#allocation18], 16
    $region129: #{tpu_custom_call.1} parent=1 // pred_fallthru
      _
    // Predicated region
    $region130: #{tpu_custom_call.1} parent=1 // pred_check
      _
    $region131: #{tpu_custom_call.1} parent=1 // pred_check_branch
      %233 = sbr.rel (0) target = $region133
    $region132: #{tpu_custom_call.1} parent=1 // pred_region
      %234 = dma.done [#allocation21], 512
    $region133: #{tpu_custom_call.1} parent=1 // pred_fallthru
      _
    // Predicated region
    $region134: #{tpu_custom_call.1} parent=1 // pred_check
      _
    $region135: #{tpu_custom_call.1} parent=1 // pred_check_branch
      %236 = sbr.rel (0) target = $region137
    $region136: #{tpu_custom_call.1} parent=1 // pred_region
      %237 = dma.done [#allocation21], 16
    $region137: #{tpu_custom_call.1} parent=1 // pred_fallthru
      _
    // Predicated region
    $region138: #{tpu_custom_call.1} parent=1 // pred_check
      _
    $region139: #{tpu_custom_call.1} parent=1 // pred_check_branch
      %239 = sbr.rel (0) target = $region141
    $region140: #{tpu_custom_call.1} parent=1 // pred_region
      %240 = dma.done [#allocation24], 512
    $region141: #{tpu_custom_call.1} parent=1 // pred_fallthru
      _
    %v241 = vld [vmem:[%s0] sm:$0xff]
    %v242 = vld [vmem:[%s0 + $0x8] sm:$0xff]
    %v243 = vld [vmem:[%s0 + $0x10] sm:$0xff]
    %v244 = vld [vmem:[%s0 + $0x18] sm:$0xff]
    %v245 = vld [vmem:[#allocation2] sm:$0x1]
    %v246 = vld [vmem:[#allocation2 + $0x1] sm:$0x1]
    %v247 = vld [vmem:[#allocation2 + $0x2] sm:$0x1]
    %v248 = vld [vmem:[#allocation2 + $0x3] sm:$0x1]
    %v249 = vld [vmem:[%s2] sm:$0xff]
    %v250 = vld [vmem:[%s2 + $0x8] sm:$0xff]
    %v251 = vld [vmem:[%s2 + $0x10] sm:$0xff]
    %v252 = vld [vmem:[%s2 + $0x18] sm:$0xff]
    %v253 = vld [vmem:[#allocation5] sm:$0x1]
    %v254 = vld [vmem:[#allocation7] sm:$0x1]
    %v255 = vld [vmem:[#allocation13] sm:$0x1]
    %v256 = vld [vmem:[#allocation14] sm:$0x1]
    %v257 = vld [vmem:[%s5] sm:$0xff]
    %v258 = vld [vmem:[%s5 + $0x8] sm:$0xff]
    %v259 = vld [vmem:[%s5 + $0x10] sm:$0xff]
    %v260 = vld [vmem:[%s5 + $0x18] sm:$0xff]
    %v261 = vld [vmem:[#allocation8] sm:$0x1]
    %v262 = vld [vmem:[#allocation10] sm:$0xff]
    %v263 = vld [vmem:[#allocation10 + $0x8] sm:$0xff]
    %v264 = vld [vmem:[#allocation10 + $0x10] sm:$0xff]
    %v265 = vld [vmem:[#allocation10 + $0x18] sm:$0xff]
    %v266 = vld [vmem:[#allocation11] sm:$0x1]
    %v267 = vld [vmem:[%s11] sm:$0xff]
    %v268 = vld [vmem:[%s11 + $0x8] sm:$0xff]
    %v269 = vld [vmem:[%s11 + $0x10] sm:$0xff]
    %v270 = vld [vmem:[%s11 + $0x18] sm:$0xff]
    %v271 = vld [vmem:[#allocation16] sm:$0x1]
    %v272 = vld [vmem:[#allocation17] sm:$0xff]
    %v273 = vld [vmem:[#allocation17 + $0x8] sm:$0xff]
    %v274 = vld [vmem:[#allocation17 + $0x10] sm:$0xff]
    %v275 = vld [vmem:[#allocation17 + $0x18] sm:$0xff]
    %v276 = vld [vmem:[#allocation19] sm:$0x1]
    %v277 = vld [vmem:[#allocation20] sm:$0xff]
    %v278 = vld [vmem:[#allocation20 + $0x8] sm:$0xff]
    %v279 = vld [vmem:[#allocation20 + $0x10] sm:$0xff]
    %v280 = vld [vmem:[#allocation20 + $0x18] sm:$0xff]
    %v281 = vld [vmem:[#allocation22] sm:$0x1]
    %v282 = vld [vmem:[#allocation23] sm:$0xff]
    %v283 = vld [vmem:[#allocation23 + $0x8] sm:$0xff]
    %v284 = vld [vmem:[#allocation23 + $0x10] sm:$0xff]
    %v285 = vld [vmem:[#allocation23 + $0x18] sm:$0xff]
    %v286 = vld [vmem:[%s18] sm:$0x1]
    %v287 = vld [vmem:[%s19] sm:$0xff]
    %v288 = vld [vmem:[%s19 + $0x8] sm:$0xff]
    %v289 = vld [vmem:[%s19 + $0x10] sm:$0xff]
    %v290 = vld [vmem:[%s19 + $0x18] sm:$0xff]
    %v291 = vld [vmem:[%s19 + $0x20] sm:$0xff]
    %v292 = vld [vmem:[%s19 + $0x28] sm:$0xff]
    %v293 = vld [vmem:[%s19 + $0x30] sm:$0xff]
    %v294 = vld [vmem:[%s19 + $0x38] sm:$0xff]
    %v295 = vld [vmem:[%s20] sm:$0x1]
    %vm296 = vcmask 261120
    %v297 = vsel %vm296, %v241, 0.0
    %298 = vadd.xlane.f32.xlu0 %v297
    %v299 = vpop.xlane.xlu0 %298
    %v300 = vsel %vm296, %v242, 0.0
    %301 = vadd.xlane.f32.xlu0 %v300
    %v302 = vpop.xlane.xlu0 %301
    %v303 = vsel %vm296, %v243, 0.0
    %304 = vadd.xlane.f32.xlu0 %v303
    %v305 = vpop.xlane.xlu0 %304
    %v306 = vsel %vm296, %v244, 0.0
    %307 = vadd.xlane.f32.xlu0 %v306
    %v308 = vpop.xlane.xlu0 %307
    %v309 = vrcp.pop 32.0
    %v310 = vmul.f32 %v299, %v309
    %v311 = vmul.f32 %v302, %v309
    %v312 = vmul.f32 %v305, %v309
    %v313 = vmul.f32 %v308, %v309
    %v314 = vsub.f32 %v241, %v310
    %v315 = vsub.f32 %v242, %v311
    %v316 = vsub.f32 %v243, %v312
    %v317 = vsub.f32 %v244, %v313
    %v318 = vmul.f32 %v314, %v314
    %v319 = vmul.f32 %v315, %v315
    %v320 = vmul.f32 %v316, %v316
    %v321 = vmul.f32 %v317, %v317
    %v322 = vsel %vm296, %v318, 0.0
    %323 = vadd.xlane.f32.xlu0 %v322
    %v324 = vpop.xlane.xlu0 %323
    %v325 = vsel %vm296, %v319, 0.0
    %326 = vadd.xlane.f32.xlu0 %v325
    %v327 = vpop.xlane.xlu0 %326
    %v328 = vsel %vm296, %v320, 0.0
    %329 = vadd.xlane.f32.xlu0 %v328
    %v330 = vpop.xlane.xlu0 %329
    %v331 = vsel %vm296, %v321, 0.0
    %332 = vadd.xlane.f32.xlu0 %v331
    %v333 = vpop.xlane.xlu0 %332
    %v334 = vmul.f32 %v324, %v309
    %v335 = vmul.f32 %v327, %v309
    %v336 = vmul.f32 %v330, %v309
    %v337 = vmul.f32 %v333, %v309
    %v338 = vadd.f32 %v334, 1e-06
    %v339 = vadd.f32 %v335, 1e-06
    %v340 = vadd.f32 %v336, 1e-06
    %v341 = vadd.f32 %v337, 1e-06
    %v342 = vrsqrt.pop %v338
    %v343 = vrsqrt.pop %v339
    %v344 = vrsqrt.pop %v340
    %v345 = vrsqrt.pop %v341
    %v346 = vmul.f32 %v314, %v342
    %v347 = vmul.f32 %v315, %v343
    %v348 = vmul.f32 %v316, %v344
    %v349 = vmul.f32 %v317, %v345
    %v351 = vlaneseq
    %v352 = vshrl.u32 %v351, 7
    %v353 = vsub.s32 0, %v352
    %v354 = vrot.slane %v253, %v353
    %v356 = vmul.f32 %v346, %v354
    %v357 = vmul.f32 %v347, %v354
    %v358 = vmul.f32 %v348, %v354
    %v359 = vmul.f32 %v349, %v354
    %v361 = vlaneseq
    %v362 = vshrl.u32 %v361, 7
    %v363 = vsub.s32 0, %v362
    %v364 = vrot.slane %v254, %v363
    %v366 = vadd.f32 %v356, %v364
    %v367 = vadd.f32 %v357, %v364
    %v368 = vadd.f32 %v358, %v364
    %v369 = vadd.f32 %v359, %v364
    %v371 = vlaneseq
    %v372 = vshrl.u32 %v371, 7
    %v373 = vsub.s32 0, %v372
    %v374 = vrot.slane %v261, %v373
    %v377 = vsel %vm296, %v366, 0
    %v380 = vsel %vm296, %v367, 0
    %v383 = vsel %vm296, %v368, 0
    %v386 = vsel %vm296, %v369, 0
    %388 = vmatprep.subr.mxu0 0.0
    %389 = vmatpush1.msra.mxu0 %v257
    %390 = vmatprep.subr.mxu0 0.0
    %391 = vmatpush1.msra.mxu0 %v258
    %392 = vmatprep.subr.mxu0 0.0
    %393 = vmatpush1.msra.mxu0 %v259
    %394 = vmatprep.subr.mxu0 0.0
    %395 = vmatpush1.msra.mxu0 %v260
    %396 = vmatprep.subr.mxu0 0.0
    %397 = vmatpush1.msra.mxu0 0.0
    %398 = vmatprep.subr.mxu0 0.0
    %399 = vmatpush1.msra.mxu0 0.0
    %400 = vmatprep.subr.mxu0 0.0
    %401 = vmatpush1.msra.mxu0 0.0
    %402 = vmatprep.subr.mxu0 0.0
    %403 = vmatpush1.msra.mxu0 0.0
    %404 = vmatprep.subr.mxu0 0.0
    %405 = vmatpush1.msra.mxu0 0.0
    %406 = vmatprep.subr.mxu0 0.0
    %407 = vmatpush1.msra.mxu0 0.0
    %408 = vmatprep.subr.mxu0 0.0
    %409 = vmatpush1.msra.mxu0 0.0
    %410 = vmatprep.subr.mxu0 0.0
    %411 = vmatpush1.msra.mxu0 0.0
    %412 = vmatprep.subr.mxu0 0.0
    %413 = vmatpush1.msra.mxu0 0.0
    %414 = vmatprep.subr.mxu0 0.0
    %415 = vmatpush1.msra.mxu0 0.0
    %416 = vmatprep.subr.mxu0 0.0
    %417 = vmatpush1.msra.mxu0 0.0
    %418 = vmatprep.subr.mxu0 0.0
    %419 = vmatpush1.msra.mxu0 0.0
    %420 = vmatprep.subr.mxu0 0.0
    %421 = vmatpush1.msra.mxu0 0.0
    %422 = vmatprep.subr.mxu0 0.0
    %423 = vmatpush1.msra.mxu0 0.0
    %424 = vmatprep.subr.mxu0 0.0
    %425 = vmatpush1.msra.mxu0 0.0
    %426 = vmatprep.subr.mxu0 0.0
    %427 = vmatpush1.msra.mxu0 0.0
    %428 = vmatprep.subr.mxu0 0.0
    %429 = vmatpush1.msra.mxu0 0.0
    %430 = vmatprep.subr.mxu0 0.0
    %431 = vmatpush1.msra.mxu0 0.0
    %432 = vmatprep.subr.mxu0 0.0
    %433 = vmatpush1.msra.mxu0 0.0
    %434 = vmatprep.subr.mxu0 0.0
    %435 = vmatpush1.msra.mxu0 0.0
    %436 = vmatprep.subr.mxu0 0.0
    %437 = vmatpush1.msra.mxu0 0.0
    %438 = vmatprep.subr.mxu0 0.0
    %439 = vmatpush1.msra.mxu0 0.0
    %440 = vmatprep.subr.mxu0 0.0
    %441 = vmatpush1.msra.mxu0 0.0
    %442 = vmatprep.subr.mxu0 0.0
    %443 = vmatpush1.msra.mxu0 0.0
    %444 = vmatprep.subr.mxu0 0.0
    %445 = vmatpush1.msra.mxu0 0.0
    %446 = vmatprep.subr.mxu0 0.0
    %447 = vmatpush1.msra.mxu0 0.0
    %448 = vmatprep.subr.mxu0 0.0
    %449 = vmatpush1.msra.mxu0 0.0
    %450 = vmatprep.subr.mxu0 0.0
    %451 = vmatpush1.msra.mxu0 0.0
    %452 = vmatprep.mubr.f32.mxu0 0.0
    %453 = vmatmul.mubr.f32.gmra.mrb[0].mxu0 %v377
    %v454 = vpop.f32.mrb[0].mxu0
    %v455 = vadd.f32 %v374, %v454
    %v456 = vpop.f32.mrb[0].mxu0
    %457 = vmatprep.mubr.f32.mxu0 0.0
    %458 = vmatmul.mubr.f32.gmra.mrb[0].mxu0 %v380
    %v459 = vpop.f32.mrb[0].mxu0
    %v460 = vadd.f32 %v374, %v459
    %v461 = vpop.f32.mrb[0].mxu0
    %462 = vmatprep.mubr.f32.mxu0 0.0
    %463 = vmatmul.mubr.f32.gmra.mrb[0].mxu0 %v383
    %v464 = vpop.f32.mrb[0].mxu0
    %v465 = vadd.f32 %v374, %v464
    %v466 = vpop.f32.mrb[0].mxu0
    %467 = vmatprep.mubr.f32.mxu0 0.0
    %468 = vmatmul.mubr.f32.gmra.mrb[0].mxu0 %v386
    %v469 = vpop.f32.mrb[0].mxu0
    %v470 = vadd.f32 %v374, %v469
    %v471 = vpop.f32.mrb[0].mxu0
    %472 = vdwg.mxu0
    %v473 = vmul.f32 %v455, 0.35355338
    %v474 = vmul.f32 %v460, 0.35355338
    %v475 = vmul.f32 %v465, 0.35355338
    %v476 = vmul.f32 %v470, 0.35355338
    %481 = vrot.lane.b32.xlu0 %v249, 32
    %v482 = vpop.permute.xlu0 %481
    %483 = vrot.lane.b32.xlu0 %v250, 32
    %v484 = vpop.permute.xlu0 %483
    %485 = vrot.lane.b32.xlu0 %v251, 32
    %v486 = vpop.permute.xlu0 %485
    %487 = vrot.lane.b32.xlu0 %v252, 32
    %v488 = vpop.permute.xlu0 %487
    %v493 = vmul.f32 %v455, %v482
    %v494 = vmul.f32 %v455, %v484
    %v495 = vmul.f32 %v455, %v486
    %v496 = vmul.f32 %v455, %v488
    %v497 = vmul.f32 %v460, %v482
    %v498 = vmul.f32 %v460, %v484
    %v499 = vmul.f32 %v460, %v486
    %v500 = vmul.f32 %v460, %v488
    %v501 = vmul.f32 %v465, %v482
    %v502 = vmul.f32 %v465, %v484
    %v503 = vmul.f32 %v465, %v486
    %v504 = vmul.f32 %v465, %v488
    %v505 = vmul.f32 %v470, %v482
    %v506 = vmul.f32 %v470, %v484
    %v507 = vmul.f32 %v470, %v486
    %v508 = vmul.f32 %v470, %v488
    %509 = vrot.lane.b32.xlu0 %v249, 64
    %v510 = vpop.permute.xlu0 %509
    %511 = vrot.lane.b32.xlu0 %v250, 64
    %v512 = vpop.permute.xlu0 %511
    %513 = vrot.lane.b32.xlu0 %v251, 64
    %v514 = vpop.permute.xlu0 %513
    %515 = vrot.lane.b32.xlu0 %v252, 64
    %v516 = vpop.permute.xlu0 %515
    %v521 = vmul.f32 %v455, %v510
    %v522 = vmul.f32 %v455, %v512
    %v523 = vmul.f32 %v455, %v514
    %v524 = vmul.f32 %v455, %v516
    %v525 = vmul.f32 %v460, %v510
    %v526 = vmul.f32 %v460, %v512
    %v527 = vmul.f32 %v460, %v514
    %v528 = vmul.f32 %v460, %v516
    %v529 = vmul.f32 %v465, %v510
    %v530 = vmul.f32 %v465, %v512
    %v531 = vmul.f32 %v465, %v514
    %v532 = vmul.f32 %v465, %v516
    %v533 = vmul.f32 %v470, %v510
    %v534 = vmul.f32 %v470, %v512
    %v535 = vmul.f32 %v470, %v514
    %v536 = vmul.f32 %v470, %v516
    %v541 = vlaneseq
    %v542 = vshrl.u32 %v541, 7
    %v543 = vsub.s32 0, %v542
    %v544 = vrot.slane %v245, %v543
    %v545 = vlaneseq
    %v546 = vshrl.u32 %v545, 7
    %v547 = vsub.s32 0, %v546
    %v548 = vrot.slane %v246, %v547
    %v549 = vlaneseq
    %v550 = vshrl.u32 %v549, 7
    %v551 = vsub.s32 0, %v550
    %v552 = vrot.slane %v247, %v551
    %v553 = vlaneseq
    %v554 = vshrl.u32 %v553, 7
    %v555 = vsub.s32 0, %v554
    %v556 = vrot.slane %v248, %v555
    %565 = vrot.lane.b32.xlu0 %v493, 96
    %v566 = vpop.permute.xlu0 %565
    %567 = vrot.lane.b32.xlu0 %v494, 96
    %v568 = vpop.permute.xlu0 %567
    %569 = vrot.lane.b32.xlu0 %v495, 96
    %v570 = vpop.permute.xlu0 %569
    %571 = vrot.lane.b32.xlu0 %v496, 96
    %v572 = vpop.permute.xlu0 %571
    %v574 = vsel %vm296, %v473, 0
    %v576 = vsel %vm296, %v566, 0
    %v578 = vsel %vm296, %v568, 0
    %v580 = vsel %vm296, %v570, 0
    %v582 = vsel %vm296, %v572, 0
    %584 = vmatprep.subr.mxu0 0.0
    %585 = vmatpush1.xpose.msra.mxu0 %v576
    %586 = vmatprep.subr.mxu0 0.0
    %587 = vmatpush1.xpose.msra.mxu0 %v578
    %588 = vmatprep.subr.mxu0 0.0
    %589 = vmatpush1.xpose.msra.mxu0 %v580
    %590 = vmatprep.subr.mxu0 0.0
    %591 = vmatpush1.xpose.msra.mxu0 %v582
    %592 = vmatprep.subr.mxu0 0.0
    %593 = vmatpush1.xpose.msra.mxu0 0.0
    %594 = vmatprep.subr.mxu0 0.0
    %595 = vmatpush1.xpose.msra.mxu0 0.0
    %596 = vmatprep.subr.mxu0 0.0
    %597 = vmatpush1.xpose.msra.mxu0 0.0
    %598 = vmatprep.subr.mxu0 0.0
    %599 = vmatpush1.xpose.msra.mxu0 0.0
    %600 = vmatprep.subr.mxu0 0.0
    %601 = vmatpush1.xpose.msra.mxu0 0.0
    %602 = vmatprep.subr.mxu0 0.0
    %603 = vmatpush1.xpose.msra.mxu0 0.0
    %604 = vmatprep.subr.mxu0 0.0
    %605 = vmatpush1.xpose.msra.mxu0 0.0
    %606 = vmatprep.subr.mxu0 0.0
    %607 = vmatpush1.xpose.msra.mxu0 0.0
    %608 = vmatprep.subr.mxu0 0.0
    %609 = vmatpush1.xpose.msra.mxu0 0.0
    %610 = vmatprep.subr.mxu0 0.0
    %611 = vmatpush1.xpose.msra.mxu0 0.0
    %612 = vmatprep.subr.mxu0 0.0
    %613 = vmatpush1.xpose.msra.mxu0 0.0
    %614 = vmatprep.subr.mxu0 0.0
    %615 = vmatpush1.xpose.msra.mxu0 0.0
    %616 = vmatprep.subr.mxu0 0.0
    %617 = vmatpush1.xpose.msra.mxu0 0.0
    %618 = vmatprep.subr.mxu0 0.0
    %619 = vmatpush1.xpose.msra.mxu0 0.0
    %620 = vmatprep.subr.mxu0 0.0
    %621 = vmatpush1.xpose.msra.mxu0 0.0
    %622 = vmatprep.subr.mxu0 0.0
    %623 = vmatpush1.xpose.msra.mxu0 0.0
    %624 = vmatprep.subr.mxu0 0.0
    %625 = vmatpush1.xpose.msra.mxu0 0.0
    %626 = vmatprep.subr.mxu0 0.0
    %627 = vmatpush1.xpose.msra.mxu0 0.0
    %628 = vmatprep.subr.mxu0 0.0
    %629 = vmatpush1.xpose.msra.mxu0 0.0
    %630 = vmatprep.subr.mxu0 0.0
    %631 = vmatpush1.xpose.msra.mxu0 0.0
    %632 = vmatprep.subr.mxu0 0.0
    %633 = vmatpush1.xpose.msra.mxu0 0.0
    %634 = vmatprep.subr.mxu0 0.0
    %635 = vmatpush1.xpose.msra.mxu0 0.0
    %636 = vmatprep.subr.mxu0 0.0
    %637 = vmatpush1.xpose.msra.mxu0 0.0
    %638 = vmatprep.subr.mxu0 0.0
    %639 = vmatpush1.xpose.msra.mxu0 0.0
    %640 = vmatprep.subr.mxu0 0.0
    %641 = vmatpush1.xpose.msra.mxu0 0.0
    %642 = vmatprep.subr.mxu0 0.0
    %643 = vmatpush1.xpose.msra.mxu0 0.0
    %644 = vmatprep.subr.mxu0 0.0
    %645 = vmatpush1.xpose.msra.mxu0 0.0
    %646 = vmatprep.subr.mxu0 0.0
    %647 = vmatpush1.xpose.msra.mxu0 0.0
    %648 = vmatprep.mubr.f32.mxu0 0.0
    %649 = vmatmul.mubr.f32.gmra.mrb[0].mxu0 %v574
    %v650 = vpop.f32.mrb[0].mxu0
    %v651 = vadd.f32 %v544, %v650
    %v652 = vpop.f32.mrb[0].mxu0
    %653 = vdwg.mxu0
    %658 = vrot.lane.b32.xlu0 %v497, 96
    %v659 = vpop.permute.xlu0 %658
    %660 = vrot.lane.b32.xlu0 %v498, 96
    %v661 = vpop.permute.xlu0 %660
    %662 = vrot.lane.b32.xlu0 %v499, 96
    %v663 = vpop.permute.xlu0 %662
    %664 = vrot.lane.b32.xlu0 %v500, 96
    %v665 = vpop.permute.xlu0 %664
    %v667 = vsel %vm296, %v474, 0
    %v669 = vsel %vm296, %v659, 0
    %v671 = vsel %vm296, %v661, 0
    %v673 = vsel %vm296, %v663, 0
    %v675 = vsel %vm296, %v665, 0
    %677 = vmatprep.subr.mxu0 0.0
    %678 = vmatpush1.xpose.msra.mxu0 %v669
    %679 = vmatprep.subr.mxu0 0.0
    %680 = vmatpush1.xpose.msra.mxu0 %v671
    %681 = vmatprep.subr.mxu0 0.0
    %682 = vmatpush1.xpose.msra.mxu0 %v673
    %683 = vmatprep.subr.mxu0 0.0
    %684 = vmatpush1.xpose.msra.mxu0 %v675
    %685 = vmatprep.subr.mxu0 0.0
    %686 = vmatpush1.xpose.msra.mxu0 0.0
    %687 = vmatprep.subr.mxu0 0.0
    %688 = vmatpush1.xpose.msra.mxu0 0.0
    %689 = vmatprep.subr.mxu0 0.0
    %690 = vmatpush1.xpose.msra.mxu0 0.0
    %691 = vmatprep.subr.mxu0 0.0
    %692 = vmatpush1.xpose.msra.mxu0 0.0
    %693 = vmatprep.subr.mxu0 0.0
    %694 = vmatpush1.xpose.msra.mxu0 0.0
    %695 = vmatprep.subr.mxu0 0.0
    %696 = vmatpush1.xpose.msra.mxu0 0.0
    %697 = vmatprep.subr.mxu0 0.0
    %698 = vmatpush1.xpose.msra.mxu0 0.0
    %699 = vmatprep.subr.mxu0 0.0
    %700 = vmatpush1.xpose.msra.mxu0 0.0
    %701 = vmatprep.subr.mxu0 0.0
    %702 = vmatpush1.xpose.msra.mxu0 0.0
    %703 = vmatprep.subr.mxu0 0.0
    %704 = vmatpush1.xpose.msra.mxu0 0.0
    %705 = vmatprep.subr.mxu0 0.0
    %706 = vmatpush1.xpose.msra.mxu0 0.0
    %707 = vmatprep.subr.mxu0 0.0
    %708 = vmatpush1.xpose.msra.mxu0 0.0
    %709 = vmatprep.subr.mxu0 0.0
    %710 = vmatpush1.xpose.msra.mxu0 0.0
    %711 = vmatprep.subr.mxu0 0.0
    %712 = vmatpush1.xpose.msra.mxu0 0.0
    %713 = vmatprep.subr.mxu0 0.0
    %714 = vmatpush1.xpose.msra.mxu0 0.0
    %715 = vmatprep.subr.mxu0 0.0
    %716 = vmatpush1.xpose.msra.mxu0 0.0
    %717 = vmatprep.subr.mxu0 0.0
    %718 = vmatpush1.xpose.msra.mxu0 0.0
    %719 = vmatprep.subr.mxu0 0.0
    %720 = vmatpush1.xpose.msra.mxu0 0.0
    %721 = vmatprep.subr.mxu0 0.0
    %722 = vmatpush1.xpose.msra.mxu0 0.0
    %723 = vmatprep.subr.mxu0 0.0
    %724 = vmatpush1.xpose.msra.mxu0 0.0
    %725 = vmatprep.subr.mxu0 0.0
    %726 = vmatpush1.xpose.msra.mxu0 0.0
    %727 = vmatprep.subr.mxu0 0.0
    %728 = vmatpush1.xpose.msra.mxu0 0.0
    %729 = vmatprep.subr.mxu0 0.0
    %730 = vmatpush1.xpose.msra.mxu0 0.0
    %731 = vmatprep.subr.mxu0 0.0
    %732 = vmatpush1.xpose.msra.mxu0 0.0
    %733 = vmatprep.subr.mxu0 0.0
    %734 = vmatpush1.xpose.msra.mxu0 0.0
    %735 = vmatprep.subr.mxu0 0.0
    %736 = vmatpush1.xpose.msra.mxu0 0.0
    %737 = vmatprep.subr.mxu0 0.0
    %738 = vmatpush1.xpose.msra.mxu0 0.0
    %739 = vmatprep.subr.mxu0 0.0
    %740 = vmatpush1.xpose.msra.mxu0 0.0
    %741 = vmatprep.mubr.f32.mxu0 0.0
    %742 = vmatmul.mubr.f32.gmra.mrb[0].mxu0 %v667
    %v743 = vpop.f32.mrb[0].mxu0
    %v744 = vadd.f32 %v548, %v743
    %v745 = vpop.f32.mrb[0].mxu0
    %746 = vdwg.mxu0
    %751 = vrot.lane.b32.xlu0 %v501, 96
    %v752 = vpop.permute.xlu0 %751
    %753 = vrot.lane.b32.xlu0 %v502, 96
    %v754 = vpop.permute.xlu0 %753
    %755 = vrot.lane.b32.xlu0 %v503, 96
    %v756 = vpop.permute.xlu0 %755
    %757 = vrot.lane.b32.xlu0 %v504, 96
    %v758 = vpop.permute.xlu0 %757
    %v760 = vsel %vm296, %v475, 0
    %v762 = vsel %vm296, %v752, 0
    %v764 = vsel %vm296, %v754, 0
    %v766 = vsel %vm296, %v756, 0
    %v768 = vsel %vm296, %v758, 0
    %770 = vmatprep.subr.mxu0 0.0
    %771 = vmatpush1.xpose.msra.mxu0 %v762
    %772 = vmatprep.subr.mxu0 0.0
    %773 = vmatpush1.xpose.msra.mxu0 %v764
    %774 = vmatprep.subr.mxu0 0.0
    %775 = vmatpush1.xpose.msra.mxu0 %v766
    %776 = vmatprep.subr.mxu0 0.0
    %777 = vmatpush1.xpose.msra.mxu0 %v768
    %778 = vmatprep.subr.mxu0 0.0
    %779 = vmatpush1.xpose.msra.mxu0 0.0
    %780 = vmatprep.subr.mxu0 0.0
    %781 = vmatpush1.xpose.msra.mxu0 0.0
    %782 = vmatprep.subr.mxu0 0.0
    %783 = vmatpush1.xpose.msra.mxu0 0.0
    %784 = vmatprep.subr.mxu0 0.0
    %785 = vmatpush1.xpose.msra.mxu0 0.0
    %786 = vmatprep.subr.mxu0 0.0
    %787 = vmatpush1.xpose.msra.mxu0 0.0
    %788 = vmatprep.subr.mxu0 0.0
    %789 = vmatpush1.xpose.msra.mxu0 0.0
    %790 = vmatprep.subr.mxu0 0.0
    %791 = vmatpush1.xpose.msra.mxu0 0.0
    %792 = vmatprep.subr.mxu0 0.0
    %793 = vmatpush1.xpose.msra.mxu0 0.0
    %794 = vmatprep.subr.mxu0 0.0
    %795 = vmatpush1.xpose.msra.mxu0 0.0
    %796 = vmatprep.subr.mxu0 0.0
    %797 = vmatpush1.xpose.msra.mxu0 0.0
    %798 = vmatprep.subr.mxu0 0.0
    %799 = vmatpush1.xpose.msra.mxu0 0.0
    %800 = vmatprep.subr.mxu0 0.0
    %801 = vmatpush1.xpose.msra.mxu0 0.0
    %802 = vmatprep.subr.mxu0 0.0
    %803 = vmatpush1.xpose.msra.mxu0 0.0
    %804 = vmatprep.subr.mxu0 0.0
    %805 = vmatpush1.xpose.msra.mxu0 0.0
    %806 = vmatprep.subr.mxu0 0.0
    %807 = vmatpush1.xpose.msra.mxu0 0.0
    %808 = vmatprep.subr.mxu0 0.0
    %809 = vmatpush1.xpose.msra.mxu0 0.0
    %810 = vmatprep.subr.mxu0 0.0
    %811 = vmatpush1.xpose.msra.mxu0 0.0
    %812 = vmatprep.subr.mxu0 0.0
    %813 = vmatpush1.xpose.msra.mxu0 0.0
    %814 = vmatprep.subr.mxu0 0.0
    %815 = vmatpush1.xpose.msra.mxu0 0.0
    %816 = vmatprep.subr.mxu0 0.0
    %817 = vmatpush1.xpose.msra.mxu0 0.0
    %818 = vmatprep.subr.mxu0 0.0
    %819 = vmatpush1.xpose.msra.mxu0 0.0
    %820 = vmatprep.subr.mxu0 0.0
    %821 = vmatpush1.xpose.msra.mxu0 0.0
    %822 = vmatprep.subr.mxu0 0.0
    %823 = vmatpush1.xpose.msra.mxu0 0.0
    %824 = vmatprep.subr.mxu0 0.0
    %825 = vmatpush1.xpose.msra.mxu0 0.0
    %826 = vmatprep.subr.mxu0 0.0
    %827 = vmatpush1.xpose.msra.mxu0 0.0
    %828 = vmatprep.subr.mxu0 0.0
    %829 = vmatpush1.xpose.msra.mxu0 0.0
    %830 = vmatprep.subr.mxu0 0.0
    %831 = vmatpush1.xpose.msra.mxu0 0.0
    %832 = vmatprep.subr.mxu0 0.0
    %833 = vmatpush1.xpose.msra.mxu0 0.0
    %834 = vmatprep.mubr.f32.mxu0 0.0
    %835 = vmatmul.mubr.f32.gmra.mrb[0].mxu0 %v760
    %v836 = vpop.f32.mrb[0].mxu0
    %v837 = vadd.f32 %v552, %v836
    %v838 = vpop.f32.mrb[0].mxu0
    %839 = vdwg.mxu0
    %844 = vrot.lane.b32.xlu0 %v505, 96
    %v845 = vpop.permute.xlu0 %844
    %846 = vrot.lane.b32.xlu0 %v506, 96
    %v847 = vpop.permute.xlu0 %846
    %848 = vrot.lane.b32.xlu0 %v507, 96
    %v849 = vpop.permute.xlu0 %848
    %850 = vrot.lane.b32.xlu0 %v508, 96
    %v851 = vpop.permute.xlu0 %850
    %v853 = vsel %vm296, %v476, 0
    %v855 = vsel %vm296, %v845, 0
    %v857 = vsel %vm296, %v847, 0
    %v859 = vsel %vm296, %v849, 0
    %v861 = vsel %vm296, %v851, 0
    %863 = vmatprep.subr.mxu0 0.0
    %864 = vmatpush1.xpose.msra.mxu0 %v855
    %865 = vmatprep.subr.mxu0 0.0
    %866 = vmatpush1.xpose.msra.mxu0 %v857
    %867 = vmatprep.subr.mxu0 0.0
    %868 = vmatpush1.xpose.msra.mxu0 %v859
    %869 = vmatprep.subr.mxu0 0.0
    %870 = vmatpush1.xpose.msra.mxu0 %v861
    %871 = vmatprep.subr.mxu0 0.0
    %872 = vmatpush1.xpose.msra.mxu0 0.0
    %873 = vmatprep.subr.mxu0 0.0
    %874 = vmatpush1.xpose.msra.mxu0 0.0
    %875 = vmatprep.subr.mxu0 0.0
    %876 = vmatpush1.xpose.msra.mxu0 0.0
    %877 = vmatprep.subr.mxu0 0.0
    %878 = vmatpush1.xpose.msra.mxu0 0.0
    %879 = vmatprep.subr.mxu0 0.0
    %880 = vmatpush1.xpose.msra.mxu0 0.0
    %881 = vmatprep.subr.mxu0 0.0
    %882 = vmatpush1.xpose.msra.mxu0 0.0
    %883 = vmatprep.subr.mxu0 0.0
    %884 = vmatpush1.xpose.msra.mxu0 0.0
    %885 = vmatprep.subr.mxu0 0.0
    %886 = vmatpush1.xpose.msra.mxu0 0.0
    %887 = vmatprep.subr.mxu0 0.0
    %888 = vmatpush1.xpose.msra.mxu0 0.0
    %889 = vmatprep.subr.mxu0 0.0
    %890 = vmatpush1.xpose.msra.mxu0 0.0
    %891 = vmatprep.subr.mxu0 0.0
    %892 = vmatpush1.xpose.msra.mxu0 0.0
    %893 = vmatprep.subr.mxu0 0.0
    %894 = vmatpush1.xpose.msra.mxu0 0.0
    %895 = vmatprep.subr.mxu0 0.0
    %896 = vmatpush1.xpose.msra.mxu0 0.0
    %897 = vmatprep.subr.mxu0 0.0
    %898 = vmatpush1.xpose.msra.mxu0 0.0
    %899 = vmatprep.subr.mxu0 0.0
    %900 = vmatpush1.xpose.msra.mxu0 0.0
    %901 = vmatprep.subr.mxu0 0.0
    %902 = vmatpush1.xpose.msra.mxu0 0.0
    %903 = vmatprep.subr.mxu0 0.0
    %904 = vmatpush1.xpose.msra.mxu0 0.0
    %905 = vmatprep.subr.mxu0 0.0
    %906 = vmatpush1.xpose.msra.mxu0 0.0
    %907 = vmatprep.subr.mxu0 0.0
    %908 = vmatpush1.xpose.msra.mxu0 0.0
    %909 = vmatprep.subr.mxu0 0.0
    %910 = vmatpush1.xpose.msra.mxu0 0.0
    %911 = vmatprep.subr.mxu0 0.0
    %912 = vmatpush1.xpose.msra.mxu0 0.0
    %913 = vmatprep.subr.mxu0 0.0
    %914 = vmatpush1.xpose.msra.mxu0 0.0
    %915 = vmatprep.subr.mxu0 0.0
    %916 = vmatpush1.xpose.msra.mxu0 0.0
    %917 = vmatprep.subr.mxu0 0.0
    %918 = vmatpush1.xpose.msra.mxu0 0.0
    %919 = vmatprep.subr.mxu0 0.0
    %920 = vmatpush1.xpose.msra.mxu0 0.0
    %921 = vmatprep.subr.mxu0 0.0
    %922 = vmatpush1.xpose.msra.mxu0 0.0
    %923 = vmatprep.subr.mxu0 0.0
    %924 = vmatpush1.xpose.msra.mxu0 0.0
    %925 = vmatprep.subr.mxu0 0.0
    %926 = vmatpush1.xpose.msra.mxu0 0.0
    %927 = vmatprep.mubr.f32.mxu0 0.0
    %928 = vmatmul.mubr.f32.gmra.mrb[0].mxu0 %v853
    %v929 = vpop.f32.mrb[0].mxu0
    %v930 = vadd.f32 %v556, %v929
    %v931 = vpop.f32.mrb[0].mxu0
    %932 = vdwg.mxu0
    %v933 = vsel %vm296, %v651, -inf
    %934 = vmax.xlane.f32.xlu0 %v933
    %v935 = vpop.xlane.xlu0 %934
    %v936 = vsel %vm296, %v744, -inf
    %937 = vmax.xlane.f32.xlu0 %v936
    %v938 = vpop.xlane.xlu0 %937
    %v939 = vsel %vm296, %v837, -inf
    %940 = vmax.xlane.f32.xlu0 %v939
    %v941 = vpop.xlane.xlu0 %940
    %v942 = vsel %vm296, %v930, -inf
    %943 = vmax.xlane.f32.xlu0 %v942
    %v944 = vpop.xlane.xlu0 %943
    %v945 = vsub.f32 %v651, %v935
    %v946 = vsub.f32 %v744, %v938
    %v947 = vsub.f32 %v837, %v941
    %v948 = vsub.f32 %v930, %v944
    %v949 = vmul.f32 %v945, 1.442695
    %v950 = vpow.pop %v949
    %v951 = vmul.f32 %v946, 1.442695
    %v952 = vpow.pop %v951
    %v953 = vmul.f32 %v947, 1.442695
    %v954 = vpow.pop %v953
    %v955 = vmul.f32 %v948, 1.442695
    %v956 = vpow.pop %v955
    %961 = vrot.lane.b32.xlu0 %v521, 64
    %v962 = vpop.permute.xlu0 %961
    %963 = vrot.lane.b32.xlu0 %v522, 64
    %v964 = vpop.permute.xlu0 %963
    %965 = vrot.lane.b32.xlu0 %v523, 64
    %v966 = vpop.permute.xlu0 %965
    %967 = vrot.lane.b32.xlu0 %v524, 64
    %v968 = vpop.permute.xlu0 %967
    %v974 = vsel %vm296, %v950, 0
    %976 = vmatprep.subr.mxu0 0.0
    %977 = vmatpush1.msra.mxu0 %v962
    %978 = vmatprep.subr.mxu0 0.0
    %979 = vmatpush1.msra.mxu0 %v964
    %980 = vmatprep.subr.mxu0 0.0
    %981 = vmatpush1.msra.mxu0 %v966
    %982 = vmatprep.subr.mxu0 0.0
    %983 = vmatpush1.msra.mxu0 %v968
    %984 = vmatprep.subr.mxu0 0.0
    %985 = vmatpush1.msra.mxu0 0.0
    %986 = vmatprep.subr.mxu0 0.0
    %987 = vmatpush1.msra.mxu0 0.0
    %988 = vmatprep.subr.mxu0 0.0
    %989 = vmatpush1.msra.mxu0 0.0
    %990 = vmatprep.subr.mxu0 0.0
    %991 = vmatpush1.msra.mxu0 0.0
    %992 = vmatprep.subr.mxu0 0.0
    %993 = vmatpush1.msra.mxu0 0.0
    %994 = vmatprep.subr.mxu0 0.0
    %995 = vmatpush1.msra.mxu0 0.0
    %996 = vmatprep.subr.mxu0 0.0
    %997 = vmatpush1.msra.mxu0 0.0
    %998 = vmatprep.subr.mxu0 0.0
    %999 = vmatpush1.msra.mxu0 0.0
    %1000 = vmatprep.subr.mxu0 0.0
    %1001 = vmatpush1.msra.mxu0 0.0
    %1002 = vmatprep.subr.mxu0 0.0
    %1003 = vmatpush1.msra.mxu0 0.0
    %1004 = vmatprep.subr.mxu0 0.0
    %1005 = vmatpush1.msra.mxu0 0.0
    %1006 = vmatprep.subr.mxu0 0.0
    %1007 = vmatpush1.msra.mxu0 0.0
    %1008 = vmatprep.subr.mxu0 0.0
    %1009 = vmatpush1.msra.mxu0 0.0
    %1010 = vmatprep.subr.mxu0 0.0
    %1011 = vmatpush1.msra.mxu0 0.0
    %1012 = vmatprep.subr.mxu0 0.0
    %1013 = vmatpush1.msra.mxu0 0.0
    %1014 = vmatprep.subr.mxu0 0.0
    %1015 = vmatpush1.msra.mxu0 0.0
    %1016 = vmatprep.subr.mxu0 0.0
    %1017 = vmatpush1.msra.mxu0 0.0
    %1018 = vmatprep.subr.mxu0 0.0
    %1019 = vmatpush1.msra.mxu0 0.0
    %1020 = vmatprep.subr.mxu0 0.0
    %1021 = vmatpush1.msra.mxu0 0.0
    %1022 = vmatprep.subr.mxu0 0.0
    %1023 = vmatpush1.msra.mxu0 0.0
    %1024 = vmatprep.subr.mxu0 0.0
    %1025 = vmatpush1.msra.mxu0 0.0
    %1026 = vmatprep.subr.mxu0 0.0
    %1027 = vmatpush1.msra.mxu0 0.0
    %1028 = vmatprep.subr.mxu0 0.0
    %1029 = vmatpush1.msra.mxu0 0.0
    %1030 = vmatprep.subr.mxu0 0.0
    %1031 = vmatpush1.msra.mxu0 0.0
    %1032 = vmatprep.subr.mxu0 0.0
    %1033 = vmatpush1.msra.mxu0 0.0
    %1034 = vmatprep.subr.mxu0 0.0
    %1035 = vmatpush1.msra.mxu0 0.0
    %1036 = vmatprep.subr.mxu0 0.0
    %1037 = vmatpush1.msra.mxu0 0.0
    %1038 = vmatprep.subr.mxu0 0.0
    %1039 = vmatpush1.msra.mxu0 0.0
    %1040 = vmatprep.mubr.f32.mxu0 0.0
    %1041 = vmatmul.mubr.f32.gmra.mrb[0].mxu0 %v974
    %v1042 = vpop.f32.mrb[0].mxu0
    %v1043 = vadd.f32 0.0, %v1042
    %v1044 = vpop.f32.mrb[0].mxu0
    %1045 = vdwg.mxu0
    %1050 = vrot.lane.b32.xlu0 %v525, 64
    %v1051 = vpop.permute.xlu0 %1050
    %1052 = vrot.lane.b32.xlu0 %v526, 64
    %v1053 = vpop.permute.xlu0 %1052
    %1054 = vrot.lane.b32.xlu0 %v527, 64
    %v1055 = vpop.permute.xlu0 %1054
    %1056 = vrot.lane.b32.xlu0 %v528, 64
    %v1057 = vpop.permute.xlu0 %1056
    %v1063 = vsel %vm296, %v952, 0
    %1065 = vmatprep.subr.mxu0 0.0
    %1066 = vmatpush1.msra.mxu0 %v1051
    %1067 = vmatprep.subr.mxu0 0.0
    %1068 = vmatpush1.msra.mxu0 %v1053
    %1069 = vmatprep.subr.mxu0 0.0
    %1070 = vmatpush1.msra.mxu0 %v1055
    %1071 = vmatprep.subr.mxu0 0.0
    %1072 = vmatpush1.msra.mxu0 %v1057
    %1073 = vmatprep.subr.mxu0 0.0
    %1074 = vmatpush1.msra.mxu0 0.0
    %1075 = vmatprep.subr.mxu0 0.0
    %1076 = vmatpush1.msra.mxu0 0.0
    %1077 = vmatprep.subr.mxu0 0.0
    %1078 = vmatpush1.msra.mxu0 0.0
    %1079 = vmatprep.subr.mxu0 0.0
    %1080 = vmatpush1.msra.mxu0 0.0
    %1081 = vmatprep.subr.mxu0 0.0
    %1082 = vmatpush1.msra.mxu0 0.0
    %1083 = vmatprep.subr.mxu0 0.0
    %1084 = vmatpush1.msra.mxu0 0.0
    %1085 = vmatprep.subr.mxu0 0.0
    %1086 = vmatpush1.msra.mxu0 0.0
    %1087 = vmatprep.subr.mxu0 0.0
    %1088 = vmatpush1.msra.mxu0 0.0
    %1089 = vmatprep.subr.mxu0 0.0
    %1090 = vmatpush1.msra.mxu0 0.0
    %1091 = vmatprep.subr.mxu0 0.0
    %1092 = vmatpush1.msra.mxu0 0.0
    %1093 = vmatprep.subr.mxu0 0.0
    %1094 = vmatpush1.msra.mxu0 0.0
    %1095 = vmatprep.subr.mxu0 0.0
    %1096 = vmatpush1.msra.mxu0 0.0
    %1097 = vmatprep.subr.mxu0 0.0
    %1098 = vmatpush1.msra.mxu0 0.0
    %1099 = vmatprep.subr.mxu0 0.0
    %1100 = vmatpush1.msra.mxu0 0.0
    %1101 = vmatprep.subr.mxu0 0.0
    %1102 = vmatpush1.msra.mxu0 0.0
    %1103 = vmatprep.subr.mxu0 0.0
    %1104 = vmatpush1.msra.mxu0 0.0
    %1105 = vmatprep.subr.mxu0 0.0
    %1106 = vmatpush1.msra.mxu0 0.0
    %1107 = vmatprep.subr.mxu0 0.0
    %1108 = vmatpush1.msra.mxu0 0.0
    %1109 = vmatprep.subr.mxu0 0.0
    %1110 = vmatpush1.msra.mxu0 0.0
    %1111 = vmatprep.subr.mxu0 0.0
    %1112 = vmatpush1.msra.mxu0 0.0
    %1113 = vmatprep.subr.mxu0 0.0
    %1114 = vmatpush1.msra.mxu0 0.0
    %1115 = vmatprep.subr.mxu0 0.0
    %1116 = vmatpush1.msra.mxu0 0.0
    %1117 = vmatprep.subr.mxu0 0.0
    %1118 = vmatpush1.msra.mxu0 0.0
    %1119 = vmatprep.subr.mxu0 0.0
    %1120 = vmatpush1.msra.mxu0 0.0
    %1121 = vmatprep.subr.mxu0 0.0
    %1122 = vmatpush1.msra.mxu0 0.0
    %1123 = vmatprep.subr.mxu0 0.0
    %1124 = vmatpush1.msra.mxu0 0.0
    %1125 = vmatprep.subr.mxu0 0.0
    %1126 = vmatpush1.msra.mxu0 0.0
    %1127 = vmatprep.subr.mxu0 0.0
    %1128 = vmatpush1.msra.mxu0 0.0
    %1129 = vmatprep.mubr.f32.mxu0 0.0
    %1130 = vmatmul.mubr.f32.gmra.mrb[0].mxu0 %v1063
    %v1131 = vpop.f32.mrb[0].mxu0
    %v1132 = vadd.f32 0.0, %v1131
    %v1133 = vpop.f32.mrb[0].mxu0
    %1134 = vdwg.mxu0
    %1139 = vrot.lane.b32.xlu0 %v529, 64
    %v1140 = vpop.permute.xlu0 %1139
    %1141 = vrot.lane.b32.xlu0 %v530, 64
    %v1142 = vpop.permute.xlu0 %1141
    %1143 = vrot.lane.b32.xlu0 %v531, 64
    %v1144 = vpop.permute.xlu0 %1143
    %1145 = vrot.lane.b32.xlu0 %v532, 64
    %v1146 = vpop.permute.xlu0 %1145
    %v1152 = vsel %vm296, %v954, 0
    %1154 = vmatprep.subr.mxu0 0.0
    %1155 = vmatpush1.msra.mxu0 %v1140
    %1156 = vmatprep.subr.mxu0 0.0
    %1157 = vmatpush1.msra.mxu0 %v1142
    %1158 = vmatprep.subr.mxu0 0.0
    %1159 = vmatpush1.msra.mxu0 %v1144
    %1160 = vmatprep.subr.mxu0 0.0
    %1161 = vmatpush1.msra.mxu0 %v1146
    %1162 = vmatprep.subr.mxu0 0.0
    %1163 = vmatpush1.msra.mxu0 0.0
    %1164 = vmatprep.subr.mxu0 0.0
    %1165 = vmatpush1.msra.mxu0 0.0
    %1166 = vmatprep.subr.mxu0 0.0
    %1167 = vmatpush1.msra.mxu0 0.0
    %1168 = vmatprep.subr.mxu0 0.0
    %1169 = vmatpush1.msra.mxu0 0.0
    %1170 = vmatprep.subr.mxu0 0.0
    %1171 = vmatpush1.msra.mxu0 0.0
    %1172 = vmatprep.subr.mxu0 0.0
    %1173 = vmatpush1.msra.mxu0 0.0
    %1174 = vmatprep.subr.mxu0 0.0
    %1175 = vmatpush1.msra.mxu0 0.0
    %1176 = vmatprep.subr.mxu0 0.0
    %1177 = vmatpush1.msra.mxu0 0.0
    %1178 = vmatprep.subr.mxu0 0.0
    %1179 = vmatpush1.msra.mxu0 0.0
    %1180 = vmatprep.subr.mxu0 0.0
    %1181 = vmatpush1.msra.mxu0 0.0
    %1182 = vmatprep.subr.mxu0 0.0
    %1183 = vmatpush1.msra.mxu0 0.0
    %1184 = vmatprep.subr.mxu0 0.0
    %1185 = vmatpush1.msra.mxu0 0.0
    %1186 = vmatprep.subr.mxu0 0.0
    %1187 = vmatpush1.msra.mxu0 0.0
    %1188 = vmatprep.subr.mxu0 0.0
    %1189 = vmatpush1.msra.mxu0 0.0
    %1190 = vmatprep.subr.mxu0 0.0
    %1191 = vmatpush1.msra.mxu0 0.0
    %1192 = vmatprep.subr.mxu0 0.0
    %1193 = vmatpush1.msra.mxu0 0.0
    %1194 = vmatprep.subr.mxu0 0.0
    %1195 = vmatpush1.msra.mxu0 0.0
    %1196 = vmatprep.subr.mxu0 0.0
    %1197 = vmatpush1.msra.mxu0 0.0
    %1198 = vmatprep.subr.mxu0 0.0
    %1199 = vmatpush1.msra.mxu0 0.0
    %1200 = vmatprep.subr.mxu0 0.0
    %1201 = vmatpush1.msra.mxu0 0.0
    %1202 = vmatprep.subr.mxu0 0.0
    %1203 = vmatpush1.msra.mxu0 0.0
    %1204 = vmatprep.subr.mxu0 0.0
    %1205 = vmatpush1.msra.mxu0 0.0
    %1206 = vmatprep.subr.mxu0 0.0
    %1207 = vmatpush1.msra.mxu0 0.0
    %1208 = vmatprep.subr.mxu0 0.0
    %1209 = vmatpush1.msra.mxu0 0.0
    %1210 = vmatprep.subr.mxu0 0.0
    %1211 = vmatpush1.msra.mxu0 0.0
    %1212 = vmatprep.subr.mxu0 0.0
    %1213 = vmatpush1.msra.mxu0 0.0
    %1214 = vmatprep.subr.mxu0 0.0
    %1215 = vmatpush1.msra.mxu0 0.0
    %1216 = vmatprep.subr.mxu0 0.0
    %1217 = vmatpush1.msra.mxu0 0.0
    %1218 = vmatprep.mubr.f32.mxu0 0.0
    %1219 = vmatmul.mubr.f32.gmra.mrb[0].mxu0 %v1152
    %v1220 = vpop.f32.mrb[0].mxu0
    %v1221 = vadd.f32 0.0, %v1220
    %v1222 = vpop.f32.mrb[0].mxu0
    %1223 = vdwg.mxu0
    %1228 = vrot.lane.b32.xlu0 %v533, 64
    %v1229 = vpop.permute.xlu0 %1228
    %1230 = vrot.lane.b32.xlu0 %v534, 64
    %v1231 = vpop.permute.xlu0 %1230
    %1232 = vrot.lane.b32.xlu0 %v535, 64
    %v1233 = vpop.permute.xlu0 %1232
    %1234 = vrot.lane.b32.xlu0 %v536, 64
    %v1235 = vpop.permute.xlu0 %1234
    %v1241 = vsel %vm296, %v956, 0
    %1243 = vmatprep.subr.mxu0 0.0
    %1244 = vmatpush1.msra.mxu0 %v1229
    %1245 = vmatprep.subr.mxu0 0.0
    %1246 = vmatpush1.msra.mxu0 %v1231
    %1247 = vmatprep.subr.mxu0 0.0
    %1248 = vmatpush1.msra.mxu0 %v1233
    %1249 = vmatprep.subr.mxu0 0.0
    %1250 = vmatpush1.msra.mxu0 %v1235
    %1251 = vmatprep.subr.mxu0 0.0
    %1252 = vmatpush1.msra.mxu0 0.0
    %1253 = vmatprep.subr.mxu0 0.0
    %1254 = vmatpush1.msra.mxu0 0.0
    %1255 = vmatprep.subr.mxu0 0.0
    %1256 = vmatpush1.msra.mxu0 0.0
    %1257 = vmatprep.subr.mxu0 0.0
    %1258 = vmatpush1.msra.mxu0 0.0
    %1259 = vmatprep.subr.mxu0 0.0
    %1260 = vmatpush1.msra.mxu0 0.0
    %1261 = vmatprep.subr.mxu0 0.0
    %1262 = vmatpush1.msra.mxu0 0.0
    %1263 = vmatprep.subr.mxu0 0.0
    %1264 = vmatpush1.msra.mxu0 0.0
    %1265 = vmatprep.subr.mxu0 0.0
    %1266 = vmatpush1.msra.mxu0 0.0
    %1267 = vmatprep.subr.mxu0 0.0
    %1268 = vmatpush1.msra.mxu0 0.0
    %1269 = vmatprep.subr.mxu0 0.0
    %1270 = vmatpush1.msra.mxu0 0.0
    %1271 = vmatprep.subr.mxu0 0.0
    %1272 = vmatpush1.msra.mxu0 0.0
    %1273 = vmatprep.subr.mxu0 0.0
    %1274 = vmatpush1.msra.mxu0 0.0
    %1275 = vmatprep.subr.mxu0 0.0
    %1276 = vmatpush1.msra.mxu0 0.0
    %1277 = vmatprep.subr.mxu0 0.0
    %1278 = vmatpush1.msra.mxu0 0.0
    %1279 = vmatprep.subr.mxu0 0.0
    %1280 = vmatpush1.msra.mxu0 0.0
    %1281 = vmatprep.subr.mxu0 0.0
    %1282 = vmatpush1.msra.mxu0 0.0
    %1283 = vmatprep.subr.mxu0 0.0
    %1284 = vmatpush1.msra.mxu0 0.0
    %1285 = vmatprep.subr.mxu0 0.0
    %1286 = vmatpush1.msra.mxu0 0.0
    %1287 = vmatprep.subr.mxu0 0.0
    %1288 = vmatpush1.msra.mxu0 0.0
    %1289 = vmatprep.subr.mxu0 0.0
    %1290 = vmatpush1.msra.mxu0 0.0
    %1291 = vmatprep.subr.mxu0 0.0
    %1292 = vmatpush1.msra.mxu0 0.0
    %1293 = vmatprep.subr.mxu0 0.0
    %1294 = vmatpush1.msra.mxu0 0.0
    %1295 = vmatprep.subr.mxu0 0.0
    %1296 = vmatpush1.msra.mxu0 0.0
    %1297 = vmatprep.subr.mxu0 0.0
    %1298 = vmatpush1.msra.mxu0 0.0
    %1299 = vmatprep.subr.mxu0 0.0
    %1300 = vmatpush1.msra.mxu0 0.0
    %1301 = vmatprep.subr.mxu0 0.0
    %1302 = vmatpush1.msra.mxu0 0.0
    %1303 = vmatprep.subr.mxu0 0.0
    %1304 = vmatpush1.msra.mxu0 0.0
    %1305 = vmatprep.subr.mxu0 0.0
    %1306 = vmatpush1.msra.mxu0 0.0
    %1307 = vmatprep.mubr.f32.mxu0 0.0
    %1308 = vmatmul.mubr.f32.gmra.mrb[0].mxu0 %v1241
    %v1309 = vpop.f32.mrb[0].mxu0
    %v1310 = vadd.f32 0.0, %v1309
    %v1311 = vpop.f32.mrb[0].mxu0
    %1312 = vdwg.mxu0
    %1313 = vmatprep.subr.mxu0 0.0
    %1314 = vmatpush1.msra.mxu0 %v249
    %1315 = vmatprep.subr.mxu0 0.0
    %1316 = vmatpush1.msra.mxu0 %v250
    %1317 = vmatprep.subr.mxu0 0.0
    %1318 = vmatpush1.msra.mxu0 %v251
    %1319 = vmatprep.subr.mxu0 0.0
    %1320 = vmatpush1.msra.mxu0 %v252
    %1321 = vmatprep.subr.mxu0 0.0
    %1322 = vmatpush1.msra.mxu0 0.0
    %1323 = vmatprep.subr.mxu0 0.0
    %1324 = vmatpush1.msra.mxu0 0.0
    %1325 = vmatprep.subr.mxu0 0.0
    %1326 = vmatpush1.msra.mxu0 0.0
    %1327 = vmatprep.subr.mxu0 0.0
    %1328 = vmatpush1.msra.mxu0 0.0
    %1329 = vmatprep.subr.mxu0 0.0
    %1330 = vmatpush1.msra.mxu0 0.0
    %1331 = vmatprep.subr.mxu0 0.0
    %1332 = vmatpush1.msra.mxu0 0.0
    %1333 = vmatprep.subr.mxu0 0.0
    %1334 = vmatpush1.msra.mxu0 0.0
    %1335 = vmatprep.subr.mxu0 0.0
    %1336 = vmatpush1.msra.mxu0 0.0
    %1337 = vmatprep.subr.mxu0 0.0
    %1338 = vmatpush1.msra.mxu0 0.0
    %1339 = vmatprep.subr.mxu0 0.0
    %1340 = vmatpush1.msra.mxu0 0.0
    %1341 = vmatprep.subr.mxu0 0.0
    %1342 = vmatpush1.msra.mxu0 0.0
    %1343 = vmatprep.subr.mxu0 0.0
    %1344 = vmatpush1.msra.mxu0 0.0
    %1345 = vmatprep.subr.mxu0 0.0
    %1346 = vmatpush1.msra.mxu0 0.0
    %1347 = vmatprep.subr.mxu0 0.0
    %1348 = vmatpush1.msra.mxu0 0.0
    %1349 = vmatprep.subr.mxu0 0.0
    %1350 = vmatpush1.msra.mxu0 0.0
    %1351 = vmatprep.subr.mxu0 0.0
    %1352 = vmatpush1.msra.mxu0 0.0
    %1353 = vmatprep.subr.mxu0 0.0
    %1354 = vmatpush1.msra.mxu0 0.0
    %1355 = vmatprep.subr.mxu0 0.0
    %1356 = vmatpush1.msra.mxu0 0.0
    %1357 = vmatprep.subr.mxu0 0.0
    %1358 = vmatpush1.msra.mxu0 0.0
    %1359 = vmatprep.subr.mxu0 0.0
    %1360 = vmatpush1.msra.mxu0 0.0
    %1361 = vmatprep.subr.mxu0 0.0
    %1362 = vmatpush1.msra.mxu0 0.0
    %1363 = vmatprep.subr.mxu0 0.0
    %1364 = vmatpush1.msra.mxu0 0.0
    %1365 = vmatprep.subr.mxu0 0.0
    %1366 = vmatpush1.msra.mxu0 0.0
    %1367 = vmatprep.subr.mxu0 0.0
    %1368 = vmatpush1.msra.mxu0 0.0
    %1369 = vmatprep.subr.mxu0 0.0
    %1370 = vmatpush1.msra.mxu0 0.0
    %1371 = vmatprep.subr.mxu0 0.0
    %1372 = vmatpush1.msra.mxu0 0.0
    %1373 = vmatprep.subr.mxu0 0.0
    %1374 = vmatpush1.msra.mxu0 0.0
    %1375 = vmatprep.subr.mxu0 0.0
    %1376 = vmatpush1.msra.mxu0 0.0
    %1377 = vmatprep.mubr.f32.mxu0 0.0
    %1378 = vmatmul.mubr.f32.gmra.mrb[0].mxu0 %v974
    %v1379 = vpop.f32.mrb[0].mxu0
    %v1380 = vadd.f32 0.0, %v1379
    %v1381 = vpop.f32.mrb[0].mxu0
    %1382 = vmatprep.mubr.f32.mxu0 0.0
    %1383 = vmatmul.mubr.f32.gmra.mrb[0].mxu0 %v1063
    %v1384 = vpop.f32.mrb[0].mxu0
    %v1385 = vadd.f32 0.0, %v1384
    %v1386 = vpop.f32.mrb[0].mxu0
    %1387 = vmatprep.mubr.f32.mxu0 0.0
    %1388 = vmatmul.mubr.f32.gmra.mrb[0].mxu0 %v1152
    %v1389 = vpop.f32.mrb[0].mxu0
    %v1390 = vadd.f32 0.0, %v1389
    %v1391 = vpop.f32.mrb[0].mxu0
    %1392 = vmatprep.mubr.f32.mxu0 0.0
    %1393 = vmatmul.mubr.f32.gmra.mrb[0].mxu0 %v1241
    %v1394 = vpop.f32.mrb[0].mxu0
    %v1395 = vadd.f32 0.0, %v1394
    %v1396 = vpop.f32.mrb[0].mxu0
    %1397 = vdwg.mxu0
    %v1398 = vrcp.pop %v1380
    %v1399 = vrcp.pop %v1385
    %v1400 = vrcp.pop %v1390
    %v1401 = vrcp.pop %v1395
    %v1402 = vmul.f32 %v1043, %v1398
    %v1403 = vmul.f32 %v1132, %v1399
    %v1404 = vmul.f32 %v1221, %v1400
    %v1405 = vmul.f32 %v1310, %v1401
    %v1407 = vlaneseq
    %v1408 = vshrl.u32 %v1407, 7
    %v1409 = vsub.s32 0, %v1408
    %v1410 = vrot.slane %v266, %v1409
    %v1413 = vsel %vm296, %v1402, 0
    %v1416 = vsel %vm296, %v1403, 0
    %v1419 = vsel %vm296, %v1404, 0
    %v1422 = vsel %vm296, %v1405, 0
    %1424 = vmatprep.subr.mxu0 0.0
    %1425 = vmatpush1.msra.mxu0 %v262
    %1426 = vmatprep.subr.mxu0 0.0
    %1427 = vmatpush1.msra.mxu0 %v263
    %1428 = vmatprep.subr.mxu0 0.0
    %1429 = vmatpush1.msra.mxu0 %v264
    %1430 = vmatprep.subr.mxu0 0.0
    %1431 = vmatpush1.msra.mxu0 %v265
    %1432 = vmatprep.subr.mxu0 0.0
    %1433 = vmatpush1.msra.mxu0 0.0
    %1434 = vmatprep.subr.mxu0 0.0
    %1435 = vmatpush1.msra.mxu0 0.0
    %1436 = vmatprep.subr.mxu0 0.0
    %1437 = vmatpush1.msra.mxu0 0.0
    %1438 = vmatprep.subr.mxu0 0.0
    %1439 = vmatpush1.msra.mxu0 0.0
    %1440 = vmatprep.subr.mxu0 0.0
    %1441 = vmatpush1.msra.mxu0 0.0
    %1442 = vmatprep.subr.mxu0 0.0
    %1443 = vmatpush1.msra.mxu0 0.0
    %1444 = vmatprep.subr.mxu0 0.0
    %1445 = vmatpush1.msra.mxu0 0.0
    %1446 = vmatprep.subr.mxu0 0.0
    %1447 = vmatpush1.msra.mxu0 0.0
    %1448 = vmatprep.subr.mxu0 0.0
    %1449 = vmatpush1.msra.mxu0 0.0
    %1450 = vmatprep.subr.mxu0 0.0
    %1451 = vmatpush1.msra.mxu0 0.0
    %1452 = vmatprep.subr.mxu0 0.0
    %1453 = vmatpush1.msra.mxu0 0.0
    %1454 = vmatprep.subr.mxu0 0.0
    %1455 = vmatpush1.msra.mxu0 0.0
    %1456 = vmatprep.subr.mxu0 0.0
    %1457 = vmatpush1.msra.mxu0 0.0
    %1458 = vmatprep.subr.mxu0 0.0
    %1459 = vmatpush1.msra.mxu0 0.0
    %1460 = vmatprep.subr.mxu0 0.0
    %1461 = vmatpush1.msra.mxu0 0.0
    %1462 = vmatprep.subr.mxu0 0.0
    %1463 = vmatpush1.msra.mxu0 0.0
    %1464 = vmatprep.subr.mxu0 0.0
    %1465 = vmatpush1.msra.mxu0 0.0
    %1466 = vmatprep.subr.mxu0 0.0
    %1467 = vmatpush1.msra.mxu0 0.0
    %1468 = vmatprep.subr.mxu0 0.0
    %1469 = vmatpush1.msra.mxu0 0.0
    %1470 = vmatprep.subr.mxu0 0.0
    %1471 = vmatpush1.msra.mxu0 0.0
    %1472 = vmatprep.subr.mxu0 0.0
    %1473 = vmatpush1.msra.mxu0 0.0
    %1474 = vmatprep.subr.mxu0 0.0
    %1475 = vmatpush1.msra.mxu0 0.0
    %1476 = vmatprep.subr.mxu0 0.0
    %1477 = vmatpush1.msra.mxu0 0.0
    %1478 = vmatprep.subr.mxu0 0.0
    %1479 = vmatpush1.msra.mxu0 0.0
    %1480 = vmatprep.subr.mxu0 0.0
    %1481 = vmatpush1.msra.mxu0 0.0
    %1482 = vmatprep.subr.mxu0 0.0
    %1483 = vmatpush1.msra.mxu0 0.0
    %1484 = vmatprep.subr.mxu0 0.0
    %1485 = vmatpush1.msra.mxu0 0.0
    %1486 = vmatprep.subr.mxu0 0.0
    %1487 = vmatpush1.msra.mxu0 0.0
    %1488 = vmatprep.mubr.f32.mxu0 0.0
    %1489 = vmatmul.mubr.f32.gmra.mrb[0].mxu0 %v1413
    %v1490 = vpop.f32.mrb[0].mxu0
    %v1491 = vadd.f32 %v1410, %v1490
    %v1492 = vpop.f32.mrb[0].mxu0
    %1493 = vmatprep.mubr.f32.mxu0 0.0
    %1494 = vmatmul.mubr.f32.gmra.mrb[0].mxu0 %v1416
    %v1495 = vpop.f32.mrb[0].mxu0
    %v1496 = vadd.f32 %v1410, %v1495
    %v1497 = vpop.f32.mrb[0].mxu0
    %1498 = vmatprep.mubr.f32.mxu0 0.0
    %1499 = vmatmul.mubr.f32.gmra.mrb[0].mxu0 %v1419
    %v1500 = vpop.f32.mrb[0].mxu0
    %v1501 = vadd.f32 %v1410, %v1500
    %v1502 = vpop.f32.mrb[0].mxu0
    %1503 = vmatprep.mubr.f32.mxu0 0.0
    %1504 = vmatmul.mubr.f32.gmra.mrb[0].mxu0 %v1422
    %v1505 = vpop.f32.mrb[0].mxu0
    %v1506 = vadd.f32 %v1410, %v1505
    %v1507 = vpop.f32.mrb[0].mxu0
    %1508 = vdwg.mxu0
    %v1509 = vadd.f32 %v241, %v1491
    %v1510 = vadd.f32 %v242, %v1496
    %v1511 = vadd.f32 %v243, %v1501
    %v1512 = vadd.f32 %v244, %v1506
    %v1513 = vsel %vm296, %v1509, 0.0
    %1514 = vadd.xlane.f32.xlu0 %v1513
    %v1515 = vpop.xlane.xlu0 %1514
    %v1516 = vsel %vm296, %v1510, 0.0
    %1517 = vadd.xlane.f32.xlu0 %v1516
    %v1518 = vpop.xlane.xlu0 %1517
    %v1519 = vsel %vm296, %v1511, 0.0
    %1520 = vadd.xlane.f32.xlu0 %v1519
    %v1521 = vpop.xlane.xlu0 %1520
    %v1522 = vsel %vm296, %v1512, 0.0
    %1523 = vadd.xlane.f32.xlu0 %v1522
    %v1524 = vpop.xlane.xlu0 %1523
    %v1525 = vmul.f32 %v1515, %v309
    %v1526 = vmul.f32 %v1518, %v309
    %v1527 = vmul.f32 %v1521, %v309
    %v1528 = vmul.f32 %v1524, %v309
    %v1529 = vsub.f32 %v1509, %v1525
    %v1530 = vsub.f32 %v1510, %v1526
    %v1531 = vsub.f32 %v1511, %v1527
    %v1532 = vsub.f32 %v1512, %v1528
    %v1533 = vmul.f32 %v1529, %v1529
    %v1534 = vmul.f32 %v1530, %v1530
    %v1535 = vmul.f32 %v1531, %v1531
    %v1536 = vmul.f32 %v1532, %v1532
    %v1537 = vsel %vm296, %v1533, 0.0
    %1538 = vadd.xlane.f32.xlu0 %v1537
    %v1539 = vpop.xlane.xlu0 %1538
    %v1540 = vsel %vm296, %v1534, 0.0
    %1541 = vadd.xlane.f32.xlu0 %v1540
    %v1542 = vpop.xlane.xlu0 %1541
    %v1543 = vsel %vm296, %v1535, 0.0
    %1544 = vadd.xlane.f32.xlu0 %v1543
    %v1545 = vpop.xlane.xlu0 %1544
    %v1546 = vsel %vm296, %v1536, 0.0
    %1547 = vadd.xlane.f32.xlu0 %v1546
    %v1548 = vpop.xlane.xlu0 %1547
    %v1549 = vmul.f32 %v1539, %v309
    %v1550 = vmul.f32 %v1542, %v309
    %v1551 = vmul.f32 %v1545, %v309
    %v1552 = vmul.f32 %v1548, %v309
    %v1553 = vadd.f32 %v1549, 1e-06
    %v1554 = vadd.f32 %v1550, 1e-06
    %v1555 = vadd.f32 %v1551, 1e-06
    %v1556 = vadd.f32 %v1552, 1e-06
    %v1557 = vrsqrt.pop %v1553
    %v1558 = vrsqrt.pop %v1554
    %v1559 = vrsqrt.pop %v1555
    %v1560 = vrsqrt.pop %v1556
    %v1561 = vmul.f32 %v1529, %v1557
    %v1562 = vmul.f32 %v1530, %v1558
    %v1563 = vmul.f32 %v1531, %v1559
    %v1564 = vmul.f32 %v1532, %v1560
    %v1566 = vlaneseq
    %v1567 = vshrl.u32 %v1566, 7
    %v1568 = vsub.s32 0, %v1567
    %v1569 = vrot.slane %v255, %v1568
    %v1571 = vmul.f32 %v1561, %v1569
    %v1572 = vmul.f32 %v1562, %v1569
    %v1573 = vmul.f32 %v1563, %v1569
    %v1574 = vmul.f32 %v1564, %v1569
    %v1576 = vlaneseq
    %v1577 = vshrl.u32 %v1576, 7
    %v1578 = vsub.s32 0, %v1577
    %v1579 = vrot.slane %v256, %v1578
    %v1581 = vadd.f32 %v1571, %v1579
    %v1582 = vadd.f32 %v1572, %v1579
    %v1583 = vadd.f32 %v1573, %v1579
    %v1584 = vadd.f32 %v1574, %v1579
    %v1586 = vlaneseq
    %v1587 = vshrl.u32 %v1586, 7
    %v1588 = vsub.s32 0, %v1587
    %v1589 = vrot.slane %v271, %v1588
    %v1592 = vsel %vm296, %v1581, 0
    %v1595 = vsel %vm296, %v1582, 0
    %v1598 = vsel %vm296, %v1583, 0
    %v1601 = vsel %vm296, %v1584, 0
    %1603 = vmatprep.subr.mxu0 0.0
    %1604 = vmatpush1.msra.mxu0 %v267
    %1605 = vmatprep.subr.mxu0 0.0
    %1606 = vmatpush1.msra.mxu0 %v268
    %1607 = vmatprep.subr.mxu0 0.0
    %1608 = vmatpush1.msra.mxu0 %v269
    %1609 = vmatprep.subr.mxu0 0.0
    %1610 = vmatpush1.msra.mxu0 %v270
    %1611 = vmatprep.subr.mxu0 0.0
    %1612 = vmatpush1.msra.mxu0 0.0
    %1613 = vmatprep.subr.mxu0 0.0
    %1614 = vmatpush1.msra.mxu0 0.0
    %1615 = vmatprep.subr.mxu0 0.0
    %1616 = vmatpush1.msra.mxu0 0.0
    %1617 = vmatprep.subr.mxu0 0.0
    %1618 = vmatpush1.msra.mxu0 0.0
    %1619 = vmatprep.subr.mxu0 0.0
    %1620 = vmatpush1.msra.mxu0 0.0
    %1621 = vmatprep.subr.mxu0 0.0
    %1622 = vmatpush1.msra.mxu0 0.0
    %1623 = vmatprep.subr.mxu0 0.0
    %1624 = vmatpush1.msra.mxu0 0.0
    %1625 = vmatprep.subr.mxu0 0.0
    %1626 = vmatpush1.msra.mxu0 0.0
    %1627 = vmatprep.subr.mxu0 0.0
    %1628 = vmatpush1.msra.mxu0 0.0
    %1629 = vmatprep.subr.mxu0 0.0
    %1630 = vmatpush1.msra.mxu0 0.0
    %1631 = vmatprep.subr.mxu0 0.0
    %1632 = vmatpush1.msra.mxu0 0.0
    %1633 = vmatprep.subr.mxu0 0.0
    %1634 = vmatpush1.msra.mxu0 0.0
    %1635 = vmatprep.subr.mxu0 0.0
    %1636 = vmatpush1.msra.mxu0 0.0
    %1637 = vmatprep.subr.mxu0 0.0
    %1638 = vmatpush1.msra.mxu0 0.0
    %1639 = vmatprep.subr.mxu0 0.0
    %1640 = vmatpush1.msra.mxu0 0.0
    %1641 = vmatprep.subr.mxu0 0.0
    %1642 = vmatpush1.msra.mxu0 0.0
    %1643 = vmatprep.subr.mxu0 0.0
    %1644 = vmatpush1.msra.mxu0 0.0
    %1645 = vmatprep.subr.mxu0 0.0
    %1646 = vmatpush1.msra.mxu0 0.0
    %1647 = vmatprep.subr.mxu0 0.0
    %1648 = vmatpush1.msra.mxu0 0.0
    %1649 = vmatprep.subr.mxu0 0.0
    %1650 = vmatpush1.msra.mxu0 0.0
    %1651 = vmatprep.subr.mxu0 0.0
    %1652 = vmatpush1.msra.mxu0 0.0
    %1653 = vmatprep.subr.mxu0 0.0
    %1654 = vmatpush1.msra.mxu0 0.0
    %1655 = vmatprep.subr.mxu0 0.0
    %1656 = vmatpush1.msra.mxu0 0.0
    %1657 = vmatprep.subr.mxu0 0.0
    %1658 = vmatpush1.msra.mxu0 0.0
    %1659 = vmatprep.subr.mxu0 0.0
    %1660 = vmatpush1.msra.mxu0 0.0
    %1661 = vmatprep.subr.mxu0 0.0
    %1662 = vmatpush1.msra.mxu0 0.0
    %1663 = vmatprep.subr.mxu0 0.0
    %1664 = vmatpush1.msra.mxu0 0.0
    %1665 = vmatprep.subr.mxu0 0.0
    %1666 = vmatpush1.msra.mxu0 0.0
    %1667 = vmatprep.mubr.f32.mxu0 0.0
    %1668 = vmatmul.mubr.f32.gmra.mrb[0].mxu0 %v1592
    %v1669 = vpop.f32.mrb[0].mxu0
    %v1670 = vadd.f32 %v1589, %v1669
    %v1671 = vpop.f32.mrb[0].mxu0
    %1672 = vmatprep.mubr.f32.mxu0 0.0
    %1673 = vmatmul.mubr.f32.gmra.mrb[0].mxu0 %v1595
    %v1674 = vpop.f32.mrb[0].mxu0
    %v1675 = vadd.f32 %v1589, %v1674
    %v1676 = vpop.f32.mrb[0].mxu0
    %1677 = vmatprep.mubr.f32.mxu0 0.0
    %1678 = vmatmul.mubr.f32.gmra.mrb[0].mxu0 %v1598
    %v1679 = vpop.f32.mrb[0].mxu0
    %v1680 = vadd.f32 %v1589, %v1679
    %v1681 = vpop.f32.mrb[0].mxu0
    %1682 = vmatprep.mubr.f32.mxu0 0.0
    %1683 = vmatmul.mubr.f32.gmra.mrb[0].mxu0 %v1601
    %v1684 = vpop.f32.mrb[0].mxu0
    %v1685 = vadd.f32 %v1589, %v1684
    %v1686 = vpop.f32.mrb[0].mxu0
    %1687 = vdwg.mxu0
    %v1688 = vmul.f32 %v1680, 0.35355338
    %v1689 = vmul.f32 %v1685, 0.35355338
    %v1690 = vmul.f32 %v1670, %v482
    %v1691 = vmul.f32 %v1670, %v484
    %v1692 = vmul.f32 %v1670, %v486
    %v1693 = vmul.f32 %v1670, %v488
    %v1694 = vmul.f32 %v1675, %v482
    %v1695 = vmul.f32 %v1675, %v484
    %v1696 = vmul.f32 %v1675, %v486
    %v1697 = vmul.f32 %v1675, %v488
    %v1698 = vmul.f32 %v1670, %v510
    %v1699 = vmul.f32 %v1670, %v512
    %v1700 = vmul.f32 %v1670, %v514
    %v1701 = vmul.f32 %v1670, %v516
    %v1702 = vmul.f32 %v1675, %v510
    %v1703 = vmul.f32 %v1675, %v512
    %v1704 = vmul.f32 %v1675, %v514
    %v1705 = vmul.f32 %v1675, %v516
    %1710 = vrot.lane.b32.xlu0 %v1690, 96
    %v1711 = vpop.permute.xlu0 %1710
    %1712 = vrot.lane.b32.xlu0 %v1691, 96
    %v1713 = vpop.permute.xlu0 %1712
    %1714 = vrot.lane.b32.xlu0 %v1692, 96
    %v1715 = vpop.permute.xlu0 %1714
    %1716 = vrot.lane.b32.xlu0 %v1693, 96
    %v1717 = vpop.permute.xlu0 %1716
    %v1719 = vsel %vm296, %v1688, 0
    %v1721 = vsel %vm296, %v1711, 0
    %v1723 = vsel %vm296, %v1713, 0
    %v1725 = vsel %vm296, %v1715, 0
    %v1727 = vsel %vm296, %v1717, 0
    %1729 = vmatprep.subr.mxu0 0.0
    %1730 = vmatpush1.xpose.msra.mxu0 %v1721
    %1731 = vmatprep.subr.mxu0 0.0
    %1732 = vmatpush1.xpose.msra.mxu0 %v1723
    %1733 = vmatprep.subr.mxu0 0.0
    %1734 = vmatpush1.xpose.msra.mxu0 %v1725
    %1735 = vmatprep.subr.mxu0 0.0
    %1736 = vmatpush1.xpose.msra.mxu0 %v1727
    %1737 = vmatprep.subr.mxu0 0.0
    %1738 = vmatpush1.xpose.msra.mxu0 0.0
    %1739 = vmatprep.subr.mxu0 0.0
    %1740 = vmatpush1.xpose.msra.mxu0 0.0
    %1741 = vmatprep.subr.mxu0 0.0
    %1742 = vmatpush1.xpose.msra.mxu0 0.0
    %1743 = vmatprep.subr.mxu0 0.0
    %1744 = vmatpush1.xpose.msra.mxu0 0.0
    %1745 = vmatprep.subr.mxu0 0.0
    %1746 = vmatpush1.xpose.msra.mxu0 0.0
    %1747 = vmatprep.subr.mxu0 0.0
    %1748 = vmatpush1.xpose.msra.mxu0 0.0
    %1749 = vmatprep.subr.mxu0 0.0
    %1750 = vmatpush1.xpose.msra.mxu0 0.0
    %1751 = vmatprep.subr.mxu0 0.0
    %1752 = vmatpush1.xpose.msra.mxu0 0.0
    %1753 = vmatprep.subr.mxu0 0.0
    %1754 = vmatpush1.xpose.msra.mxu0 0.0
    %1755 = vmatprep.subr.mxu0 0.0
    %1756 = vmatpush1.xpose.msra.mxu0 0.0
    %1757 = vmatprep.subr.mxu0 0.0
    %1758 = vmatpush1.xpose.msra.mxu0 0.0
    %1759 = vmatprep.subr.mxu0 0.0
    %1760 = vmatpush1.xpose.msra.mxu0 0.0
    %1761 = vmatprep.subr.mxu0 0.0
    %1762 = vmatpush1.xpose.msra.mxu0 0.0
    %1763 = vmatprep.subr.mxu0 0.0
    %1764 = vmatpush1.xpose.msra.mxu0 0.0
    %1765 = vmatprep.subr.mxu0 0.0
    %1766 = vmatpush1.xpose.msra.mxu0 0.0
    %1767 = vmatprep.subr.mxu0 0.0
    %1768 = vmatpush1.xpose.msra.mxu0 0.0
    %1769 = vmatprep.subr.mxu0 0.0
    %1770 = vmatpush1.xpose.msra.mxu0 0.0
    %1771 = vmatprep.subr.mxu0 0.0
    %1772 = vmatpush1.xpose.msra.mxu0 0.0
    %1773 = vmatprep.subr.mxu0 0.0
    %1774 = vmatpush1.xpose.msra.mxu0 0.0
    %1775 = vmatprep.subr.mxu0 0.0
    %1776 = vmatpush1.xpose.msra.mxu0 0.0
    %1777 = vmatprep.subr.mxu0 0.0
    %1778 = vmatpush1.xpose.msra.mxu0 0.0
    %1779 = vmatprep.subr.mxu0 0.0
    %1780 = vmatpush1.xpose.msra.mxu0 0.0
    %1781 = vmatprep.subr.mxu0 0.0
    %1782 = vmatpush1.xpose.msra.mxu0 0.0
    %1783 = vmatprep.subr.mxu0 0.0
    %1784 = vmatpush1.xpose.msra.mxu0 0.0
    %1785 = vmatprep.subr.mxu0 0.0
    %1786 = vmatpush1.xpose.msra.mxu0 0.0
    %1787 = vmatprep.subr.mxu0 0.0
    %1788 = vmatpush1.xpose.msra.mxu0 0.0
    %1789 = vmatprep.subr.mxu0 0.0
    %1790 = vmatpush1.xpose.msra.mxu0 0.0
    %1791 = vmatprep.subr.mxu0 0.0
    %1792 = vmatpush1.xpose.msra.mxu0 0.0
    %1793 = vmatprep.mubr.f32.mxu0 0.0
    %1794 = vmatmul.mubr.f32.gmra.mrb[0].mxu0 %v1719
    %v1795 = vpop.f32.mrb[0].mxu0
    %v1796 = vadd.f32 %v544, %v1795
    %v1797 = vpop.f32.mrb[0].mxu0
    %1798 = vdwg.mxu0
    %1803 = vrot.lane.b32.xlu0 %v1694, 96
    %v1804 = vpop.permute.xlu0 %1803
    %1805 = vrot.lane.b32.xlu0 %v1695, 96
    %v1806 = vpop.permute.xlu0 %1805
    %1807 = vrot.lane.b32.xlu0 %v1696, 96
    %v1808 = vpop.permute.xlu0 %1807
    %1809 = vrot.lane.b32.xlu0 %v1697, 96
    %v1810 = vpop.permute.xlu0 %1809
    %v1812 = vsel %vm296, %v1689, 0
    %v1814 = vsel %vm296, %v1804, 0
    %v1816 = vsel %vm296, %v1806, 0
    %v1818 = vsel %vm296, %v1808, 0
    %v1820 = vsel %vm296, %v1810, 0
    %1822 = vmatprep.subr.mxu0 0.0
    %1823 = vmatpush1.xpose.msra.mxu0 %v1814
    %1824 = vmatprep.subr.mxu0 0.0
    %1825 = vmatpush1.xpose.msra.mxu0 %v1816
    %1826 = vmatprep.subr.mxu0 0.0
    %1827 = vmatpush1.xpose.msra.mxu0 %v1818
    %1828 = vmatprep.subr.mxu0 0.0
    %1829 = vmatpush1.xpose.msra.mxu0 %v1820
    %1830 = vmatprep.subr.mxu0 0.0
    %1831 = vmatpush1.xpose.msra.mxu0 0.0
    %1832 = vmatprep.subr.mxu0 0.0
    %1833 = vmatpush1.xpose.msra.mxu0 0.0
    %1834 = vmatprep.subr.mxu0 0.0
    %1835 = vmatpush1.xpose.msra.mxu0 0.0
    %1836 = vmatprep.subr.mxu0 0.0
    %1837 = vmatpush1.xpose.msra.mxu0 0.0
    %1838 = vmatprep.subr.mxu0 0.0
    %1839 = vmatpush1.xpose.msra.mxu0 0.0
    %1840 = vmatprep.subr.mxu0 0.0
    %1841 = vmatpush1.xpose.msra.mxu0 0.0
    %1842 = vmatprep.subr.mxu0 0.0
    %1843 = vmatpush1.xpose.msra.mxu0 0.0
    %1844 = vmatprep.subr.mxu0 0.0
    %1845 = vmatpush1.xpose.msra.mxu0 0.0
    %1846 = vmatprep.subr.mxu0 0.0
    %1847 = vmatpush1.xpose.msra.mxu0 0.0
    %1848 = vmatprep.subr.mxu0 0.0
    %1849 = vmatpush1.xpose.msra.mxu0 0.0
    %1850 = vmatprep.subr.mxu0 0.0
    %1851 = vmatpush1.xpose.msra.mxu0 0.0
    %1852 = vmatprep.subr.mxu0 0.0
    %1853 = vmatpush1.xpose.msra.mxu0 0.0
    %1854 = vmatprep.subr.mxu0 0.0
    %1855 = vmatpush1.xpose.msra.mxu0 0.0
    %1856 = vmatprep.subr.mxu0 0.0
    %1857 = vmatpush1.xpose.msra.mxu0 0.0
    %1858 = vmatprep.subr.mxu0 0.0
    %1859 = vmatpush1.xpose.msra.mxu0 0.0
    %1860 = vmatprep.subr.mxu0 0.0
    %1861 = vmatpush1.xpose.msra.mxu0 0.0
    %1862 = vmatprep.subr.mxu0 0.0
    %1863 = vmatpush1.xpose.msra.mxu0 0.0
    %1864 = vmatprep.subr.mxu0 0.0
    %1865 = vmatpush1.xpose.msra.mxu0 0.0
    %1866 = vmatprep.subr.mxu0 0.0
    %1867 = vmatpush1.xpose.msra.mxu0 0.0
    %1868 = vmatprep.subr.mxu0 0.0
    %1869 = vmatpush1.xpose.msra.mxu0 0.0
    %1870 = vmatprep.subr.mxu0 0.0
    %1871 = vmatpush1.xpose.msra.mxu0 0.0
    %1872 = vmatprep.subr.mxu0 0.0
    %1873 = vmatpush1.xpose.msra.mxu0 0.0
    %1874 = vmatprep.subr.mxu0 0.0
    %1875 = vmatpush1.xpose.msra.mxu0 0.0
    %1876 = vmatprep.subr.mxu0 0.0
    %1877 = vmatpush1.xpose.msra.mxu0 0.0
    %1878 = vmatprep.subr.mxu0 0.0
    %1879 = vmatpush1.xpose.msra.mxu0 0.0
    %1880 = vmatprep.subr.mxu0 0.0
    %1881 = vmatpush1.xpose.msra.mxu0 0.0
    %1882 = vmatprep.subr.mxu0 0.0
    %1883 = vmatpush1.xpose.msra.mxu0 0.0
    %1884 = vmatprep.subr.mxu0 0.0
    %1885 = vmatpush1.xpose.msra.mxu0 0.0
    %1886 = vmatprep.mubr.f32.mxu0 0.0
    %1887 = vmatmul.mubr.f32.gmra.mrb[0].mxu0 %v1812
    %v1888 = vpop.f32.mrb[0].mxu0
    %v1889 = vadd.f32 %v548, %v1888
    %v1890 = vpop.f32.mrb[0].mxu0
    %1891 = vdwg.mxu0
    %v1892 = vsel %vm296, %v1796, -inf
    %1893 = vmax.xlane.f32.xlu0 %v1892
    %v1894 = vpop.xlane.xlu0 %1893
    %v1895 = vsel %vm296, %v1889, -inf
    %1896 = vmax.xlane.f32.xlu0 %v1895
    %v1897 = vpop.xlane.xlu0 %1896
    %v1898 = vsub.f32 %v1796, %v1894
    %v1899 = vsub.f32 %v1889, %v1897
    %v1900 = vmul.f32 %v1898, 1.442695
    %v1901 = vpow.pop %v1900
    %v1902 = vmul.f32 %v1899, 1.442695
    %v1903 = vpow.pop %v1902
    %1908 = vrot.lane.b32.xlu0 %v1698, 64
    %v1909 = vpop.permute.xlu0 %1908
    %1910 = vrot.lane.b32.xlu0 %v1699, 64
    %v1911 = vpop.permute.xlu0 %1910
    %1912 = vrot.lane.b32.xlu0 %v1700, 64
    %v1913 = vpop.permute.xlu0 %1912
    %1914 = vrot.lane.b32.xlu0 %v1701, 64
    %v1915 = vpop.permute.xlu0 %1914
    %v1921 = vsel %vm296, %v1901, 0
    %1923 = vmatprep.subr.mxu0 0.0
    %1924 = vmatpush1.msra.mxu0 %v1909
    %1925 = vmatprep.subr.mxu0 0.0
    %1926 = vmatpush1.msra.mxu0 %v1911
    %1927 = vmatprep.subr.mxu0 0.0
    %1928 = vmatpush1.msra.mxu0 %v1913
    %1929 = vmatprep.subr.mxu0 0.0
    %1930 = vmatpush1.msra.mxu0 %v1915
    %1931 = vmatprep.subr.mxu0 0.0
    %1932 = vmatpush1.msra.mxu0 0.0
    %1933 = vmatprep.subr.mxu0 0.0
    %1934 = vmatpush1.msra.mxu0 0.0
    %1935 = vmatprep.subr.mxu0 0.0
    %1936 = vmatpush1.msra.mxu0 0.0
    %1937 = vmatprep.subr.mxu0 0.0
    %1938 = vmatpush1.msra.mxu0 0.0
    %1939 = vmatprep.subr.mxu0 0.0
    %1940 = vmatpush1.msra.mxu0 0.0
    %1941 = vmatprep.subr.mxu0 0.0
    %1942 = vmatpush1.msra.mxu0 0.0
    %1943 = vmatprep.subr.mxu0 0.0
    %1944 = vmatpush1.msra.mxu0 0.0
    %1945 = vmatprep.subr.mxu0 0.0
    %1946 = vmatpush1.msra.mxu0 0.0
    %1947 = vmatprep.subr.mxu0 0.0
    %1948 = vmatpush1.msra.mxu0 0.0
    %1949 = vmatprep.subr.mxu0 0.0
    %1950 = vmatpush1.msra.mxu0 0.0
    %1951 = vmatprep.subr.mxu0 0.0
    %1952 = vmatpush1.msra.mxu0 0.0
    %1953 = vmatprep.subr.mxu0 0.0
    %1954 = vmatpush1.msra.mxu0 0.0
    %1955 = vmatprep.subr.mxu0 0.0
    %1956 = vmatpush1.msra.mxu0 0.0
    %1957 = vmatprep.subr.mxu0 0.0
    %1958 = vmatpush1.msra.mxu0 0.0
    %1959 = vmatprep.subr.mxu0 0.0
    %1960 = vmatpush1.msra.mxu0 0.0
    %1961 = vmatprep.subr.mxu0 0.0
    %1962 = vmatpush1.msra.mxu0 0.0
    %1963 = vmatprep.subr.mxu0 0.0
    %1964 = vmatpush1.msra.mxu0 0.0
    %1965 = vmatprep.subr.mxu0 0.0
    %1966 = vmatpush1.msra.mxu0 0.0
    %1967 = vmatprep.subr.mxu0 0.0
    %1968 = vmatpush1.msra.mxu0 0.0
    %1969 = vmatprep.subr.mxu0 0.0
    %1970 = vmatpush1.msra.mxu0 0.0
    %1971 = vmatprep.subr.mxu0 0.0
    %1972 = vmatpush1.msra.mxu0 0.0
    %1973 = vmatprep.subr.mxu0 0.0
    %1974 = vmatpush1.msra.mxu0 0.0
    %1975 = vmatprep.subr.mxu0 0.0
    %1976 = vmatpush1.msra.mxu0 0.0
    %1977 = vmatprep.subr.mxu0 0.0
    %1978 = vmatpush1.msra.mxu0 0.0
    %1979 = vmatprep.subr.mxu0 0.0
    %1980 = vmatpush1.msra.mxu0 0.0
    %1981 = vmatprep.subr.mxu0 0.0
    %1982 = vmatpush1.msra.mxu0 0.0
    %1983 = vmatprep.subr.mxu0 0.0
    %1984 = vmatpush1.msra.mxu0 0.0
    %1985 = vmatprep.subr.mxu0 0.0
    %1986 = vmatpush1.msra.mxu0 0.0
    %1987 = vmatprep.mubr.f32.mxu0 0.0
    %1988 = vmatmul.mubr.f32.gmra.mrb[0].mxu0 %v1921
    %v1989 = vpop.f32.mrb[0].mxu0
    %v1990 = vadd.f32 0.0, %v1989
    %v1991 = vpop.f32.mrb[0].mxu0
    %1992 = vdwg.mxu0
    %1997 = vrot.lane.b32.xlu0 %v1702, 64
    %v1998 = vpop.permute.xlu0 %1997
    %1999 = vrot.lane.b32.xlu0 %v1703, 64
    %v2000 = vpop.permute.xlu0 %1999
    %2001 = vrot.lane.b32.xlu0 %v1704, 64
    %v2002 = vpop.permute.xlu0 %2001
    %2003 = vrot.lane.b32.xlu0 %v1705, 64
    %v2004 = vpop.permute.xlu0 %2003
    %v2010 = vsel %vm296, %v1903, 0
    %2012 = vmatprep.subr.mxu0 0.0
    %2013 = vmatpush1.msra.mxu0 %v1998
    %2014 = vmatprep.subr.mxu0 0.0
    %2015 = vmatpush1.msra.mxu0 %v2000
    %2016 = vmatprep.subr.mxu0 0.0
    %2017 = vmatpush1.msra.mxu0 %v2002
    %2018 = vmatprep.subr.mxu0 0.0
    %2019 = vmatpush1.msra.mxu0 %v2004
    %2020 = vmatprep.subr.mxu0 0.0
    %2021 = vmatpush1.msra.mxu0 0.0
    %2022 = vmatprep.subr.mxu0 0.0
    %2023 = vmatpush1.msra.mxu0 0.0
    %2024 = vmatprep.subr.mxu0 0.0
    %2025 = vmatpush1.msra.mxu0 0.0
    %2026 = vmatprep.subr.mxu0 0.0
    %2027 = vmatpush1.msra.mxu0 0.0
    %2028 = vmatprep.subr.mxu0 0.0
    %2029 = vmatpush1.msra.mxu0 0.0
    %2030 = vmatprep.subr.mxu0 0.0
    %2031 = vmatpush1.msra.mxu0 0.0
    %2032 = vmatprep.subr.mxu0 0.0
    %2033 = vmatpush1.msra.mxu0 0.0
    %2034 = vmatprep.subr.mxu0 0.0
    %2035 = vmatpush1.msra.mxu0 0.0
    %2036 = vmatprep.subr.mxu0 0.0
    %2037 = vmatpush1.msra.mxu0 0.0
    %2038 = vmatprep.subr.mxu0 0.0
    %2039 = vmatpush1.msra.mxu0 0.0
    %2040 = vmatprep.subr.mxu0 0.0
    %2041 = vmatpush1.msra.mxu0 0.0
    %2042 = vmatprep.subr.mxu0 0.0
    %2043 = vmatpush1.msra.mxu0 0.0
    %2044 = vmatprep.subr.mxu0 0.0
    %2045 = vmatpush1.msra.mxu0 0.0
    %2046 = vmatprep.subr.mxu0 0.0
    %2047 = vmatpush1.msra.mxu0 0.0
    %2048 = vmatprep.subr.mxu0 0.0
    %2049 = vmatpush1.msra.mxu0 0.0
    %2050 = vmatprep.subr.mxu0 0.0
    %2051 = vmatpush1.msra.mxu0 0.0
    %2052 = vmatprep.subr.mxu0 0.0
    %2053 = vmatpush1.msra.mxu0 0.0
    %2054 = vmatprep.subr.mxu0 0.0
    %2055 = vmatpush1.msra.mxu0 0.0
    %2056 = vmatprep.subr.mxu0 0.0
    %2057 = vmatpush1.msra.mxu0 0.0
    %2058 = vmatprep.subr.mxu0 0.0
    %2059 = vmatpush1.msra.mxu0 0.0
    %2060 = vmatprep.subr.mxu0 0.0
    %2061 = vmatpush1.msra.mxu0 0.0
    %2062 = vmatprep.subr.mxu0 0.0
    %2063 = vmatpush1.msra.mxu0 0.0
    %2064 = vmatprep.subr.mxu0 0.0
    %2065 = vmatpush1.msra.mxu0 0.0
    %2066 = vmatprep.subr.mxu0 0.0
    %2067 = vmatpush1.msra.mxu0 0.0
    %2068 = vmatprep.subr.mxu0 0.0
    %2069 = vmatpush1.msra.mxu0 0.0
    %2070 = vmatprep.subr.mxu0 0.0
    %2071 = vmatpush1.msra.mxu0 0.0
    %2072 = vmatprep.subr.mxu0 0.0
    %2073 = vmatpush1.msra.mxu0 0.0
    %2074 = vmatprep.subr.mxu0 0.0
    %2075 = vmatpush1.msra.mxu0 0.0
    %2076 = vmatprep.mubr.f32.mxu0 0.0
    %2077 = vmatmul.mubr.f32.gmra.mrb[0].mxu0 %v2010
    %v2078 = vpop.f32.mrb[0].mxu0
    %v2079 = vadd.f32 0.0, %v2078
    %v2080 = vpop.f32.mrb[0].mxu0
    %2081 = vdwg.mxu0
    %2082 = vmatprep.subr.mxu0 0.0
    %2083 = vmatpush1.msra.mxu0 %v249
    %2084 = vmatprep.subr.mxu0 0.0
    %2085 = vmatpush1.msra.mxu0 %v250
    %2086 = vmatprep.subr.mxu0 0.0
    %2087 = vmatpush1.msra.mxu0 %v251
    %2088 = vmatprep.subr.mxu0 0.0
    %2089 = vmatpush1.msra.mxu0 %v252
    %2090 = vmatprep.subr.mxu0 0.0
    %2091 = vmatpush1.msra.mxu0 0.0
    %2092 = vmatprep.subr.mxu0 0.0
    %2093 = vmatpush1.msra.mxu0 0.0
    %2094 = vmatprep.subr.mxu0 0.0
    %2095 = vmatpush1.msra.mxu0 0.0
    %2096 = vmatprep.subr.mxu0 0.0
    %2097 = vmatpush1.msra.mxu0 0.0
    %2098 = vmatprep.subr.mxu0 0.0
    %2099 = vmatpush1.msra.mxu0 0.0
    %2100 = vmatprep.subr.mxu0 0.0
    %2101 = vmatpush1.msra.mxu0 0.0
    %2102 = vmatprep.subr.mxu0 0.0
    %2103 = vmatpush1.msra.mxu0 0.0
    %2104 = vmatprep.subr.mxu0 0.0
    %2105 = vmatpush1.msra.mxu0 0.0
    %2106 = vmatprep.subr.mxu0 0.0
    %2107 = vmatpush1.msra.mxu0 0.0
    %2108 = vmatprep.subr.mxu0 0.0
    %2109 = vmatpush1.msra.mxu0 0.0
    %2110 = vmatprep.subr.mxu0 0.0
    %2111 = vmatpush1.msra.mxu0 0.0
    %2112 = vmatprep.subr.mxu0 0.0
    %2113 = vmatpush1.msra.mxu0 0.0
    %2114 = vmatprep.subr.mxu0 0.0
    %2115 = vmatpush1.msra.mxu0 0.0
    %2116 = vmatprep.subr.mxu0 0.0
    %2117 = vmatpush1.msra.mxu0 0.0
    %2118 = vmatprep.subr.mxu0 0.0
    %2119 = vmatpush1.msra.mxu0 0.0
    %2120 = vmatprep.subr.mxu0 0.0
    %2121 = vmatpush1.msra.mxu0 0.0
    %2122 = vmatprep.subr.mxu0 0.0
    %2123 = vmatpush1.msra.mxu0 0.0
    %2124 = vmatprep.subr.mxu0 0.0
    %2125 = vmatpush1.msra.mxu0 0.0
    %2126 = vmatprep.subr.mxu0 0.0
    %2127 = vmatpush1.msra.mxu0 0.0
    %2128 = vmatprep.subr.mxu0 0.0
    %2129 = vmatpush1.msra.mxu0 0.0
    %2130 = vmatprep.subr.mxu0 0.0
    %2131 = vmatpush1.msra.mxu0 0.0
    %2132 = vmatprep.subr.mxu0 0.0
    %2133 = vmatpush1.msra.mxu0 0.0
    %2134 = vmatprep.subr.mxu0 0.0
    %2135 = vmatpush1.msra.mxu0 0.0
    %2136 = vmatprep.subr.mxu0 0.0
    %2137 = vmatpush1.msra.mxu0 0.0
    %2138 = vmatprep.subr.mxu0 0.0
    %2139 = vmatpush1.msra.mxu0 0.0
    %2140 = vmatprep.subr.mxu0 0.0
    %2141 = vmatpush1.msra.mxu0 0.0
    %2142 = vmatprep.subr.mxu0 0.0
    %2143 = vmatpush1.msra.mxu0 0.0
    %2144 = vmatprep.subr.mxu0 0.0
    %2145 = vmatpush1.msra.mxu0 0.0
    %2146 = vmatprep.mubr.f32.mxu0 0.0
    %2147 = vmatmul.mubr.f32.gmra.mrb[0].mxu0 %v1921
    %v2148 = vpop.f32.mrb[0].mxu0
    %v2149 = vadd.f32 0.0, %v2148
    %v2150 = vpop.f32.mrb[0].mxu0
    %2151 = vmatprep.mubr.f32.mxu0 0.0
    %2152 = vmatmul.mubr.f32.gmra.mrb[0].mxu0 %v2010
    %v2153 = vpop.f32.mrb[0].mxu0
    %v2154 = vadd.f32 0.0, %v2153
    %v2155 = vpop.f32.mrb[0].mxu0
    %2156 = vdwg.mxu0
    %v2157 = vrcp.pop %v2149
    %v2158 = vrcp.pop %v2154
    %v2159 = vmul.f32 %v1990, %v2157
    %v2160 = vmul.f32 %v2079, %v2158
    %v2162 = vlaneseq
    %v2163 = vshrl.u32 %v2162, 7
    %v2164 = vsub.s32 0, %v2163
    %v2165 = vrot.slane %v281, %v2164
    %v2168 = vsel %vm296, %v2159, 0
    %v2171 = vsel %vm296, %v2160, 0
    %2173 = vmatprep.subr.mxu0 0.0
    %2174 = vmatpush1.msra.mxu0 %v277
    %2175 = vmatprep.subr.mxu0 0.0
    %2176 = vmatpush1.msra.mxu0 %v278
    %2177 = vmatprep.subr.mxu0 0.0
    %2178 = vmatpush1.msra.mxu0 %v279
    %2179 = vmatprep.subr.mxu0 0.0
    %2180 = vmatpush1.msra.mxu0 %v280
    %2181 = vmatprep.subr.mxu0 0.0
    %2182 = vmatpush1.msra.mxu0 0.0
    %2183 = vmatprep.subr.mxu0 0.0
    %2184 = vmatpush1.msra.mxu0 0.0
    %2185 = vmatprep.subr.mxu0 0.0
    %2186 = vmatpush1.msra.mxu0 0.0
    %2187 = vmatprep.subr.mxu0 0.0
    %2188 = vmatpush1.msra.mxu0 0.0
    %2189 = vmatprep.subr.mxu0 0.0
    %2190 = vmatpush1.msra.mxu0 0.0
    %2191 = vmatprep.subr.mxu0 0.0
    %2192 = vmatpush1.msra.mxu0 0.0
    %2193 = vmatprep.subr.mxu0 0.0
    %2194 = vmatpush1.msra.mxu0 0.0
    %2195 = vmatprep.subr.mxu0 0.0
    %2196 = vmatpush1.msra.mxu0 0.0
    %2197 = vmatprep.subr.mxu0 0.0
    %2198 = vmatpush1.msra.mxu0 0.0
    %2199 = vmatprep.subr.mxu0 0.0
    %2200 = vmatpush1.msra.mxu0 0.0
    %2201 = vmatprep.subr.mxu0 0.0
    %2202 = vmatpush1.msra.mxu0 0.0
    %2203 = vmatprep.subr.mxu0 0.0
    %2204 = vmatpush1.msra.mxu0 0.0
    %2205 = vmatprep.subr.mxu0 0.0
    %2206 = vmatpush1.msra.mxu0 0.0
    %2207 = vmatprep.subr.mxu0 0.0
    %2208 = vmatpush1.msra.mxu0 0.0
    %2209 = vmatprep.subr.mxu0 0.0
    %2210 = vmatpush1.msra.mxu0 0.0
    %2211 = vmatprep.subr.mxu0 0.0
    %2212 = vmatpush1.msra.mxu0 0.0
    %2213 = vmatprep.subr.mxu0 0.0
    %2214 = vmatpush1.msra.mxu0 0.0
    %2215 = vmatprep.subr.mxu0 0.0
    %2216 = vmatpush1.msra.mxu0 0.0
    %2217 = vmatprep.subr.mxu0 0.0
    %2218 = vmatpush1.msra.mxu0 0.0
    %2219 = vmatprep.subr.mxu0 0.0
    %2220 = vmatpush1.msra.mxu0 0.0
    %2221 = vmatprep.subr.mxu0 0.0
    %2222 = vmatpush1.msra.mxu0 0.0
    %2223 = vmatprep.subr.mxu0 0.0
    %2224 = vmatpush1.msra.mxu0 0.0
    %2225 = vmatprep.subr.mxu0 0.0
    %2226 = vmatpush1.msra.mxu0 0.0
    %2227 = vmatprep.subr.mxu0 0.0
    %2228 = vmatpush1.msra.mxu0 0.0
    %2229 = vmatprep.subr.mxu0 0.0
    %2230 = vmatpush1.msra.mxu0 0.0
    %2231 = vmatprep.subr.mxu0 0.0
    %2232 = vmatpush1.msra.mxu0 0.0
    %2233 = vmatprep.subr.mxu0 0.0
    %2234 = vmatpush1.msra.mxu0 0.0
    %2235 = vmatprep.subr.mxu0 0.0
    %2236 = vmatpush1.msra.mxu0 0.0
    %2237 = vmatprep.mubr.f32.mxu0 0.0
    %2238 = vmatmul.mubr.f32.gmra.mrb[0].mxu0 %v2168
    %v2239 = vpop.f32.mrb[0].mxu0
    %v2240 = vadd.f32 %v2165, %v2239
    %v2241 = vpop.f32.mrb[0].mxu0
    %2242 = vmatprep.mubr.f32.mxu0 0.0
    %2243 = vmatmul.mubr.f32.gmra.mrb[0].mxu0 %v2171
    %v2244 = vpop.f32.mrb[0].mxu0
    %v2245 = vadd.f32 %v2165, %v2244
    %v2246 = vpop.f32.mrb[0].mxu0
    %2247 = vdwg.mxu0
    %v2248 = vadd.f32 %v1511, %v2240
    %v2249 = vadd.f32 %v1512, %v2245
    %v2250 = vsel %vm296, %v2248, 0.0
    %2251 = vadd.xlane.f32.xlu0 %v2250
    %v2252 = vpop.xlane.xlu0 %2251
    %v2253 = vsel %vm296, %v2249, 0.0
    %2254 = vadd.xlane.f32.xlu0 %v2253
    %v2255 = vpop.xlane.xlu0 %2254
    %v2256 = vmul.f32 %v2252, %v309
    %v2257 = vmul.f32 %v2255, %v309
    %v2258 = vsub.f32 %v2248, %v2256
    %v2259 = vsub.f32 %v2249, %v2257
    %v2260 = vmul.f32 %v2258, %v2258
    %v2261 = vmul.f32 %v2259, %v2259
    %v2262 = vsel %vm296, %v2260, 0.0
    %2263 = vadd.xlane.f32.xlu0 %v2262
    %v2264 = vpop.xlane.xlu0 %2263
    %v2265 = vsel %vm296, %v2261, 0.0
    %2266 = vadd.xlane.f32.xlu0 %v2265
    %v2267 = vpop.xlane.xlu0 %2266
    %v2268 = vmul.f32 %v2264, %v309
    %v2269 = vmul.f32 %v2267, %v309
    %v2270 = vadd.f32 %v2268, 1e-06
    %v2271 = vadd.f32 %v2269, 1e-06
    %v2272 = vrsqrt.pop %v2270
    %v2273 = vrsqrt.pop %v2271
    %v2274 = vmul.f32 %v2258, %v2272
    %v2275 = vmul.f32 %v2259, %v2273
    %v2276 = vmul.f32 %v2274, %v1569
    %v2277 = vmul.f32 %v2275, %v1569
    %v2278 = vadd.f32 %v2276, %v1579
    %v2279 = vadd.f32 %v2277, %v1579
    %v2281 = vlaneseq
    %v2282 = vshrl.u32 %v2281, 7
    %v2283 = vsub.s32 0, %v2282
    %v2284 = vrot.slane %v276, %v2283
    %v2287 = vsel %vm296, %v2278, 0
    %v2290 = vsel %vm296, %v2279, 0
    %2292 = vmatprep.subr.mxu0 0.0
    %2293 = vmatpush1.msra.mxu0 %v272
    %2294 = vmatprep.subr.mxu0 0.0
    %2295 = vmatpush1.msra.mxu0 %v273
    %2296 = vmatprep.subr.mxu0 0.0
    %2297 = vmatpush1.msra.mxu0 %v274
    %2298 = vmatprep.subr.mxu0 0.0
    %2299 = vmatpush1.msra.mxu0 %v275
    %2300 = vmatprep.subr.mxu0 0.0
    %2301 = vmatpush1.msra.mxu0 0.0
    %2302 = vmatprep.subr.mxu0 0.0
    %2303 = vmatpush1.msra.mxu0 0.0
    %2304 = vmatprep.subr.mxu0 0.0
    %2305 = vmatpush1.msra.mxu0 0.0
    %2306 = vmatprep.subr.mxu0 0.0
    %2307 = vmatpush1.msra.mxu0 0.0
    %2308 = vmatprep.subr.mxu0 0.0
    %2309 = vmatpush1.msra.mxu0 0.0
    %2310 = vmatprep.subr.mxu0 0.0
    %2311 = vmatpush1.msra.mxu0 0.0
    %2312 = vmatprep.subr.mxu0 0.0
    %2313 = vmatpush1.msra.mxu0 0.0
    %2314 = vmatprep.subr.mxu0 0.0
    %2315 = vmatpush1.msra.mxu0 0.0
    %2316 = vmatprep.subr.mxu0 0.0
    %2317 = vmatpush1.msra.mxu0 0.0
    %2318 = vmatprep.subr.mxu0 0.0
    %2319 = vmatpush1.msra.mxu0 0.0
    %2320 = vmatprep.subr.mxu0 0.0
    %2321 = vmatpush1.msra.mxu0 0.0
    %2322 = vmatprep.subr.mxu0 0.0
    %2323 = vmatpush1.msra.mxu0 0.0
    %2324 = vmatprep.subr.mxu0 0.0
    %2325 = vmatpush1.msra.mxu0 0.0
    %2326 = vmatprep.subr.mxu0 0.0
    %2327 = vmatpush1.msra.mxu0 0.0
    %2328 = vmatprep.subr.mxu0 0.0
    %2329 = vmatpush1.msra.mxu0 0.0
    %2330 = vmatprep.subr.mxu0 0.0
    %2331 = vmatpush1.msra.mxu0 0.0
    %2332 = vmatprep.subr.mxu0 0.0
    %2333 = vmatpush1.msra.mxu0 0.0
    %2334 = vmatprep.subr.mxu0 0.0
    %2335 = vmatpush1.msra.mxu0 0.0
    %2336 = vmatprep.subr.mxu0 0.0
    %2337 = vmatpush1.msra.mxu0 0.0
    %2338 = vmatprep.subr.mxu0 0.0
    %2339 = vmatpush1.msra.mxu0 0.0
    %2340 = vmatprep.subr.mxu0 0.0
    %2341 = vmatpush1.msra.mxu0 0.0
    %2342 = vmatprep.subr.mxu0 0.0
    %2343 = vmatpush1.msra.mxu0 0.0
    %2344 = vmatprep.subr.mxu0 0.0
    %2345 = vmatpush1.msra.mxu0 0.0
    %2346 = vmatprep.subr.mxu0 0.0
    %2347 = vmatpush1.msra.mxu0 0.0
    %2348 = vmatprep.subr.mxu0 0.0
    %2349 = vmatpush1.msra.mxu0 0.0
    %2350 = vmatprep.subr.mxu0 0.0
    %2351 = vmatpush1.msra.mxu0 0.0
    %2352 = vmatprep.subr.mxu0 0.0
    %2353 = vmatpush1.msra.mxu0 0.0
    %2354 = vmatprep.subr.mxu0 0.0
    %2355 = vmatpush1.msra.mxu0 0.0
    %2356 = vmatprep.mubr.f32.mxu0 0.0
    %2357 = vmatmul.mubr.f32.gmra.mrb[0].mxu0 %v2287
    %v2358 = vpop.f32.mrb[0].mxu0
    %v2359 = vadd.f32 %v2284, %v2358
    %v2360 = vpop.f32.mrb[0].mxu0
    %2361 = vmatprep.mubr.f32.mxu0 0.0
    %2362 = vmatmul.mubr.f32.gmra.mrb[0].mxu0 %v2290
    %v2363 = vpop.f32.mrb[0].mxu0
    %v2364 = vadd.f32 %v2284, %v2363
    %v2365 = vpop.f32.mrb[0].mxu0
    %2366 = vdwg.mxu0
    %v2367 = vmul.f32 %v1670, 0.35355338
    %v2368 = vmul.f32 %v1675, 0.35355338
    %v2369 = vmul.f32 %v2359, %v249
    %v2370 = vmul.f32 %v2359, %v250
    %v2371 = vmul.f32 %v2359, %v251
    %v2372 = vmul.f32 %v2359, %v252
    %v2373 = vmul.f32 %v2364, %v249
    %v2374 = vmul.f32 %v2364, %v250
    %v2375 = vmul.f32 %v2364, %v251
    %v2376 = vmul.f32 %v2364, %v252
    %v2377 = vmul.f32 %v2359, %v482
    %v2378 = vmul.f32 %v2359, %v484
    %v2379 = vmul.f32 %v2359, %v486
    %v2380 = vmul.f32 %v2359, %v488
    %v2381 = vmul.f32 %v2364, %v482
    %v2382 = vmul.f32 %v2364, %v484
    %v2383 = vmul.f32 %v2364, %v486
    %v2384 = vmul.f32 %v2364, %v488
    %v2386 = vsel %vm296, %v2367, 0
    %v2389 = vsel %vm296, %v2369, 0
    %v2392 = vsel %vm296, %v2370, 0
    %v2395 = vsel %vm296, %v2371, 0
    %v2398 = vsel %vm296, %v2372, 0
    %2400 = vmatprep.subr.mxu0 0.0
    %2401 = vmatpush1.xpose.msra.mxu0 %v2389
    %2402 = vmatprep.subr.mxu0 0.0
    %2403 = vmatpush1.xpose.msra.mxu0 %v2392
    %2404 = vmatprep.subr.mxu0 0.0
    %2405 = vmatpush1.xpose.msra.mxu0 %v2395
    %2406 = vmatprep.subr.mxu0 0.0
    %2407 = vmatpush1.xpose.msra.mxu0 %v2398
    %2408 = vmatprep.subr.mxu0 0.0
    %2409 = vmatpush1.xpose.msra.mxu0 0.0
    %2410 = vmatprep.subr.mxu0 0.0
    %2411 = vmatpush1.xpose.msra.mxu0 0.0
    %2412 = vmatprep.subr.mxu0 0.0
    %2413 = vmatpush1.xpose.msra.mxu0 0.0
    %2414 = vmatprep.subr.mxu0 0.0
    %2415 = vmatpush1.xpose.msra.mxu0 0.0
    %2416 = vmatprep.subr.mxu0 0.0
    %2417 = vmatpush1.xpose.msra.mxu0 0.0
    %2418 = vmatprep.subr.mxu0 0.0
    %2419 = vmatpush1.xpose.msra.mxu0 0.0
    %2420 = vmatprep.subr.mxu0 0.0
    %2421 = vmatpush1.xpose.msra.mxu0 0.0
    %2422 = vmatprep.subr.mxu0 0.0
    %2423 = vmatpush1.xpose.msra.mxu0 0.0
    %2424 = vmatprep.subr.mxu0 0.0
    %2425 = vmatpush1.xpose.msra.mxu0 0.0
    %2426 = vmatprep.subr.mxu0 0.0
    %2427 = vmatpush1.xpose.msra.mxu0 0.0
    %2428 = vmatprep.subr.mxu0 0.0
    %2429 = vmatpush1.xpose.msra.mxu0 0.0
    %2430 = vmatprep.subr.mxu0 0.0
    %2431 = vmatpush1.xpose.msra.mxu0 0.0
    %2432 = vmatprep.subr.mxu0 0.0
    %2433 = vmatpush1.xpose.msra.mxu0 0.0
    %2434 = vmatprep.subr.mxu0 0.0
    %2435 = vmatpush1.xpose.msra.mxu0 0.0
    %2436 = vmatprep.subr.mxu0 0.0
    %2437 = vmatpush1.xpose.msra.mxu0 0.0
    %2438 = vmatprep.subr.mxu0 0.0
    %2439 = vmatpush1.xpose.msra.mxu0 0.0
    %2440 = vmatprep.subr.mxu0 0.0
    %2441 = vmatpush1.xpose.msra.mxu0 0.0
    %2442 = vmatprep.subr.mxu0 0.0
    %2443 = vmatpush1.xpose.msra.mxu0 0.0
    %2444 = vmatprep.subr.mxu0 0.0
    %2445 = vmatpush1.xpose.msra.mxu0 0.0
    %2446 = vmatprep.subr.mxu0 0.0
    %2447 = vmatpush1.xpose.msra.mxu0 0.0
    %2448 = vmatprep.subr.mxu0 0.0
    %2449 = vmatpush1.xpose.msra.mxu0 0.0
    %2450 = vmatprep.subr.mxu0 0.0
    %2451 = vmatpush1.xpose.msra.mxu0 0.0
    %2452 = vmatprep.subr.mxu0 0.0
    %2453 = vmatpush1.xpose.msra.mxu0 0.0
    %2454 = vmatprep.subr.mxu0 0.0
    %2455 = vmatpush1.xpose.msra.mxu0 0.0
    %2456 = vmatprep.subr.mxu0 0.0
    %2457 = vmatpush1.xpose.msra.mxu0 0.0
    %2458 = vmatprep.subr.mxu0 0.0
    %2459 = vmatpush1.xpose.msra.mxu0 0.0
    %2460 = vmatprep.subr.mxu0 0.0
    %2461 = vmatpush1.xpose.msra.mxu0 0.0
    %2462 = vmatprep.subr.mxu0 0.0
    %2463 = vmatpush1.xpose.msra.mxu0 0.0
    %2464 = vmatprep.mubr.f32.mxu0 0.0
    %2465 = vmatmul.mubr.f32.gmra.mrb[0].mxu0 %v2386
    %v2466 = vpop.f32.mrb[0].mxu0
    %v2467 = vadd.f32 %v552, %v2466
    %v2468 = vpop.f32.mrb[0].mxu0
    %2469 = vdwg.mxu0
    %v2471 = vsel %vm296, %v2368, 0
    %v2474 = vsel %vm296, %v2373, 0
    %v2477 = vsel %vm296, %v2374, 0
    %v2480 = vsel %vm296, %v2375, 0
    %v2483 = vsel %vm296, %v2376, 0
    %2485 = vmatprep.subr.mxu0 0.0
    %2486 = vmatpush1.xpose.msra.mxu0 %v2474
    %2487 = vmatprep.subr.mxu0 0.0
    %2488 = vmatpush1.xpose.msra.mxu0 %v2477
    %2489 = vmatprep.subr.mxu0 0.0
    %2490 = vmatpush1.xpose.msra.mxu0 %v2480
    %2491 = vmatprep.subr.mxu0 0.0
    %2492 = vmatpush1.xpose.msra.mxu0 %v2483
    %2493 = vmatprep.subr.mxu0 0.0
    %2494 = vmatpush1.xpose.msra.mxu0 0.0
    %2495 = vmatprep.subr.mxu0 0.0
    %2496 = vmatpush1.xpose.msra.mxu0 0.0
    %2497 = vmatprep.subr.mxu0 0.0
    %2498 = vmatpush1.xpose.msra.mxu0 0.0
    %2499 = vmatprep.subr.mxu0 0.0
    %2500 = vmatpush1.xpose.msra.mxu0 0.0
    %2501 = vmatprep.subr.mxu0 0.0
    %2502 = vmatpush1.xpose.msra.mxu0 0.0
    %2503 = vmatprep.subr.mxu0 0.0
    %2504 = vmatpush1.xpose.msra.mxu0 0.0
    %2505 = vmatprep.subr.mxu0 0.0
    %2506 = vmatpush1.xpose.msra.mxu0 0.0
    %2507 = vmatprep.subr.mxu0 0.0
    %2508 = vmatpush1.xpose.msra.mxu0 0.0
    %2509 = vmatprep.subr.mxu0 0.0
    %2510 = vmatpush1.xpose.msra.mxu0 0.0
    %2511 = vmatprep.subr.mxu0 0.0
    %2512 = vmatpush1.xpose.msra.mxu0 0.0
    %2513 = vmatprep.subr.mxu0 0.0
    %2514 = vmatpush1.xpose.msra.mxu0 0.0
    %2515 = vmatprep.subr.mxu0 0.0
    %2516 = vmatpush1.xpose.msra.mxu0 0.0
    %2517 = vmatprep.subr.mxu0 0.0
    %2518 = vmatpush1.xpose.msra.mxu0 0.0
    %2519 = vmatprep.subr.mxu0 0.0
    %2520 = vmatpush1.xpose.msra.mxu0 0.0
    %2521 = vmatprep.subr.mxu0 0.0
    %2522 = vmatpush1.xpose.msra.mxu0 0.0
    %2523 = vmatprep.subr.mxu0 0.0
    %2524 = vmatpush1.xpose.msra.mxu0 0.0
    %2525 = vmatprep.subr.mxu0 0.0
    %2526 = vmatpush1.xpose.msra.mxu0 0.0
    %2527 = vmatprep.subr.mxu0 0.0
    %2528 = vmatpush1.xpose.msra.mxu0 0.0
    %2529 = vmatprep.subr.mxu0 0.0
    %2530 = vmatpush1.xpose.msra.mxu0 0.0
    %2531 = vmatprep.subr.mxu0 0.0
    %2532 = vmatpush1.xpose.msra.mxu0 0.0
    %2533 = vmatprep.subr.mxu0 0.0
    %2534 = vmatpush1.xpose.msra.mxu0 0.0
    %2535 = vmatprep.subr.mxu0 0.0
    %2536 = vmatpush1.xpose.msra.mxu0 0.0
    %2537 = vmatprep.subr.mxu0 0.0
    %2538 = vmatpush1.xpose.msra.mxu0 0.0
    %2539 = vmatprep.subr.mxu0 0.0
    %2540 = vmatpush1.xpose.msra.mxu0 0.0
    %2541 = vmatprep.subr.mxu0 0.0
    %2542 = vmatpush1.xpose.msra.mxu0 0.0
    %2543 = vmatprep.subr.mxu0 0.0
    %2544 = vmatpush1.xpose.msra.mxu0 0.0
    %2545 = vmatprep.subr.mxu0 0.0
    %2546 = vmatpush1.xpose.msra.mxu0 0.0
    %2547 = vmatprep.subr.mxu0 0.0
    %2548 = vmatpush1.xpose.msra.mxu0 0.0
    %2549 = vmatprep.mubr.f32.mxu0 0.0
    %2550 = vmatmul.mubr.f32.gmra.mrb[0].mxu0 %v2471
    %v2551 = vpop.f32.mrb[0].mxu0
    %v2552 = vadd.f32 %v556, %v2551
    %v2553 = vpop.f32.mrb[0].mxu0
    %2554 = vdwg.mxu0
    %v2555 = vsel %vm296, %v2467, -inf
    %2556 = vmax.xlane.f32.xlu0 %v2555
    %v2557 = vpop.xlane.xlu0 %2556
    %v2558 = vsel %vm296, %v2552, -inf
    %2559 = vmax.xlane.f32.xlu0 %v2558
    %v2560 = vpop.xlane.xlu0 %2559
    %v2561 = vsub.f32 %v2467, %v2557
    %v2562 = vsub.f32 %v2552, %v2560
    %v2563 = vmul.f32 %v2561, 1.442695
    %v2564 = vpow.pop %v2563
    %v2565 = vmul.f32 %v2562, 1.442695
    %v2566 = vpow.pop %v2565
    %2571 = vrot.lane.b32.xlu0 %v2377, 96
    %v2572 = vpop.permute.xlu0 %2571
    %2573 = vrot.lane.b32.xlu0 %v2378, 96
    %v2574 = vpop.permute.xlu0 %2573
    %2575 = vrot.lane.b32.xlu0 %v2379, 96
    %v2576 = vpop.permute.xlu0 %2575
    %2577 = vrot.lane.b32.xlu0 %v2380, 96
    %v2578 = vpop.permute.xlu0 %2577
    %v2584 = vsel %vm296, %v2564, 0
    %2586 = vmatprep.subr.mxu0 0.0
    %2587 = vmatpush1.msra.mxu0 %v2572
    %2588 = vmatprep.subr.mxu0 0.0
    %2589 = vmatpush1.msra.mxu0 %v2574
    %2590 = vmatprep.subr.mxu0 0.0
    %2591 = vmatpush1.msra.mxu0 %v2576
    %2592 = vmatprep.subr.mxu0 0.0
    %2593 = vmatpush1.msra.mxu0 %v2578
    %2594 = vmatprep.subr.mxu0 0.0
    %2595 = vmatpush1.msra.mxu0 0.0
    %2596 = vmatprep.subr.mxu0 0.0
    %2597 = vmatpush1.msra.mxu0 0.0
    %2598 = vmatprep.subr.mxu0 0.0
    %2599 = vmatpush1.msra.mxu0 0.0
    %2600 = vmatprep.subr.mxu0 0.0
    %2601 = vmatpush1.msra.mxu0 0.0
    %2602 = vmatprep.subr.mxu0 0.0
    %2603 = vmatpush1.msra.mxu0 0.0
    %2604 = vmatprep.subr.mxu0 0.0
    %2605 = vmatpush1.msra.mxu0 0.0
    %2606 = vmatprep.subr.mxu0 0.0
    %2607 = vmatpush1.msra.mxu0 0.0
    %2608 = vmatprep.subr.mxu0 0.0
    %2609 = vmatpush1.msra.mxu0 0.0
    %2610 = vmatprep.subr.mxu0 0.0
    %2611 = vmatpush1.msra.mxu0 0.0
    %2612 = vmatprep.subr.mxu0 0.0
    %2613 = vmatpush1.msra.mxu0 0.0
    %2614 = vmatprep.subr.mxu0 0.0
    %2615 = vmatpush1.msra.mxu0 0.0
    %2616 = vmatprep.subr.mxu0 0.0
    %2617 = vmatpush1.msra.mxu0 0.0
    %2618 = vmatprep.subr.mxu0 0.0
    %2619 = vmatpush1.msra.mxu0 0.0
    %2620 = vmatprep.subr.mxu0 0.0
    %2621 = vmatpush1.msra.mxu0 0.0
    %2622 = vmatprep.subr.mxu0 0.0
    %2623 = vmatpush1.msra.mxu0 0.0
    %2624 = vmatprep.subr.mxu0 0.0
    %2625 = vmatpush1.msra.mxu0 0.0
    %2626 = vmatprep.subr.mxu0 0.0
    %2627 = vmatpush1.msra.mxu0 0.0
    %2628 = vmatprep.subr.mxu0 0.0
    %2629 = vmatpush1.msra.mxu0 0.0
    %2630 = vmatprep.subr.mxu0 0.0
    %2631 = vmatpush1.msra.mxu0 0.0
    %2632 = vmatprep.subr.mxu0 0.0
    %2633 = vmatpush1.msra.mxu0 0.0
    %2634 = vmatprep.subr.mxu0 0.0
    %2635 = vmatpush1.msra.mxu0 0.0
    %2636 = vmatprep.subr.mxu0 0.0
    %2637 = vmatpush1.msra.mxu0 0.0
    %2638 = vmatprep.subr.mxu0 0.0
    %2639 = vmatpush1.msra.mxu0 0.0
    %2640 = vmatprep.subr.mxu0 0.0
    %2641 = vmatpush1.msra.mxu0 0.0
    %2642 = vmatprep.subr.mxu0 0.0
    %2643 = vmatpush1.msra.mxu0 0.0
    %2644 = vmatprep.subr.mxu0 0.0
    %2645 = vmatpush1.msra.mxu0 0.0
    %2646 = vmatprep.subr.mxu0 0.0
    %2647 = vmatpush1.msra.mxu0 0.0
    %2648 = vmatprep.subr.mxu0 0.0
    %2649 = vmatpush1.msra.mxu0 0.0
    %2650 = vmatprep.mubr.f32.mxu0 0.0
    %2651 = vmatmul.mubr.f32.gmra.mrb[0].mxu0 %v2584
    %v2652 = vpop.f32.mrb[0].mxu0
    %v2653 = vadd.f32 0.0, %v2652
    %v2654 = vpop.f32.mrb[0].mxu0
    %2655 = vdwg.mxu0
    %2660 = vrot.lane.b32.xlu0 %v2381, 96
    %v2661 = vpop.permute.xlu0 %2660
    %2662 = vrot.lane.b32.xlu0 %v2382, 96
    %v2663 = vpop.permute.xlu0 %2662
    %2664 = vrot.lane.b32.xlu0 %v2383, 96
    %v2665 = vpop.permute.xlu0 %2664
    %2666 = vrot.lane.b32.xlu0 %v2384, 96
    %v2667 = vpop.permute.xlu0 %2666
    %v2673 = vsel %vm296, %v2566, 0
    %2675 = vmatprep.subr.mxu0 0.0
    %2676 = vmatpush1.msra.mxu0 %v2661
    %2677 = vmatprep.subr.mxu0 0.0
    %2678 = vmatpush1.msra.mxu0 %v2663
    %2679 = vmatprep.subr.mxu0 0.0
    %2680 = vmatpush1.msra.mxu0 %v2665
    %2681 = vmatprep.subr.mxu0 0.0
    %2682 = vmatpush1.msra.mxu0 %v2667
    %2683 = vmatprep.subr.mxu0 0.0
    %2684 = vmatpush1.msra.mxu0 0.0
    %2685 = vmatprep.subr.mxu0 0.0
    %2686 = vmatpush1.msra.mxu0 0.0
    %2687 = vmatprep.subr.mxu0 0.0
    %2688 = vmatpush1.msra.mxu0 0.0
    %2689 = vmatprep.subr.mxu0 0.0
    %2690 = vmatpush1.msra.mxu0 0.0
    %2691 = vmatprep.subr.mxu0 0.0
    %2692 = vmatpush1.msra.mxu0 0.0
    %2693 = vmatprep.subr.mxu0 0.0
    %2694 = vmatpush1.msra.mxu0 0.0
    %2695 = vmatprep.subr.mxu0 0.0
    %2696 = vmatpush1.msra.mxu0 0.0
    %2697 = vmatprep.subr.mxu0 0.0
    %2698 = vmatpush1.msra.mxu0 0.0
    %2699 = vmatprep.subr.mxu0 0.0
    %2700 = vmatpush1.msra.mxu0 0.0
    %2701 = vmatprep.subr.mxu0 0.0
    %2702 = vmatpush1.msra.mxu0 0.0
    %2703 = vmatprep.subr.mxu0 0.0
    %2704 = vmatpush1.msra.mxu0 0.0
    %2705 = vmatprep.subr.mxu0 0.0
    %2706 = vmatpush1.msra.mxu0 0.0
    %2707 = vmatprep.subr.mxu0 0.0
    %2708 = vmatpush1.msra.mxu0 0.0
    %2709 = vmatprep.subr.mxu0 0.0
    %2710 = vmatpush1.msra.mxu0 0.0
    %2711 = vmatprep.subr.mxu0 0.0
    %2712 = vmatpush1.msra.mxu0 0.0
    %2713 = vmatprep.subr.mxu0 0.0
    %2714 = vmatpush1.msra.mxu0 0.0
    %2715 = vmatprep.subr.mxu0 0.0
    %2716 = vmatpush1.msra.mxu0 0.0
    %2717 = vmatprep.subr.mxu0 0.0
    %2718 = vmatpush1.msra.mxu0 0.0
    %2719 = vmatprep.subr.mxu0 0.0
    %2720 = vmatpush1.msra.mxu0 0.0
    %2721 = vmatprep.subr.mxu0 0.0
    %2722 = vmatpush1.msra.mxu0 0.0
    %2723 = vmatprep.subr.mxu0 0.0
    %2724 = vmatpush1.msra.mxu0 0.0
    %2725 = vmatprep.subr.mxu0 0.0
    %2726 = vmatpush1.msra.mxu0 0.0
    %2727 = vmatprep.subr.mxu0 0.0
    %2728 = vmatpush1.msra.mxu0 0.0
    %2729 = vmatprep.subr.mxu0 0.0
    %2730 = vmatpush1.msra.mxu0 0.0
    %2731 = vmatprep.subr.mxu0 0.0
    %2732 = vmatpush1.msra.mxu0 0.0
    %2733 = vmatprep.subr.mxu0 0.0
    %2734 = vmatpush1.msra.mxu0 0.0
    %2735 = vmatprep.subr.mxu0 0.0
    %2736 = vmatpush1.msra.mxu0 0.0
    %2737 = vmatprep.subr.mxu0 0.0
    %2738 = vmatpush1.msra.mxu0 0.0
    %2739 = vmatprep.mubr.f32.mxu0 0.0
    %2740 = vmatmul.mubr.f32.gmra.mrb[0].mxu0 %v2673
    %v2741 = vpop.f32.mrb[0].mxu0
    %v2742 = vadd.f32 0.0, %v2741
    %v2743 = vpop.f32.mrb[0].mxu0
    %2744 = vdwg.mxu0
    %2745 = vmatprep.subr.mxu0 0.0
    %2746 = vmatpush1.msra.mxu0 %v249
    %2747 = vmatprep.subr.mxu0 0.0
    %2748 = vmatpush1.msra.mxu0 %v250
    %2749 = vmatprep.subr.mxu0 0.0
    %2750 = vmatpush1.msra.mxu0 %v251
    %2751 = vmatprep.subr.mxu0 0.0
    %2752 = vmatpush1.msra.mxu0 %v252
    %2753 = vmatprep.subr.mxu0 0.0
    %2754 = vmatpush1.msra.mxu0 0.0
    %2755 = vmatprep.subr.mxu0 0.0
    %2756 = vmatpush1.msra.mxu0 0.0
    %2757 = vmatprep.subr.mxu0 0.0
    %2758 = vmatpush1.msra.mxu0 0.0
    %2759 = vmatprep.subr.mxu0 0.0
    %2760 = vmatpush1.msra.mxu0 0.0
    %2761 = vmatprep.subr.mxu0 0.0
    %2762 = vmatpush1.msra.mxu0 0.0
    %2763 = vmatprep.subr.mxu0 0.0
    %2764 = vmatpush1.msra.mxu0 0.0
    %2765 = vmatprep.subr.mxu0 0.0
    %2766 = vmatpush1.msra.mxu0 0.0
    %2767 = vmatprep.subr.mxu0 0.0
    %2768 = vmatpush1.msra.mxu0 0.0
    %2769 = vmatprep.subr.mxu0 0.0
    %2770 = vmatpush1.msra.mxu0 0.0
    %2771 = vmatprep.subr.mxu0 0.0
    %2772 = vmatpush1.msra.mxu0 0.0
    %2773 = vmatprep.subr.mxu0 0.0
    %2774 = vmatpush1.msra.mxu0 0.0
    %2775 = vmatprep.subr.mxu0 0.0
    %2776 = vmatpush1.msra.mxu0 0.0
    %2777 = vmatprep.subr.mxu0 0.0
    %2778 = vmatpush1.msra.mxu0 0.0
    %2779 = vmatprep.subr.mxu0 0.0
    %2780 = vmatpush1.msra.mxu0 0.0
    %2781 = vmatprep.subr.mxu0 0.0
    %2782 = vmatpush1.msra.mxu0 0.0
    %2783 = vmatprep.subr.mxu0 0.0
    %2784 = vmatpush1.msra.mxu0 0.0
    %2785 = vmatprep.subr.mxu0 0.0
    %2786 = vmatpush1.msra.mxu0 0.0
    %2787 = vmatprep.subr.mxu0 0.0
    %2788 = vmatpush1.msra.mxu0 0.0
    %2789 = vmatprep.subr.mxu0 0.0
    %2790 = vmatpush1.msra.mxu0 0.0
    %2791 = vmatprep.subr.mxu0 0.0
    %2792 = vmatpush1.msra.mxu0 0.0
    %2793 = vmatprep.subr.mxu0 0.0
    %2794 = vmatpush1.msra.mxu0 0.0
    %2795 = vmatprep.subr.mxu0 0.0
    %2796 = vmatpush1.msra.mxu0 0.0
    %2797 = vmatprep.subr.mxu0 0.0
    %2798 = vmatpush1.msra.mxu0 0.0
    %2799 = vmatprep.subr.mxu0 0.0
    %2800 = vmatpush1.msra.mxu0 0.0
    %2801 = vmatprep.subr.mxu0 0.0
    %2802 = vmatpush1.msra.mxu0 0.0
    %2803 = vmatprep.subr.mxu0 0.0
    %2804 = vmatpush1.msra.mxu0 0.0
    %2805 = vmatprep.subr.mxu0 0.0
    %2806 = vmatpush1.msra.mxu0 0.0
    %2807 = vmatprep.subr.mxu0 0.0
    %2808 = vmatpush1.msra.mxu0 0.0
    %2809 = vmatprep.mubr.f32.mxu0 0.0
    %2810 = vmatmul.mubr.f32.gmra.mrb[0].mxu0 %v2584
    %v2811 = vpop.f32.mrb[0].mxu0
    %v2812 = vadd.f32 0.0, %v2811
    %v2813 = vpop.f32.mrb[0].mxu0
    %2814 = vmatprep.mubr.f32.mxu0 0.0
    %2815 = vmatmul.mubr.f32.gmra.mrb[0].mxu0 %v2673
    %v2816 = vpop.f32.mrb[0].mxu0
    %v2817 = vadd.f32 0.0, %v2816
    %v2818 = vpop.f32.mrb[0].mxu0
    %2819 = vdwg.mxu0
    %v2820 = vrcp.pop %v2812
    %v2821 = vrcp.pop %v2817
    %v2822 = vmul.f32 %v2653, %v2820
    %v2823 = vmul.f32 %v2742, %v2821
    %v2825 = vsel %vm296, %v2822, 0
    %v2828 = vsel %vm296, %v2823, 0
    %2830 = vmatprep.subr.mxu0 0.0
    %2831 = vmatpush1.msra.mxu0 %v277
    %2832 = vmatprep.subr.mxu0 0.0
    %2833 = vmatpush1.msra.mxu0 %v278
    %2834 = vmatprep.subr.mxu0 0.0
    %2835 = vmatpush1.msra.mxu0 %v279
    %2836 = vmatprep.subr.mxu0 0.0
    %2837 = vmatpush1.msra.mxu0 %v280
    %2838 = vmatprep.subr.mxu0 0.0
    %2839 = vmatpush1.msra.mxu0 0.0
    %2840 = vmatprep.subr.mxu0 0.0
    %2841 = vmatpush1.msra.mxu0 0.0
    %2842 = vmatprep.subr.mxu0 0.0
    %2843 = vmatpush1.msra.mxu0 0.0
    %2844 = vmatprep.subr.mxu0 0.0
    %2845 = vmatpush1.msra.mxu0 0.0
    %2846 = vmatprep.subr.mxu0 0.0
    %2847 = vmatpush1.msra.mxu0 0.0
    %2848 = vmatprep.subr.mxu0 0.0
    %2849 = vmatpush1.msra.mxu0 0.0
    %2850 = vmatprep.subr.mxu0 0.0
    %2851 = vmatpush1.msra.mxu0 0.0
    %2852 = vmatprep.subr.mxu0 0.0
    %2853 = vmatpush1.msra.mxu0 0.0
    %2854 = vmatprep.subr.mxu0 0.0
    %2855 = vmatpush1.msra.mxu0 0.0
    %2856 = vmatprep.subr.mxu0 0.0
    %2857 = vmatpush1.msra.mxu0 0.0
    %2858 = vmatprep.subr.mxu0 0.0
    %2859 = vmatpush1.msra.mxu0 0.0
    %2860 = vmatprep.subr.mxu0 0.0
    %2861 = vmatpush1.msra.mxu0 0.0
    %2862 = vmatprep.subr.mxu0 0.0
    %2863 = vmatpush1.msra.mxu0 0.0
    %2864 = vmatprep.subr.mxu0 0.0
    %2865 = vmatpush1.msra.mxu0 0.0
    %2866 = vmatprep.subr.mxu0 0.0
    %2867 = vmatpush1.msra.mxu0 0.0
    %2868 = vmatprep.subr.mxu0 0.0
    %2869 = vmatpush1.msra.mxu0 0.0
    %2870 = vmatprep.subr.mxu0 0.0
    %2871 = vmatpush1.msra.mxu0 0.0
    %2872 = vmatprep.subr.mxu0 0.0
    %2873 = vmatpush1.msra.mxu0 0.0
    %2874 = vmatprep.subr.mxu0 0.0
    %2875 = vmatpush1.msra.mxu0 0.0
    %2876 = vmatprep.subr.mxu0 0.0
    %2877 = vmatpush1.msra.mxu0 0.0
    %2878 = vmatprep.subr.mxu0 0.0
    %2879 = vmatpush1.msra.mxu0 0.0
    %2880 = vmatprep.subr.mxu0 0.0
    %2881 = vmatpush1.msra.mxu0 0.0
    %2882 = vmatprep.subr.mxu0 0.0
    %2883 = vmatpush1.msra.mxu0 0.0
    %2884 = vmatprep.subr.mxu0 0.0
    %2885 = vmatpush1.msra.mxu0 0.0
    %2886 = vmatprep.subr.mxu0 0.0
    %2887 = vmatpush1.msra.mxu0 0.0
    %2888 = vmatprep.subr.mxu0 0.0
    %2889 = vmatpush1.msra.mxu0 0.0
    %2890 = vmatprep.subr.mxu0 0.0
    %2891 = vmatpush1.msra.mxu0 0.0
    %2892 = vmatprep.subr.mxu0 0.0
    %2893 = vmatpush1.msra.mxu0 0.0
    %2894 = vmatprep.mubr.f32.mxu0 0.0
    %2895 = vmatmul.mubr.f32.gmra.mrb[0].mxu0 %v2825
    %v2896 = vpop.f32.mrb[0].mxu0
    %v2897 = vadd.f32 %v2165, %v2896
    %v2898 = vpop.f32.mrb[0].mxu0
    %2899 = vmatprep.mubr.f32.mxu0 0.0
    %2900 = vmatmul.mubr.f32.gmra.mrb[0].mxu0 %v2828
    %v2901 = vpop.f32.mrb[0].mxu0
    %v2902 = vadd.f32 %v2165, %v2901
    %v2903 = vpop.f32.mrb[0].mxu0
    %2904 = vdwg.mxu0
    %v2905 = vadd.f32 %v1509, %v2897
    %v2906 = vadd.f32 %v1510, %v2902
    %2907 = vst.msk [vmem:[#allocation25] sm:$0xff] %vm296, %v2905
    %2908 = vst.msk [vmem:[#allocation25 + $0x8] sm:$0xff] %vm296, %v2906
    %2909 = vst.msk [vmem:[#allocation25 + $0x10] sm:$0xff] %vm296, %v2248
    %2910 = vst.msk [vmem:[#allocation25 + $0x18] sm:$0xff] %vm296, %v2249
    %v2911 = vld [vmem:[#allocation25] sm:$0xff]
    %v2912 = vld [vmem:[#allocation25 + $0x8] sm:$0xff]
    %v2913 = vld [vmem:[#allocation25 + $0x10] sm:$0xff]
    %v2914 = vld [vmem:[#allocation25 + $0x18] sm:$0xff]
    %v2915 = vsel %vm296, %v2911, 0.0
    %2916 = vadd.xlane.f32.xlu0 %v2915
    %v2917 = vpop.xlane.xlu0 %2916
    %v2918 = vsel %vm296, %v2912, 0.0
    %2919 = vadd.xlane.f32.xlu0 %v2918
    %v2920 = vpop.xlane.xlu0 %2919
    %v2921 = vsel %vm296, %v2913, 0.0
    %2922 = vadd.xlane.f32.xlu0 %v2921
    %v2923 = vpop.xlane.xlu0 %2922
    %v2924 = vsel %vm296, %v2914, 0.0
    %2925 = vadd.xlane.f32.xlu0 %v2924
    %v2926 = vpop.xlane.xlu0 %2925
    %v2927 = vmul.f32 %v2917, %v309
    %v2928 = vmul.f32 %v2920, %v309
    %v2929 = vmul.f32 %v2923, %v309
    %v2930 = vmul.f32 %v2926, %v309
    %v2931 = vsub.f32 %v2911, %v2927
    %v2932 = vsub.f32 %v2912, %v2928
    %v2933 = vsub.f32 %v2913, %v2929
    %v2934 = vsub.f32 %v2914, %v2930
    %v2935 = vmul.f32 %v2931, %v2931
    %v2936 = vmul.f32 %v2932, %v2932
    %v2937 = vmul.f32 %v2933, %v2933
    %v2938 = vmul.f32 %v2934, %v2934
    %v2939 = vsel %vm296, %v2935, 0.0
    %2940 = vadd.xlane.f32.xlu0 %v2939
    %v2941 = vpop.xlane.xlu0 %2940
    %v2942 = vsel %vm296, %v2936, 0.0
    %2943 = vadd.xlane.f32.xlu0 %v2942
    %v2944 = vpop.xlane.xlu0 %2943
    %v2945 = vsel %vm296, %v2937, 0.0
    %2946 = vadd.xlane.f32.xlu0 %v2945
    %v2947 = vpop.xlane.xlu0 %2946
    %v2948 = vsel %vm296, %v2938, 0.0
    %2949 = vadd.xlane.f32.xlu0 %v2948
    %v2950 = vpop.xlane.xlu0 %2949
    %v2951 = vmul.f32 %v2941, %v309
    %v2952 = vmul.f32 %v2944, %v309
    %v2953 = vmul.f32 %v2947, %v309
    %v2954 = vmul.f32 %v2950, %v309
    %v2955 = vadd.f32 %v2951, 1e-06
    %v2956 = vadd.f32 %v2952, 1e-06
    %v2957 = vadd.f32 %v2953, 1e-06
    %v2958 = vadd.f32 %v2954, 1e-06
    %v2959 = vrsqrt.pop %v2955
    %v2960 = vrsqrt.pop %v2956
    %v2961 = vrsqrt.pop %v2957
    %v2962 = vrsqrt.pop %v2958
    %v2963 = vmul.f32 %v2931, %v2959
    %v2964 = vmul.f32 %v2932, %v2960
    %v2965 = vmul.f32 %v2933, %v2961
    %v2966 = vmul.f32 %v2934, %v2962
    %v2967 = vmul.f32 %v2963, %v354
    %v2968 = vmul.f32 %v2964, %v354
    %v2969 = vmul.f32 %v2965, %v354
    %v2970 = vmul.f32 %v2966, %v354
    %v2971 = vadd.f32 %v2967, %v364
    %v2972 = vadd.f32 %v2968, %v364
    %v2973 = vadd.f32 %v2969, %v364
    %v2974 = vadd.f32 %v2970, %v364
    %v2976 = vlaneseq
    %v2977 = vshrl.u32 %v2976, 7
    %v2978 = vsub.s32 0, %v2977
    %v2979 = vrot.slane %v286, %v2978
    %v2982 = vsel %vm296, %v2971, 0
    %v2985 = vsel %vm296, %v2972, 0
    %v2988 = vsel %vm296, %v2973, 0
    %v2991 = vsel %vm296, %v2974, 0
    %2993 = vmatprep.subr.mxu0 0.0
    %2994 = vmatpush1.msra.mxu0 %v282
    %2995 = vmatprep.subr.mxu0 0.0
    %2996 = vmatpush1.msra.mxu0 %v283
    %2997 = vmatprep.subr.mxu0 0.0
    %2998 = vmatpush1.msra.mxu0 %v284
    %2999 = vmatprep.subr.mxu0 0.0
    %3000 = vmatpush1.msra.mxu0 %v285
    %3001 = vmatprep.subr.mxu0 0.0
    %3002 = vmatpush1.msra.mxu0 0.0
    %3003 = vmatprep.subr.mxu0 0.0
    %3004 = vmatpush1.msra.mxu0 0.0
    %3005 = vmatprep.subr.mxu0 0.0
    %3006 = vmatpush1.msra.mxu0 0.0
    %3007 = vmatprep.subr.mxu0 0.0
    %3008 = vmatpush1.msra.mxu0 0.0
    %3009 = vmatprep.subr.mxu0 0.0
    %3010 = vmatpush1.msra.mxu0 0.0
    %3011 = vmatprep.subr.mxu0 0.0
    %3012 = vmatpush1.msra.mxu0 0.0
    %3013 = vmatprep.subr.mxu0 0.0
    %3014 = vmatpush1.msra.mxu0 0.0
    %3015 = vmatprep.subr.mxu0 0.0
    %3016 = vmatpush1.msra.mxu0 0.0
    %3017 = vmatprep.subr.mxu0 0.0
    %3018 = vmatpush1.msra.mxu0 0.0
    %3019 = vmatprep.subr.mxu0 0.0
    %3020 = vmatpush1.msra.mxu0 0.0
    %3021 = vmatprep.subr.mxu0 0.0
    %3022 = vmatpush1.msra.mxu0 0.0
    %3023 = vmatprep.subr.mxu0 0.0
    %3024 = vmatpush1.msra.mxu0 0.0
    %3025 = vmatprep.subr.mxu0 0.0
    %3026 = vmatpush1.msra.mxu0 0.0
    %3027 = vmatprep.subr.mxu0 0.0
    %3028 = vmatpush1.msra.mxu0 0.0
    %3029 = vmatprep.subr.mxu0 0.0
    %3030 = vmatpush1.msra.mxu0 0.0
    %3031 = vmatprep.subr.mxu0 0.0
    %3032 = vmatpush1.msra.mxu0 0.0
    %3033 = vmatprep.subr.mxu0 0.0
    %3034 = vmatpush1.msra.mxu0 0.0
    %3035 = vmatprep.subr.mxu0 0.0
    %3036 = vmatpush1.msra.mxu0 0.0
    %3037 = vmatprep.subr.mxu0 0.0
    %3038 = vmatpush1.msra.mxu0 0.0
    %3039 = vmatprep.subr.mxu0 0.0
    %3040 = vmatpush1.msra.mxu0 0.0
    %3041 = vmatprep.subr.mxu0 0.0
    %3042 = vmatpush1.msra.mxu0 0.0
    %3043 = vmatprep.subr.mxu0 0.0
    %3044 = vmatpush1.msra.mxu0 0.0
    %3045 = vmatprep.subr.mxu0 0.0
    %3046 = vmatpush1.msra.mxu0 0.0
    %3047 = vmatprep.subr.mxu0 0.0
    %3048 = vmatpush1.msra.mxu0 0.0
    %3049 = vmatprep.subr.mxu0 0.0
    %3050 = vmatpush1.msra.mxu0 0.0
    %3051 = vmatprep.subr.mxu0 0.0
    %3052 = vmatpush1.msra.mxu0 0.0
    %3053 = vmatprep.subr.mxu0 0.0
    %3054 = vmatpush1.msra.mxu0 0.0
    %3055 = vmatprep.subr.mxu0 0.0
    %3056 = vmatpush1.msra.mxu0 0.0
    %3057 = vmatprep.mubr.f32.mxu0 0.0
    %3058 = vmatmul.mubr.f32.gmra.mrb[0].mxu0 %v2982
    %v3059 = vpop.f32.mrb[0].mxu0
    %v3060 = vadd.f32 %v2979, %v3059
    %v3061 = vpop.f32.mrb[0].mxu0
    %3062 = vmatprep.mubr.f32.mxu0 0.0
    %3063 = vmatmul.mubr.f32.gmra.mrb[0].mxu0 %v2985
    %v3064 = vpop.f32.mrb[0].mxu0
    %v3065 = vadd.f32 %v2979, %v3064
    %v3066 = vpop.f32.mrb[0].mxu0
    %3067 = vmatprep.mubr.f32.mxu0 0.0
    %3068 = vmatmul.mubr.f32.gmra.mrb[0].mxu0 %v2988
    %v3069 = vpop.f32.mrb[0].mxu0
    %v3070 = vadd.f32 %v2979, %v3069
    %v3071 = vpop.f32.mrb[0].mxu0
    %3072 = vmatprep.mubr.f32.mxu0 0.0
    %3073 = vmatmul.mubr.f32.gmra.mrb[0].mxu0 %v2991
    %v3074 = vpop.f32.mrb[0].mxu0
    %v3075 = vadd.f32 %v2979, %v3074
    %v3076 = vpop.f32.mrb[0].mxu0
    %3077 = vdwg.mxu0
    %v3078 = vmax.f32 %v3060, 0.0
    %v3079 = vmax.f32 %v3065, 0.0
    %v3080 = vmax.f32 %v3070, 0.0
    %v3081 = vmax.f32 %v3075, 0.0
    %v3083 = vlaneseq
    %v3084 = vshrl.u32 %v3083, 7
    %v3085 = vsub.s32 0, %v3084
    %v3086 = vrot.slane %v295, %v3085
    %vm3088 = vcmask 523264
    %v3090 = vsel %vm3088, %v3078, 0
    %v3093 = vsel %vm3088, %v3079, 0
    %v3096 = vsel %vm3088, %v3080, 0
    %v3099 = vsel %vm3088, %v3081, 0
    %3101 = vmatprep.subr.mxu0 0.0
    %3102 = vmatpush1.msra.mxu0 %v287
    %3103 = vmatprep.subr.mxu0 0.0
    %3104 = vmatpush1.msra.mxu0 %v288
    %3105 = vmatprep.subr.mxu0 0.0
    %3106 = vmatpush1.msra.mxu0 %v289
    %3107 = vmatprep.subr.mxu0 0.0
    %3108 = vmatpush1.msra.mxu0 %v290
    %3109 = vmatprep.subr.mxu0 0.0
    %3110 = vmatpush1.msra.mxu0 %v291
    %3111 = vmatprep.subr.mxu0 0.0
    %3112 = vmatpush1.msra.mxu0 %v292
    %3113 = vmatprep.subr.mxu0 0.0
    %3114 = vmatpush1.msra.mxu0 %v293
    %3115 = vmatprep.subr.mxu0 0.0
    %3116 = vmatpush1.msra.mxu0 %v294
    %3117 = vmatprep.subr.mxu0 0.0
    %3118 = vmatpush1.msra.mxu0 0.0
    %3119 = vmatprep.subr.mxu0 0.0
    %3120 = vmatpush1.msra.mxu0 0.0
    %3121 = vmatprep.subr.mxu0 0.0
    %3122 = vmatpush1.msra.mxu0 0.0
    %3123 = vmatprep.subr.mxu0 0.0
    %3124 = vmatpush1.msra.mxu0 0.0
    %3125 = vmatprep.subr.mxu0 0.0
    %3126 = vmatpush1.msra.mxu0 0.0
    %3127 = vmatprep.subr.mxu0 0.0
    %3128 = vmatpush1.msra.mxu0 0.0
    %3129 = vmatprep.subr.mxu0 0.0
    %3130 = vmatpush1.msra.mxu0 0.0
    %3131 = vmatprep.subr.mxu0 0.0
    %3132 = vmatpush1.msra.mxu0 0.0
    %3133 = vmatprep.subr.mxu0 0.0
    %3134 = vmatpush1.msra.mxu0 0.0
    %3135 = vmatprep.subr.mxu0 0.0
    %3136 = vmatpush1.msra.mxu0 0.0
    %3137 = vmatprep.subr.mxu0 0.0
    %3138 = vmatpush1.msra.mxu0 0.0
    %3139 = vmatprep.subr.mxu0 0.0
    %3140 = vmatpush1.msra.mxu0 0.0
    %3141 = vmatprep.subr.mxu0 0.0
    %3142 = vmatpush1.msra.mxu0 0.0
    %3143 = vmatprep.subr.mxu0 0.0
    %3144 = vmatpush1.msra.mxu0 0.0
    %3145 = vmatprep.subr.mxu0 0.0
    %3146 = vmatpush1.msra.mxu0 0.0
    %3147 = vmatprep.subr.mxu0 0.0
    %3148 = vmatpush1.msra.mxu0 0.0
    %3149 = vmatprep.subr.mxu0 0.0
    %3150 = vmatpush1.msra.mxu0 0.0
    %3151 = vmatprep.subr.mxu0 0.0
    %3152 = vmatpush1.msra.mxu0 0.0
    %3153 = vmatprep.subr.mxu0 0.0
    %3154 = vmatpush1.msra.mxu0 0.0
    %3155 = vmatprep.subr.mxu0 0.0
    %3156 = vmatpush1.msra.mxu0 0.0
    %3157 = vmatprep.subr.mxu0 0.0
    %3158 = vmatpush1.msra.mxu0 0.0
    %3159 = vmatprep.subr.mxu0 0.0
    %3160 = vmatpush1.msra.mxu0 0.0
    %3161 = vmatprep.subr.mxu0 0.0
    %3162 = vmatpush1.msra.mxu0 0.0
    %3163 = vmatprep.subr.mxu0 0.0
    %3164 = vmatpush1.msra.mxu0 0.0
    %3165 = vmatprep.mubr.f32.mxu0 0.0
    %3166 = vmatmul.mubr.f32.gmra.mrb[0].mxu0 %v3090
    %v3167 = vpop.f32.mrb[0].mxu0
    %v3168 = vadd.f32 %v3086, %v3167
    %v3169 = vpop.f32.mrb[0].mxu0
    %3170 = vmatprep.mubr.f32.mxu0 0.0
    %3171 = vmatmul.mubr.f32.gmra.mrb[0].mxu0 %v3093
    %v3172 = vpop.f32.mrb[0].mxu0
    %v3173 = vadd.f32 %v3086, %v3172
    %v3174 = vpop.f32.mrb[0].mxu0
    %3175 = vmatprep.mubr.f32.mxu0 0.0
    %3176 = vmatmul.mubr.f32.gmra.mrb[0].mxu0 %v3096
    %v3177 = vpop.f32.mrb[0].mxu0
    %v3178 = vadd.f32 %v3086, %v3177
    %v3179 = vpop.f32.mrb[0].mxu0
    %3180 = vmatprep.mubr.f32.mxu0 0.0
    %3181 = vmatmul.mubr.f32.gmra.mrb[0].mxu0 %v3099
    %v3182 = vpop.f32.mrb[0].mxu0
    %v3183 = vadd.f32 %v3086, %v3182
    %v3184 = vpop.f32.mrb[0].mxu0
    %3185 = vdwg.mxu0
    %v3186 = vadd.f32 %v2911, %v3168
    %v3187 = vadd.f32 %v2912, %v3173
    %v3188 = vadd.f32 %v2913, %v3178
    %v3189 = vadd.f32 %v2914, %v3183
    %3190 = vst.msk [vmem:[#allocation25] sm:$0xff] %vm296, %v3186
    %3191 = vst.msk [vmem:[#allocation25 + $0x8] sm:$0xff] %vm296, %v3187
    %3192 = vst.msk [vmem:[#allocation25 + $0x10] sm:$0xff] %vm296, %v3188
    %3193 = vst.msk [vmem:[#allocation25 + $0x18] sm:$0xff] %vm296, %v3189
    // Predicated region
    $region142: #{tpu_custom_call.1} parent=1 // pred_check
      _
    $region143: #{tpu_custom_call.1} parent=1 // pred_check_branch
      %3195 = sbr.rel (0) target = $region145
    $region144: #{tpu_custom_call.1} parent=1 // pred_region
      %s3197 = ssub.s32 512, 512
      %3198 = vsyncadd [#allocation4], %s3197
      %s3199 = sshll.u32 [#allocation25], 4
      %s3200 = int_to_ptr.vmem [resolvable:$true] %s3199
      %3205 = dma.vmem_to_hbm [thread:$0]  %s3200, 512, %s21, [#allocation4], 128, 128, 8
    $region145: #{tpu_custom_call.1} parent=1 // pred_fallthru
      _
    // Predicated region
    $region146: #{tpu_custom_call.1} parent=1 // pred_check
      _
    $region147: #{tpu_custom_call.1} parent=1 // pred_check_branch
      %3207 = sbr.rel (0) target = $region149
    $region148: #{tpu_custom_call.1} parent=1 // pred_region
      %3208 = dma.done [#allocation4], 512
    $region149: #{tpu_custom_call.1} parent=1 // pred_fallthru
      _
    %3209 = vsyncpa [#allocation3], 1
    %3210 = vsyncpa [#allocation6], 1
    %3211 = vsyncpa [#allocation9], 1
    %3212 = vsyncpa [#allocation12], 1
    %3213 = vsyncpa [#allocation15], 1
    %3214 = vsyncpa [#allocation18], 1
    %3215 = vsyncpa [#allocation21], 1
    %3216 = vsyncpa [#allocation24], 1
    %3217 = vsyncpa [#allocation4], 1

</llo_original>
